<compile_context>
chip_gen: v5e
topology: v5e:2x2
jax: 0.10.0
libtpu: 0.0.40
codegen_flags: <defaults>
</compile_context>

<pallas_src>
import functools

import numpy as np
import jax
import jax.numpy as jnp
from jax import lax
from jax.experimental import pallas as pl
from jax.experimental.pallas import tpu as pltpu


# ----------------------------- Pallas kernel ---------------------------------


def _resunit_kernel(xf_ref, mask_ref, w1_ref, w2_ref, g_ref,
                    g1_ref, b1_ref, g2_ref, b2_ref, br_ref,
                    out_ref, grid2_ref, *,
                    k, pad, r_rows, out_lanes, count, eps, neg_slope):
    nhp = xf_ref.shape[0]
    mask = mask_ref[...]                              # [r_rows, 1] valid-row mask
    inv_count = 1.0 / count

    def bn_lrelu(y, gamma_b, beta_b):
        # One-pass training-mode BatchNorm over the valid rows + LeakyReLU.
        s = jnp.sum(y * mask, axis=0, keepdims=True)              # [1, L]
        ssq = jnp.sum(y * y * mask, axis=0, keepdims=True)        # [1, L]
        # channel reduce + broadcast back to every (w, c) lane in one tiny GEMM
        mean = jnp.dot(s, g_ref[...], preferred_element_type=jnp.float32) * inv_count
        ex2 = jnp.dot(ssq, g_ref[...], preferred_element_type=jnp.float32) * inv_count
        var = jnp.maximum(ex2 - mean * mean, 0.0)
        yn = (y - mean) * (gamma_b * lax.rsqrt(var + eps)) + beta_b
        return jnp.maximum(yn, neg_slope * yn)                    # LeakyReLU

    # ---- CBL #1 (1x1 conv + residual conv folded into the band weights) -----
    acc1 = jnp.dot(xf_ref[0:r_rows, :], w1_ref[0],
                   preferred_element_type=jnp.float32)
    for di in range(1, k):
        acc1 = acc1 + jnp.dot(xf_ref[di:di + r_rows, :], w1_ref[di],
                              preferred_element_type=jnp.float32)
    h1_pre = acc1[:, :out_lanes]                       # CBL#1 pre-BN
    res = acc1[:, out_lanes:] + br_ref[...]            # residual 1x1 conv (+bias)

    h1 = bn_lrelu(h1_pre, g1_ref[...], b1_ref[...])

    # ---- re-pad CBL#1 output rows for CBL#2 (only 2*pad border rows zeroed) --
    grid2_ref[0:pad, :] = jnp.zeros((pad, out_lanes), grid2_ref.dtype)
    grid2_ref[nhp - pad:nhp, :] = jnp.zeros((pad, out_lanes), grid2_ref.dtype)
    grid2_ref[pad:pad + r_rows, :] = (h1 * mask).astype(grid2_ref.dtype)

    # ---- CBL #2 (1x1 conv folded into the band weights) ----------------------
    acc2 = jnp.dot(grid2_ref[0:r_rows, :], w2_ref[0],
                   preferred_element_type=jnp.float32)
    for di in range(1, k):
        acc2 = acc2 + jnp.dot(grid2_ref[di:di + r_rows, :], w2_ref[di],
                              preferred_element_type=jnp.float32)
    h2 = bn_lrelu(acc2, g2_ref[...], b2_ref[...])

    out_ref[...] = (h2 + res).astype(out_ref.dtype)


# ----------------------------- wrapper ---------------------------------------


def _band_weights(wf, W, pad):
    """wf: [k, k, ci, co] folded tap weights -> [k, W*ci, W*co] banded
    block-Toeplitz matrices (one per row tap di). The dj (column) taps and the
    'same' column zero-padding are encoded in the band structure."""
    k = wf.shape[0]
    ci, co = wf.shape[2], wf.shape[3]
    wi = np.arange(W)[:, None]
    wo = np.arange(W)[None, :]
    sel = np.stack([(wi - wo) == (dj - pad) for dj in range(k)], 0)   # [k, W, W]
    sel = jnp.asarray(sel, wf.dtype)
    band = jnp.einsum('jab,djio->daibo', sel, wf)      # [k, W, ci, W, co]
    return band.reshape(k, W * ci, W * co)


def resunit_forward_pallas(x_nchw, params, *, k=3, stride=1, padding=1,
                           eps=1e-5, neg_slope=0.1,
                           compute_dtype=jnp.float32):
    if stride != 1:
        # TODO(synk): stride>1 ResUnit is not shape-consistent with the residual
        # add in the original module; only stride=1 is implemented.
        raise NotImplementedError("ResUnit Pallas kernel supports stride=1 only")
    if k - 1 != 2 * padding:
        raise NotImplementedError("residual add requires 'same' convolution")

    N, cin, H, W = x_nchw.shape
    cout = params['w1b'].shape[-1]
    Hp = H + 2 * padding
    NHp = N * Hp
    R_rows = NHp - 2 * padding          # rows covering every valid output row
    L1 = W * cin                        # input lane width
    L2 = W * cout                       # intermediate/output lane width
    count = float(N * H * W)            # BN element count per channel

    # ---- glue (XLA, traced once under jit): layout + weight folding ---------
    x = jnp.transpose(x_nchw, (0, 2, 3, 1)).astype(jnp.float32)       # NHWC
    xpad = jnp.pad(x, ((0, 0), (padding, padding), (0, 0), (0, 0)))   # pad H only
    xflat = xpad.reshape(NHp, L1).astype(compute_dtype)

    mask = ((np.arange(R_rows) % Hp) < H).astype(np.float32).reshape(R_rows, 1)
    mask = jnp.asarray(mask)

    # fold each CBL's trailing 1x1 conv into its kxk tap weights (exact)
    wf1 = jnp.einsum('hwio,oc->hwic', params['w1a'],
                     params['w1b'].reshape(cin, cout))                # [k,k,cin,cout]
    wf2 = jnp.einsum('hwio,oc->hwic', params['w2a'],
                     params['w2b'].reshape(cout, cout))               # [k,k,cout,cout]
    wr = params['wr'].reshape(cin, cout)

    band1 = _band_weights(wf1, W, padding)            # [k, L1, L2]
    band2 = _band_weights(wf2, W, padding)            # [k, L2, L2]

    # residual 1x1 conv as block-diagonal extra output lanes of the centre tap
    rdiag = jnp.einsum('ab,io->aibo', jnp.eye(W, dtype=jnp.float32),
                       wr).reshape(L1, L2)
    zeros_r = jnp.zeros_like(rdiag)
    w1_all = jnp.stack(
        [jnp.concatenate([band1[di], rdiag if di == padding else zeros_r], axis=1)
         for di in range(k)], axis=0).astype(compute_dtype)           # [k, L1, 2*L2]
    w2_all = band2.astype(compute_dtype)                              # [k, L2, L2]

    # 0/1 matrix: channel-sum + broadcast-back for BN stats on the (w,c) lanes
    lane = np.arange(L2)
    G = jnp.asarray((lane[:, None] % cout) == (lane[None, :] % cout), jnp.float32)

    def tile_c(v):  # [cout] -> [1, W*cout] replicated over the w lane blocks
        return jnp.tile(v.reshape(1, cout), (1, W))

    g1b, b1b = tile_c(params['g1']), tile_c(params['b1'])
    g2b, b2b = tile_c(params['g2']), tile_c(params['b2'])
    brb = tile_c(params['br'])

    kernel = functools.partial(
        _resunit_kernel, k=k, pad=padding, r_rows=R_rows,
        out_lanes=L2, count=count, eps=eps, neg_slope=neg_slope)

    out_flat = pl.pallas_call(
        kernel,
        out_shape=jax.ShapeDtypeStruct((R_rows, L2), jnp.float32),
        scratch_shapes=[pltpu.VMEM((NHp, L2), compute_dtype)],
    )(xflat, mask, w1_all, w2_all, G, g1b, b1b, g2b, b2b, brb)

    # glue (XLA): drop the invalid rows, return NCHW
    out = jnp.pad(out_flat, ((0, NHp - R_rows), (0, 0)))
    out = out.reshape(N, Hp, W, cout)[:, :H]
    return jnp.transpose(out, (0, 3, 1, 2))


# ---------------- parameters (deterministic, kaiming-normal style) -----------


def _kaiming(key, kh, kw, cin, cout):
    std = (2.0 / (cin * kh * kw)) ** 0.5
    return jax.random.normal(key, (kh, kw, cin, cout), jnp.float32) * std


def init_resunit_params(key, in_channels, out_channels, k=3, factor=0.25):
    cin = round(in_channels * factor)
    cout = round(out_channels * factor)
    ks = jax.random.split(key, 6)
    return dict(
        # CBL(in, out): conv kxk (cin->cin, no bias), conv 1x1 (cin->cout), BN(cout)
        w1a=_kaiming(ks[0], k, k, cin, cin),
        w1b=_kaiming(ks[1], 1, 1, cin, cout),
        g1=jnp.ones((cout,), jnp.float32),
        b1=jnp.zeros((cout,), jnp.float32),
        # CBL(out, out): conv kxk (cout->cout), conv 1x1 (cout->cout), BN(cout)
        w2a=_kaiming(ks[2], k, k, cout, cout),
        w2b=_kaiming(ks[3], 1, 1, cout, cout),
        g2=jnp.ones((cout,), jnp.float32),
        b2=jnp.zeros((cout,), jnp.float32),
        # conv_redisual: 1x1 (cin->cout), bias=True
        wr=_kaiming(ks[4], 1, 1, cin, cout),
        br=jax.random.normal(ks[5], (cout,), jnp.float32) * 0.05,
    )


# ---------------- pure-JAX reference for correctness check -------------------


def _conv_nhwc(x, w, stride, padding, bias=None):
    y = lax.conv_general_dilated(
        x, w, (stride, stride), [(padding, padding), (padding, padding)],
        dimension_numbers=('NHWC', 'HWIO', 'NHWC'))
    return y if bias is None else y + bias


def _bn_lrelu_ref(x, gamma, beta, eps=1e-5, neg_slope=0.1):
    mean = jnp.mean(x, axis=(0, 1, 2), keepdims=True)
    var = jnp.mean((x - mean) ** 2, axis=(0, 1, 2), keepdims=True)
    y = (x - mean) * gamma * lax.rsqrt(var + eps) + beta
    return jnp.where(y > 0, y, neg_slope * y)


def resunit_forward_ref(x_nchw, params, *, k=3, stride=1, padding=1):
    x = jnp.transpose(x_nchw, (0, 2, 3, 1))
    r = _conv_nhwc(x, params['wr'], 1, 0, bias=params['br'])
    h = _conv_nhwc(x, params['w1a'], stride, padding)
    h = _bn_lrelu_ref(_conv_nhwc(h, params['w1b'], 1, 0), params['g1'], params['b1'])
    h = _conv_nhwc(h, params['w2a'], stride, padding)
    h = _bn_lrelu_ref(_conv_nhwc(h, params['w2b'], 1, 0), params['g2'], params['b2'])
    return jnp.transpose(h + r, (0, 3, 1, 2))


# ---------------- main --------------------------------------------------------


if __name__ == "__main__":
    # ResUnit(in_channels=16, out_channels=32, kernal_size=3, stride=1,
    #         padding=1, factor=0.25)  -> actual channel widths 4 -> 8
    in_channels, out_channels, k, s, pd, factor = 16, 32, 3, 1, 1, 0.25
    cin = round(in_channels * factor)      # 4
    cout = round(out_channels * factor)    # 8

    key = jax.random.PRNGKey(0)
    kx, kp = jax.random.split(key)
    x = jax.random.normal(kx, (2, cin, 16, 16), jnp.float32)   # NCHW, like PyTorch
    params = init_resunit_params(kp, in_channels, out_channels, k, factor)

    fwd = jax.jit(functools.partial(resunit_forward_pallas,
                                    k=k, stride=s, padding=pd))
    out = jax.block_until_ready(fwd(x, params))

    ref = resunit_forward_ref(x, params, k=k, stride=s, padding=pd)
    assert out.shape == (2, cout, 16, 16), out.shape
    max_err = float(jnp.max(jnp.abs(out - ref)))
    assert jnp.allclose(out, ref, atol=1e-3, rtol=1e-3), max_err
    print("KERNEL_OK")
</pallas_src>

<mosaic_0001>
module attributes {stable_mosaic.version = 11 : i64} {
  func.func @_resunit_kernel(%arg0: memref<36x64xf32, #tpu.memory_space<vmem>>, %arg1: memref<34x1xf32, #tpu.memory_space<vmem>>, %arg2: memref<3x64x256xf32, #tpu.memory_space<vmem>>, %arg3: memref<3x128x128xf32, #tpu.memory_space<vmem>>, %arg4: memref<128x128xf32, #tpu.memory_space<vmem>>, %arg5: memref<1x128xf32, #tpu.memory_space<vmem>>, %arg6: memref<1x128xf32, #tpu.memory_space<vmem>>, %arg7: memref<1x128xf32, #tpu.memory_space<vmem>>, %arg8: memref<1x128xf32, #tpu.memory_space<vmem>>, %arg9: memref<1x128xf32, #tpu.memory_space<vmem>>, %arg10: memref<34x128xf32, #tpu.memory_space<vmem>>, %arg11: memref<36x128xf32, #tpu.memory_space<vmem>>) attributes {dimension_semantics = [], scalar_prefetch = 0 : i64, scratch_operands = 1 : i64, tpu.core_type = #tpu.core_type<tc>} {
    %c0 = arith.constant 0 : index
    %c0_0 = arith.constant 0 : index
    %0 = vector.load %arg1[%c0, %c0_0] : memref<34x1xf32, #tpu.memory_space<vmem>>, vector<34x1xf32>
    %c0_1 = arith.constant 0 : index
    %c0_2 = arith.constant 0 : index
    %1 = vector.load %arg0[%c0_1, %c0_2] : memref<36x64xf32, #tpu.memory_space<vmem>>, vector<34x64xf32>
    %c0_3 = arith.constant 0 : index
    %c0_4 = arith.constant 0 : index
    %c0_5 = arith.constant 0 : index
    %2 = vector.load %arg2[%c0_3, %c0_4, %c0_5] : memref<3x64x256xf32, #tpu.memory_space<vmem>>, vector<1x64x256xf32>
    %3 = vector.shape_cast %2 : vector<1x64x256xf32> to vector<64x256xf32>
    %cst = arith.constant dense<0.000000e+00> : vector<34x256xf32>
    %4 = tpu.matmul %1, %3, %cst {dimension_numbers = #tpu.dot_dimension_numbers<[1], [0], [0], [1], [0, 0, 1, 1], [], []>} : vector<34x64xf32>, vector<64x256xf32>, vector<34x256xf32> -> vector<34x256xf32>
    %c1 = arith.constant 1 : index
    %c0_6 = arith.constant 0 : index
    %5 = vector.load %arg0[%c1, %c0_6] : memref<36x64xf32, #tpu.memory_space<vmem>>, vector<34x64xf32>
    %c1_7 = arith.constant 1 : index
    %c0_8 = arith.constant 0 : index
    %c0_9 = arith.constant 0 : index
    %6 = vector.load %arg2[%c1_7, %c0_8, %c0_9] : memref<3x64x256xf32, #tpu.memory_space<vmem>>, vector<1x64x256xf32>
    %7 = vector.shape_cast %6 : vector<1x64x256xf32> to vector<64x256xf32>
    %cst_10 = arith.constant dense<0.000000e+00> : vector<34x256xf32>
    %8 = tpu.matmul %5, %7, %cst_10 {dimension_numbers = #tpu.dot_dimension_numbers<[1], [0], [0], [1], [0, 0, 1, 1], [], []>} : vector<34x64xf32>, vector<64x256xf32>, vector<34x256xf32> -> vector<34x256xf32>
    %9 = arith.addf %4, %8 : vector<34x256xf32>
    %c2 = arith.constant 2 : index
    %c0_11 = arith.constant 0 : index
    %10 = vector.load %arg0[%c2, %c0_11] : memref<36x64xf32, #tpu.memory_space<vmem>>, vector<34x64xf32>
    %c2_12 = arith.constant 2 : index
    %c0_13 = arith.constant 0 : index
    %c0_14 = arith.constant 0 : index
    %11 = vector.load %arg2[%c2_12, %c0_13, %c0_14] : memref<3x64x256xf32, #tpu.memory_space<vmem>>, vector<1x64x256xf32>
    %12 = vector.shape_cast %11 : vector<1x64x256xf32> to vector<64x256xf32>
    %cst_15 = arith.constant dense<0.000000e+00> : vector<34x256xf32>
    %13 = tpu.matmul %10, %12, %cst_15 {dimension_numbers = #tpu.dot_dimension_numbers<[1], [0], [0], [1], [0, 0, 1, 1], [], []>} : vector<34x64xf32>, vector<64x256xf32>, vector<34x256xf32> -> vector<34x256xf32>
    %14 = arith.addf %9, %13 : vector<34x256xf32>
    %15 = vector.extract_strided_slice %14 {offsets = [0, 0], sizes = [34, 128], strides = [1, 1]} : vector<34x256xf32> to vector<34x128xf32>
    %16 = vector.extract_strided_slice %14 {offsets = [0, 128], sizes = [34, 128], strides = [1, 1]} : vector<34x256xf32> to vector<34x128xf32>
    %c0_16 = arith.constant 0 : index
    %c0_17 = arith.constant 0 : index
    %17 = vector.load %arg9[%c0_16, %c0_17] : memref<1x128xf32, #tpu.memory_space<vmem>>, vector<1x128xf32>
    %18 = vector.broadcast %17 : vector<1x128xf32> to vector<34x128xf32>
    %19 = arith.addf %16, %18 : vector<34x128xf32>
    %c0_18 = arith.constant 0 : index
    %c0_19 = arith.constant 0 : index
    %20 = vector.load %arg5[%c0_18, %c0_19] : memref<1x128xf32, #tpu.memory_space<vmem>>, vector<1x128xf32>
    %c0_20 = arith.constant 0 : index
    %c0_21 = arith.constant 0 : index
    %21 = vector.load %arg6[%c0_20, %c0_21] : memref<1x128xf32, #tpu.memory_space<vmem>>, vector<1x128xf32>
    %22 = vector.broadcast %0 : vector<34x1xf32> to vector<34x128xf32>
    %23 = arith.mulf %15, %22 : vector<34x128xf32>
    %cst_22 = arith.constant dense<0.000000e+00> : vector<128xf32>
    %24 = vector.multi_reduction <add>, %23, %cst_22 [0] : vector<34x128xf32> to vector<128xf32>
    %25 = vector.shape_cast %24 : vector<128xf32> to vector<1x128xf32>
    %26 = arith.mulf %15, %15 : vector<34x128xf32>
    %27 = vector.broadcast %0 : vector<34x1xf32> to vector<34x128xf32>
    %28 = arith.mulf %26, %27 : vector<34x128xf32>
    %cst_23 = arith.constant dense<0.000000e+00> : vector<128xf32>
    %29 = vector.multi_reduction <add>, %28, %cst_23 [0] : vector<34x128xf32> to vector<128xf32>
    %30 = vector.shape_cast %29 : vector<128xf32> to vector<1x128xf32>
    %c0_24 = arith.constant 0 : index
    %c0_25 = arith.constant 0 : index
    %31 = vector.load %arg4[%c0_24, %c0_25] : memref<128x128xf32, #tpu.memory_space<vmem>>, vector<128x128xf32>
    %cst_26 = arith.constant dense<0.000000e+00> : vector<1x128xf32>
    %32 = tpu.matmul %25, %31, %cst_26 {dimension_numbers = #tpu.dot_dimension_numbers<[1], [0], [0], [1], [0, 0, 1, 1], [], []>} : vector<1x128xf32>, vector<128x128xf32>, vector<1x128xf32> -> vector<1x128xf32>
    %cst_27 = arith.constant 0.001953125 : f32
    %33 = vector.broadcast %cst_27 : f32 to vector<1x128xf32>
    %34 = arith.mulf %32, %33 : vector<1x128xf32>
    %c0_28 = arith.constant 0 : index
    %c0_29 = arith.constant 0 : index
    %35 = vector.load %arg4[%c0_28, %c0_29] : memref<128x128xf32, #tpu.memory_space<vmem>>, vector<128x128xf32>
    %cst_30 = arith.constant dense<0.000000e+00> : vector<1x128xf32>
    %36 = tpu.matmul %30, %35, %cst_30 {dimension_numbers = #tpu.dot_dimension_numbers<[1], [0], [0], [1], [0, 0, 1, 1], [], []>} : vector<1x128xf32>, vector<128x128xf32>, vector<1x128xf32> -> vector<1x128xf32>
    %cst_31 = arith.constant 0.001953125 : f32
    %37 = vector.broadcast %cst_31 : f32 to vector<1x128xf32>
    %38 = arith.mulf %36, %37 : vector<1x128xf32>
    %39 = arith.mulf %34, %34 : vector<1x128xf32>
    %40 = arith.subf %38, %39 : vector<1x128xf32>
    %cst_32 = arith.constant 0.000000e+00 : f32
    %41 = vector.broadcast %cst_32 : f32 to vector<1x128xf32>
    %42 = arith.maximumf %40, %41 : vector<1x128xf32>
    %43 = vector.broadcast %34 : vector<1x128xf32> to vector<34x128xf32>
    %44 = arith.subf %15, %43 : vector<34x128xf32>
    %cst_33 = arith.constant 9.99999974E-6 : f32
    %45 = vector.broadcast %cst_33 : f32 to vector<1x128xf32>
    %46 = arith.addf %42, %45 : vector<1x128xf32>
    %47 = math.rsqrt %46 : vector<1x128xf32>
    %48 = arith.mulf %20, %47 : vector<1x128xf32>
    %49 = vector.broadcast %48 : vector<1x128xf32> to vector<34x128xf32>
    %50 = arith.mulf %44, %49 : vector<34x128xf32>
    %51 = vector.broadcast %21 : vector<1x128xf32> to vector<34x128xf32>
    %52 = arith.addf %50, %51 : vector<34x128xf32>
    %cst_34 = arith.constant 1.000000e-01 : f32
    %53 = vector.broadcast %cst_34 : f32 to vector<34x128xf32>
    %54 = arith.mulf %53, %52 : vector<34x128xf32>
    %55 = arith.maximumf %52, %54 : vector<34x128xf32>
    %cst_35 = arith.constant 0.000000e+00 : f32
    %56 = vector.broadcast %cst_35 : f32 to vector<1x128xf32>
    %c0_36 = arith.constant 0 : index
    %c0_37 = arith.constant 0 : index
    %57 = vector.load %arg11[%c0_36, %c0_37] : memref<36x128xf32, #tpu.memory_space<vmem>>, vector<1x128xf32>
    tpu.vector_store %arg11[%c0_36, %c0_37], %56 {strides = array<i32>} : memref<36x128xf32, #tpu.memory_space<vmem>>, vector<1x128xf32>,
    %cst_38 = arith.constant 0.000000e+00 : f32
    %58 = vector.broadcast %cst_38 : f32 to vector<1x128xf32>
    %c35 = arith.constant 35 : index
    %c0_39 = arith.constant 0 : index
    %59 = vector.load %arg11[%c35, %c0_39] : memref<36x128xf32, #tpu.memory_space<vmem>>, vector<1x128xf32>
    tpu.vector_store %arg11[%c35, %c0_39], %58 {strides = array<i32>} : memref<36x128xf32, #tpu.memory_space<vmem>>, vector<1x128xf32>,
    %60 = vector.broadcast %0 : vector<34x1xf32> to vector<34x128xf32>
    %61 = arith.mulf %55, %60 : vector<34x128xf32>
    %c1_40 = arith.constant 1 : index
    %c0_41 = arith.constant 0 : index
    %62 = vector.load %arg11[%c1_40, %c0_41] : memref<36x128xf32, #tpu.memory_space<vmem>>, vector<34x128xf32>
    tpu.vector_store %arg11[%c1_40, %c0_41], %61 {strides = array<i32>} : memref<36x128xf32, #tpu.memory_space<vmem>>, vector<34x128xf32>,
    %c0_42 = arith.constant 0 : index
    %c0_43 = arith.constant 0 : index
    %63 = vector.load %arg11[%c0_42, %c0_43] : memref<36x128xf32, #tpu.memory_space<vmem>>, vector<34x128xf32>
    %c0_44 = arith.constant 0 : index
    %c0_45 = arith.constant 0 : index
    %c0_46 = arith.constant 0 : index
    %64 = vector.load %arg3[%c0_44, %c0_45, %c0_46] : memref<3x128x128xf32, #tpu.memory_space<vmem>>, vector<1x128x128xf32>
    %65 = vector.shape_cast %64 : vector<1x128x128xf32> to vector<128x128xf32>
    %cst_47 = arith.constant dense<0.000000e+00> : vector<34x128xf32>
    %66 = tpu.matmul %63, %65, %cst_47 {dimension_numbers = #tpu.dot_dimension_numbers<[1], [0], [0], [1], [0, 0, 1, 1], [], []>} : vector<34x128xf32>, vector<128x128xf32>, vector<34x128xf32> -> vector<34x128xf32>
    %c1_48 = arith.constant 1 : index
    %c0_49 = arith.constant 0 : index
    %67 = vector.load %arg11[%c1_48, %c0_49] : memref<36x128xf32, #tpu.memory_space<vmem>>, vector<34x128xf32>
    %c1_50 = arith.constant 1 : index
    %c0_51 = arith.constant 0 : index
    %c0_52 = arith.constant 0 : index
    %68 = vector.load %arg3[%c1_50, %c0_51, %c0_52] : memref<3x128x128xf32, #tpu.memory_space<vmem>>, vector<1x128x128xf32>
    %69 = vector.shape_cast %68 : vector<1x128x128xf32> to vector<128x128xf32>
    %cst_53 = arith.constant dense<0.000000e+00> : vector<34x128xf32>
    %70 = tpu.matmul %67, %69, %cst_53 {dimension_numbers = #tpu.dot_dimension_numbers<[1], [0], [0], [1], [0, 0, 1, 1], [], []>} : vector<34x128xf32>, vector<128x128xf32>, vector<34x128xf32> -> vector<34x128xf32>
    %71 = arith.addf %66, %70 : vector<34x128xf32>
    %c2_54 = arith.constant 2 : index
    %c0_55 = arith.constant 0 : index
    %72 = vector.load %arg11[%c2_54, %c0_55] : memref<36x128xf32, #tpu.memory_space<vmem>>, vector<34x128xf32>
    %c2_56 = arith.constant 2 : index
    %c0_57 = arith.constant 0 : index
    %c0_58 = arith.constant 0 : index
    %73 = vector.load %arg3[%c2_56, %c0_57, %c0_58] : memref<3x128x128xf32, #tpu.memory_space<vmem>>, vector<1x128x128xf32>
    %74 = vector.shape_cast %73 : vector<1x128x128xf32> to vector<128x128xf32>
    %cst_59 = arith.constant dense<0.000000e+00> : vector<34x128xf32>
    %75 = tpu.matmul %72, %74, %cst_59 {dimension_numbers = #tpu.dot_dimension_numbers<[1], [0], [0], [1], [0, 0, 1, 1], [], []>} : vector<34x128xf32>, vector<128x128xf32>, vector<34x128xf32> -> vector<34x128xf32>
    %76 = arith.addf %71, %75 : vector<34x128xf32>
    %c0_60 = arith.constant 0 : index
    %c0_61 = arith.constant 0 : index
    %77 = vector.load %arg7[%c0_60, %c0_61] : memref<1x128xf32, #tpu.memory_space<vmem>>, vector<1x128xf32>
    %c0_62 = arith.constant 0 : index
    %c0_63 = arith.constant 0 : index
    %78 = vector.load %arg8[%c0_62, %c0_63] : memref<1x128xf32, #tpu.memory_space<vmem>>, vector<1x128xf32>
    %79 = vector.broadcast %0 : vector<34x1xf32> to vector<34x128xf32>
    %80 = arith.mulf %76, %79 : vector<34x128xf32>
    %cst_64 = arith.constant dense<0.000000e+00> : vector<128xf32>
    %81 = vector.multi_reduction <add>, %80, %cst_64 [0] : vector<34x128xf32> to vector<128xf32>
    %82 = vector.shape_cast %81 : vector<128xf32> to vector<1x128xf32>
    %83 = arith.mulf %76, %76 : vector<34x128xf32>
    %84 = vector.broadcast %0 : vector<34x1xf32> to vector<34x128xf32>
    %85 = arith.mulf %83, %84 : vector<34x128xf32>
    %cst_65 = arith.constant dense<0.000000e+00> : vector<128xf32>
    %86 = vector.multi_reduction <add>, %85, %cst_65 [0] : vector<34x128xf32> to vector<128xf32>
    %87 = vector.shape_cast %86 : vector<128xf32> to vector<1x128xf32>
    %c0_66 = arith.constant 0 : index
    %c0_67 = arith.constant 0 : index
    %88 = vector.load %arg4[%c0_66, %c0_67] : memref<128x128xf32, #tpu.memory_space<vmem>>, vector<128x128xf32>
    %cst_68 = arith.constant dense<0.000000e+00> : vector<1x128xf32>
    %89 = tpu.matmul %82, %88, %cst_68 {dimension_numbers = #tpu.dot_dimension_numbers<[1], [0], [0], [1], [0, 0, 1, 1], [], []>} : vector<1x128xf32>, vector<128x128xf32>, vector<1x128xf32> -> vector<1x128xf32>
    %cst_69 = arith.constant 0.001953125 : f32
    %90 = vector.broadcast %cst_69 : f32 to vector<1x128xf32>
    %91 = arith.mulf %89, %90 : vector<1x128xf32>
    %c0_70 = arith.constant 0 : index
    %c0_71 = arith.constant 0 : index
    %92 = vector.load %arg4[%c0_70, %c0_71] : memref<128x128xf32, #tpu.memory_space<vmem>>, vector<128x128xf32>
    %cst_72 = arith.constant dense<0.000000e+00> : vector<1x128xf32>
    %93 = tpu.matmul %87, %92, %cst_72 {dimension_numbers = #tpu.dot_dimension_numbers<[1], [0], [0], [1], [0, 0, 1, 1], [], []>} : vector<1x128xf32>, vector<128x128xf32>, vector<1x128xf32> -> vector<1x128xf32>
    %cst_73 = arith.constant 0.001953125 : f32
    %94 = vector.broadcast %cst_73 : f32 to vector<1x128xf32>
    %95 = arith.mulf %93, %94 : vector<1x128xf32>
    %96 = arith.mulf %91, %91 : vector<1x128xf32>
    %97 = arith.subf %95, %96 : vector<1x128xf32>
    %cst_74 = arith.constant 0.000000e+00 : f32
    %98 = vector.broadcast %cst_74 : f32 to vector<1x128xf32>
    %99 = arith.maximumf %97, %98 : vector<1x128xf32>
    %100 = vector.broadcast %91 : vector<1x128xf32> to vector<34x128xf32>
    %101 = arith.subf %76, %100 : vector<34x128xf32>
    %cst_75 = arith.constant 9.99999974E-6 : f32
    %102 = vector.broadcast %cst_75 : f32 to vector<1x128xf32>
    %103 = arith.addf %99, %102 : vector<1x128xf32>
    %104 = math.rsqrt %103 : vector<1x128xf32>
    %105 = arith.mulf %77, %104 : vector<1x128xf32>
    %106 = vector.broadcast %105 : vector<1x128xf32> to vector<34x128xf32>
    %107 = arith.mulf %101, %106 : vector<34x128xf32>
    %108 = vector.broadcast %78 : vector<1x128xf32> to vector<34x128xf32>
    %109 = arith.addf %107, %108 : vector<34x128xf32>
    %cst_76 = arith.constant 1.000000e-01 : f32
    %110 = vector.broadcast %cst_76 : f32 to vector<34x128xf32>
    %111 = arith.mulf %110, %109 : vector<34x128xf32>
    %112 = arith.maximumf %109, %111 : vector<34x128xf32>
    %113 = arith.addf %112, %19 : vector<34x128xf32>
    %c0_77 = arith.constant 0 : index
    %c0_78 = arith.constant 0 : index
    %114 = vector.load %arg10[%c0_77, %c0_78] : memref<34x128xf32, #tpu.memory_space<vmem>>, vector<34x128xf32>
    tpu.vector_store %arg10[%c0_77, %c0_78], %113 {strides = array<i32>} : memref<34x128xf32, #tpu.memory_space<vmem>>, vector<34x128xf32>,
    return
  }
}

</mosaic_0001>

<llo_original>
// kernel: squeeze.3
$region0: #{squeeze.3}
  %s0 = inlined_call_operand.vmem [shape: f32[1,16,4,16,8], index: 0, kind: input, shape index: {}]
  %s1 = inlined_call_operand.vmem [shape: f32[64,128], index: 1, kind: output, shape index: {}]
  %s2 = smov 3
  %v3 = vld [vmem:[%s0] ss:$16 sm:%s2]
  %s4 = smov 12
  %v5 = vld [vmem:[%s0] ss:$16 sm:%s4]
  %vm6 = vcmask 1043458
  %v7 = vsel %vm6, %v5, %v3
  %s8 = smov 48
  %v9 = vld [vmem:[%s0] ss:$16 sm:%s8]
  %vm10 = vcmask 1045508
  %v11 = vsel %vm10, %v9, %v7
  %s12 = smov 192
  %v13 = vld [vmem:[%s0] ss:$16 sm:%s12]
  %vm14 = vcmask 1047558
  %v15 = vsel %vm14, %v13, %v11
  %vm16 = vcmask 64512
  %17 = vst.msk [vmem:[%s1] sm:$0xff] %vm16, %v15
  %s18 = scalar_lea.vmem %s0, 128
  %s19 = smov 3
  %v20 = vld [vmem:[%s18] ss:$16 sm:%s19]
  %s21 = scalar_lea.vmem %s0, 128
  %s22 = smov 12
  %v23 = vld [vmem:[%s21] ss:$16 sm:%s22]
  %vm24 = vcmask 1043458
  %v25 = vsel %vm24, %v23, %v20
  %s26 = scalar_lea.vmem %s0, 128
  %s27 = smov 48
  %v28 = vld [vmem:[%s26] ss:$16 sm:%s27]
  %vm29 = vcmask 1045508
  %v30 = vsel %vm29, %v28, %v25
  %s31 = scalar_lea.vmem %s0, 128
  %s32 = smov 192
  %v33 = vld [vmem:[%s31] ss:$16 sm:%s32]
  %vm34 = vcmask 1047558
  %v35 = vsel %vm34, %v33, %v30
  %vm36 = vcmask 64512
  %s37 = scalar_lea.vmem %s1, 8
  %38 = vst.msk [vmem:[%s37] sm:$0xff] %vm36, %v35
  %s39 = scalar_lea.vmem %s0, 256
  %s40 = smov 3
  %v41 = vld [vmem:[%s39] ss:$16 sm:%s40]
  %s42 = scalar_lea.vmem %s0, 256
  %s43 = smov 12
  %v44 = vld [vmem:[%s42] ss:$16 sm:%s43]
  %vm45 = vcmask 1043458
  %v46 = vsel %vm45, %v44, %v41
  %s47 = scalar_lea.vmem %s0, 256
  %s48 = smov 48
  %v49 = vld [vmem:[%s47] ss:$16 sm:%s48]
  %vm50 = vcmask 1045508
  %v51 = vsel %vm50, %v49, %v46
  %s52 = scalar_lea.vmem %s0, 256
  %s53 = smov 192
  %v54 = vld [vmem:[%s52] ss:$16 sm:%s53]
  %vm55 = vcmask 1047558
  %v56 = vsel %vm55, %v54, %v51
  %vm57 = vcmask 64512
  %s58 = scalar_lea.vmem %s1, 16
  %59 = vst.msk [vmem:[%s58] sm:$0xff] %vm57, %v56
  %s60 = scalar_lea.vmem %s0, 384
  %s61 = smov 3
  %v62 = vld [vmem:[%s60] ss:$16 sm:%s61]
  %s63 = scalar_lea.vmem %s0, 384
  %s64 = smov 12
  %v65 = vld [vmem:[%s63] ss:$16 sm:%s64]
  %vm66 = vcmask 1043458
  %v67 = vsel %vm66, %v65, %v62
  %s68 = scalar_lea.vmem %s0, 384
  %s69 = smov 48
  %v70 = vld [vmem:[%s68] ss:$16 sm:%s69]
  %vm71 = vcmask 1045508
  %v72 = vsel %vm71, %v70, %v67
  %s73 = scalar_lea.vmem %s0, 384
  %s74 = smov 192
  %v75 = vld [vmem:[%s73] ss:$16 sm:%s74]
  %vm76 = vcmask 1047558
  %v77 = vsel %vm76, %v75, %v72
  %vm78 = vcmask 64512
  %s79 = scalar_lea.vmem %s1, 24
  %80 = vst.msk [vmem:[%s79] sm:$0xff] %vm78, %v77
  %s81 = scalar_lea.vmem %s0, 512
  %s82 = smov 3
  %v83 = vld [vmem:[%s81] ss:$16 sm:%s82]
  %s84 = scalar_lea.vmem %s0, 512
  %s85 = smov 12
  %v86 = vld [vmem:[%s84] ss:$16 sm:%s85]
  %vm87 = vcmask 1043458
  %v88 = vsel %vm87, %v86, %v83
  %s89 = scalar_lea.vmem %s0, 512
  %s90 = smov 48
  %v91 = vld [vmem:[%s89] ss:$16 sm:%s90]
  %vm92 = vcmask 1045508
  %v93 = vsel %vm92, %v91, %v88
  %s94 = scalar_lea.vmem %s0, 512
  %s95 = smov 192
  %v96 = vld [vmem:[%s94] ss:$16 sm:%s95]
  %vm97 = vcmask 1047558
  %v98 = vsel %vm97, %v96, %v93
  %vm99 = vcmask 64512
  %s100 = scalar_lea.vmem %s1, 32
  %101 = vst.msk [vmem:[%s100] sm:$0xff] %vm99, %v98
  %s102 = scalar_lea.vmem %s0, 640
  %s103 = smov 3
  %v104 = vld [vmem:[%s102] ss:$16 sm:%s103]
  %s105 = scalar_lea.vmem %s0, 640
  %s106 = smov 12
  %v107 = vld [vmem:[%s105] ss:$16 sm:%s106]
  %vm108 = vcmask 1043458
  %v109 = vsel %vm108, %v107, %v104
  %s110 = scalar_lea.vmem %s0, 640
  %s111 = smov 48
  %v112 = vld [vmem:[%s110] ss:$16 sm:%s111]
  %vm113 = vcmask 1045508
  %v114 = vsel %vm113, %v112, %v109
  %s115 = scalar_lea.vmem %s0, 640
  %s116 = smov 192
  %v117 = vld [vmem:[%s115] ss:$16 sm:%s116]
  %vm118 = vcmask 1047558
  %v119 = vsel %vm118, %v117, %v114
  %vm120 = vcmask 64512
  %s121 = scalar_lea.vmem %s1, 40
  %122 = vst.msk [vmem:[%s121] sm:$0xff] %vm120, %v119
  %s123 = scalar_lea.vmem %s0, 768
  %s124 = smov 3
  %v125 = vld [vmem:[%s123] ss:$16 sm:%s124]
  %s126 = scalar_lea.vmem %s0, 768
  %s127 = smov 12
  %v128 = vld [vmem:[%s126] ss:$16 sm:%s127]
  %vm129 = vcmask 1043458
  %v130 = vsel %vm129, %v128, %v125
  %s131 = scalar_lea.vmem %s0, 768
  %s132 = smov 48
  %v133 = vld [vmem:[%s131] ss:$16 sm:%s132]
  %vm134 = vcmask 1045508
  %v135 = vsel %vm134, %v133, %v130
  %s136 = scalar_lea.vmem %s0, 768
  %s137 = smov 192
  %v138 = vld [vmem:[%s136] ss:$16 sm:%s137]
  %vm139 = vcmask 1047558
  %v140 = vsel %vm139, %v138, %v135
  %vm141 = vcmask 64512
  %s142 = scalar_lea.vmem %s1, 48
  %143 = vst.msk [vmem:[%s142] sm:$0xff] %vm141, %v140
  %s144 = scalar_lea.vmem %s0, 896
  %s145 = smov 3
  %v146 = vld [vmem:[%s144] ss:$16 sm:%s145]
  %s147 = scalar_lea.vmem %s0, 896
  %s148 = smov 12
  %v149 = vld [vmem:[%s147] ss:$16 sm:%s148]
  %vm150 = vcmask 1043458
  %v151 = vsel %vm150, %v149, %v146
  %s152 = scalar_lea.vmem %s0, 896
  %s153 = smov 48
  %v154 = vld [vmem:[%s152] ss:$16 sm:%s153]
  %vm155 = vcmask 1045508
  %v156 = vsel %vm155, %v154, %v151
  %s157 = scalar_lea.vmem %s0, 896
  %s158 = smov 192
  %v159 = vld [vmem:[%s157] ss:$16 sm:%s158]
  %vm160 = vcmask 1047558
  %v161 = vsel %vm160, %v159, %v156
  %vm162 = vcmask 64512
  %s163 = scalar_lea.vmem %s1, 56
  %164 = vst.msk [vmem:[%s163] sm:$0xff] %vm162, %v161
  %s165 = scalar_lea.vmem %s0, 15
  %s166 = smov 3
  %v167 = vld [vmem:[%s165] ss:$16 sm:%s166]
  %s168 = scalar_lea.vmem %s0, 15
  %s169 = smov 12
  %v170 = vld [vmem:[%s168] ss:$16 sm:%s169]
  %vm171 = vcmask 1043458
  %v172 = vsel %vm171, %v170, %v167
  %s173 = scalar_lea.vmem %s0, 15
  %s174 = smov 48
  %v175 = vld [vmem:[%s173] ss:$16 sm:%s174]
  %vm176 = vcmask 1045508
  %v177 = vsel %vm176, %v175, %v172
  %s178 = scalar_lea.vmem %s0, 15
  %s179 = smov 192
  %v180 = vld [vmem:[%s178] ss:$16 sm:%s179]
  %vm181 = vcmask 1047558
  %v182 = vsel %vm181, %v180, %v177
  %183 = vrot.lane.b32.xlu0 %v182, 120
  %v184 = vpop.permute.xlu0 %183
  %vm185 = vcmask 1048512
  %186 = vst.msk [vmem:[%s1] sm:$0xff] %vm185, %v184
  %s187 = scalar_lea.vmem %s0, 527
  %s188 = smov 3
  %v189 = vld [vmem:[%s187] ss:$16 sm:%s188]
  %s190 = scalar_lea.vmem %s0, 527
  %s191 = smov 12
  %v192 = vld [vmem:[%s190] ss:$16 sm:%s191]
  %vm193 = vcmask 1043458
  %v194 = vsel %vm193, %v192, %v189
  %s195 = scalar_lea.vmem %s0, 527
  %s196 = smov 48
  %v197 = vld [vmem:[%s195] ss:$16 sm:%s196]
  %vm198 = vcmask 1045508
  %v199 = vsel %vm198, %v197, %v194
  %s200 = scalar_lea.vmem %s0, 527
  %s201 = smov 192
  %v202 = vld [vmem:[%s200] ss:$16 sm:%s201]
  %vm203 = vcmask 1047558
  %v204 = vsel %vm203, %v202, %v199
  %205 = vrot.lane.b32.xlu0 %v204, 120
  %v206 = vpop.permute.xlu0 %205
  %vm207 = vcmask 1048512
  %s208 = scalar_lea.vmem %s1, 32
  %209 = vst.msk [vmem:[%s208] sm:$0xff] %vm207, %v206
  %s210 = scalar_lea.vmem %s0, 143
  %s211 = smov 3
  %v212 = vld [vmem:[%s210] ss:$16 sm:%s211]
  %s213 = scalar_lea.vmem %s0, 143
  %s214 = smov 12
  %v215 = vld [vmem:[%s213] ss:$16 sm:%s214]
  %vm216 = vcmask 1043458
  %v217 = vsel %vm216, %v215, %v212
  %s218 = scalar_lea.vmem %s0, 143
  %s219 = smov 48
  %v220 = vld [vmem:[%s218] ss:$16 sm:%s219]
  %vm221 = vcmask 1045508
  %v222 = vsel %vm221, %v220, %v217
  %s223 = scalar_lea.vmem %s0, 143
  %s224 = smov 192
  %v225 = vld [vmem:[%s223] ss:$16 sm:%s224]
  %vm226 = vcmask 1047558
  %v227 = vsel %vm226, %v225, %v222
  %228 = vrot.lane.b32.xlu0 %v227, 120
  %v229 = vpop.permute.xlu0 %228
  %vm230 = vcmask 1048512
  %s231 = scalar_lea.vmem %s1, 8
  %232 = vst.msk [vmem:[%s231] sm:$0xff] %vm230, %v229
  %s233 = scalar_lea.vmem %s0, 655
  %s234 = smov 3
  %v235 = vld [vmem:[%s233] ss:$16 sm:%s234]
  %s236 = scalar_lea.vmem %s0, 655
  %s237 = smov 12
  %v238 = vld [vmem:[%s236] ss:$16 sm:%s237]
  %vm239 = vcmask 1043458
  %v240 = vsel %vm239, %v238, %v235
  %s241 = scalar_lea.vmem %s0, 655
  %s242 = smov 48
  %v243 = vld [vmem:[%s241] ss:$16 sm:%s242]
  %vm244 = vcmask 1045508
  %v245 = vsel %vm244, %v243, %v240
  %s246 = scalar_lea.vmem %s0, 655
  %s247 = smov 192
  %v248 = vld [vmem:[%s246] ss:$16 sm:%s247]
  %vm249 = vcmask 1047558
  %v250 = vsel %vm249, %v248, %v245
  %251 = vrot.lane.b32.xlu0 %v250, 120
  %v252 = vpop.permute.xlu0 %251
  %vm253 = vcmask 1048512
  %s254 = scalar_lea.vmem %s1, 40
  %255 = vst.msk [vmem:[%s254] sm:$0xff] %vm253, %v252
  %s256 = scalar_lea.vmem %s0, 271
  %s257 = smov 3
  %v258 = vld [vmem:[%s256] ss:$16 sm:%s257]
  %s259 = scalar_lea.vmem %s0, 271
  %s260 = smov 12
  %v261 = vld [vmem:[%s259] ss:$16 sm:%s260]
  %vm262 = vcmask 1043458
  %v263 = vsel %vm262, %v261, %v258
  %s264 = scalar_lea.vmem %s0, 271
  %s265 = smov 48
  %v266 = vld [vmem:[%s264] ss:$16 sm:%s265]
  %vm267 = vcmask 1045508
  %v268 = vsel %vm267, %v266, %v263
  %s269 = scalar_lea.vmem %s0, 271
  %s270 = smov 192
  %v271 = vld [vmem:[%s269] ss:$16 sm:%s270]
  %vm272 = vcmask 1047558
  %v273 = vsel %vm272, %v271, %v268
  %274 = vrot.lane.b32.xlu0 %v273, 120
  %v275 = vpop.permute.xlu0 %274
  %vm276 = vcmask 1048512
  %s277 = scalar_lea.vmem %s1, 16
  %278 = vst.msk [vmem:[%s277] sm:$0xff] %vm276, %v275
  %s279 = scalar_lea.vmem %s0, 783
  %s280 = smov 3
  %v281 = vld [vmem:[%s279] ss:$16 sm:%s280]
  %s282 = scalar_lea.vmem %s0, 783
  %s283 = smov 12
  %v284 = vld [vmem:[%s282] ss:$16 sm:%s283]
  %vm285 = vcmask 1043458
  %v286 = vsel %vm285, %v284, %v281
  %s287 = scalar_lea.vmem %s0, 783
  %s288 = smov 48
  %v289 = vld [vmem:[%s287] ss:$16 sm:%s288]
  %vm290 = vcmask 1045508
  %v291 = vsel %vm290, %v289, %v286
  %s292 = scalar_lea.vmem %s0, 783
  %s293 = smov 192
  %v294 = vld [vmem:[%s292] ss:$16 sm:%s293]
  %vm295 = vcmask 1047558
  %v296 = vsel %vm295, %v294, %v291
  %297 = vrot.lane.b32.xlu0 %v296, 120
  %v298 = vpop.permute.xlu0 %297
  %vm299 = vcmask 1048512
  %s300 = scalar_lea.vmem %s1, 48
  %301 = vst.msk [vmem:[%s300] sm:$0xff] %vm299, %v298
  %s302 = scalar_lea.vmem %s0, 399
  %s303 = smov 3
  %v304 = vld [vmem:[%s302] ss:$16 sm:%s303]
  %s305 = scalar_lea.vmem %s0, 399
  %s306 = smov 12
  %v307 = vld [vmem:[%s305] ss:$16 sm:%s306]
  %vm308 = vcmask 1043458
  %v309 = vsel %vm308, %v307, %v304
  %s310 = scalar_lea.vmem %s0, 399
  %s311 = smov 48
  %v312 = vld [vmem:[%s310] ss:$16 sm:%s311]
  %vm313 = vcmask 1045508
  %v314 = vsel %vm313, %v312, %v309
  %s315 = scalar_lea.vmem %s0, 399
  %s316 = smov 192
  %v317 = vld [vmem:[%s315] ss:$16 sm:%s316]
  %vm318 = vcmask 1047558
  %v319 = vsel %vm318, %v317, %v314
  %320 = vrot.lane.b32.xlu0 %v319, 120
  %v321 = vpop.permute.xlu0 %320
  %vm322 = vcmask 1048512
  %s323 = scalar_lea.vmem %s1, 24
  %324 = vst.msk [vmem:[%s323] sm:$0xff] %vm322, %v321
  %s325 = scalar_lea.vmem %s0, 911
  %s326 = smov 3
  %v327 = vld [vmem:[%s325] ss:$16 sm:%s326]
  %s328 = scalar_lea.vmem %s0, 911
  %s329 = smov 12
  %v330 = vld [vmem:[%s328] ss:$16 sm:%s329]
  %vm331 = vcmask 1043458
  %v332 = vsel %vm331, %v330, %v327
  %s333 = scalar_lea.vmem %s0, 911
  %s334 = smov 48
  %v335 = vld [vmem:[%s333] ss:$16 sm:%s334]
  %vm336 = vcmask 1045508
  %v337 = vsel %vm336, %v335, %v332
  %s338 = scalar_lea.vmem %s0, 911
  %s339 = smov 192
  %v340 = vld [vmem:[%s338] ss:$16 sm:%s339]
  %vm341 = vcmask 1047558
  %v342 = vsel %vm341, %v340, %v337
  %343 = vrot.lane.b32.xlu0 %v342, 120
  %v344 = vpop.permute.xlu0 %343
  %vm345 = vcmask 1048512
  %s346 = scalar_lea.vmem %s1, 56
  %347 = vst.msk [vmem:[%s346] sm:$0xff] %vm345, %v344
  %s348 = scalar_lea.vmem %s0, 14
  %s349 = smov 3
  %v350 = vld [vmem:[%s348] ss:$16 sm:%s349]
  %s351 = scalar_lea.vmem %s0, 14
  %s352 = smov 12
  %v353 = vld [vmem:[%s351] ss:$16 sm:%s352]
  %vm354 = vcmask 1043458
  %v355 = vsel %vm354, %v353, %v350
  %s356 = scalar_lea.vmem %s0, 14
  %s357 = smov 48
  %v358 = vld [vmem:[%s356] ss:$16 sm:%s357]
  %vm359 = vcmask 1045508
  %v360 = vsel %vm359, %v358, %v355
  %s361 = scalar_lea.vmem %s0, 14
  %s362 = smov 192
  %v363 = vld [vmem:[%s361] ss:$16 sm:%s362]
  %vm364 = vcmask 1047558
  %v365 = vsel %vm364, %v363, %v360
  %366 = vrot.lane.b32.xlu0 %v365, 112
  %v367 = vpop.permute.xlu0 %366
  %vm368 = vcmask 982912
  %369 = vst.msk [vmem:[%s1] sm:$0xff] %vm368, %v367
  %s370 = scalar_lea.vmem %s0, 526
  %s371 = smov 3
  %v372 = vld [vmem:[%s370] ss:$16 sm:%s371]
  %s373 = scalar_lea.vmem %s0, 526
  %s374 = smov 12
  %v375 = vld [vmem:[%s373] ss:$16 sm:%s374]
  %vm376 = vcmask 1043458
  %v377 = vsel %vm376, %v375, %v372
  %s378 = scalar_lea.vmem %s0, 526
  %s379 = smov 48
  %v380 = vld [vmem:[%s378] ss:$16 sm:%s379]
  %vm381 = vcmask 1045508
  %v382 = vsel %vm381, %v380, %v377
  %s383 = scalar_lea.vmem %s0, 526
  %s384 = smov 192
  %v385 = vld [vmem:[%s383] ss:$16 sm:%s384]
  %vm386 = vcmask 1047558
  %v387 = vsel %vm386, %v385, %v382
  %388 = vrot.lane.b32.xlu0 %v387, 112
  %v389 = vpop.permute.xlu0 %388
  %vm390 = vcmask 982912
  %s391 = scalar_lea.vmem %s1, 32
  %392 = vst.msk [vmem:[%s391] sm:$0xff] %vm390, %v389
  %s393 = scalar_lea.vmem %s0, 142
  %s394 = smov 3
  %v395 = vld [vmem:[%s393] ss:$16 sm:%s394]
  %s396 = scalar_lea.vmem %s0, 142
  %s397 = smov 12
  %v398 = vld [vmem:[%s396] ss:$16 sm:%s397]
  %vm399 = vcmask 1043458
  %v400 = vsel %vm399, %v398, %v395
  %s401 = scalar_lea.vmem %s0, 142
  %s402 = smov 48
  %v403 = vld [vmem:[%s401] ss:$16 sm:%s402]
  %vm404 = vcmask 1045508
  %v405 = vsel %vm404, %v403, %v400
  %s406 = scalar_lea.vmem %s0, 142
  %s407 = smov 192
  %v408 = vld [vmem:[%s406] ss:$16 sm:%s407]
  %vm409 = vcmask 1047558
  %v410 = vsel %vm409, %v408, %v405
  %411 = vrot.lane.b32.xlu0 %v410, 112
  %v412 = vpop.permute.xlu0 %411
  %vm413 = vcmask 982912
  %s414 = scalar_lea.vmem %s1, 8
  %415 = vst.msk [vmem:[%s414] sm:$0xff] %vm413, %v412
  %s416 = scalar_lea.vmem %s0, 654
  %s417 = smov 3
  %v418 = vld [vmem:[%s416] ss:$16 sm:%s417]
  %s419 = scalar_lea.vmem %s0, 654
  %s420 = smov 12
  %v421 = vld [vmem:[%s419] ss:$16 sm:%s420]
  %vm422 = vcmask 1043458
  %v423 = vsel %vm422, %v421, %v418
  %s424 = scalar_lea.vmem %s0, 654
  %s425 = smov 48
  %v426 = vld [vmem:[%s424] ss:$16 sm:%s425]
  %vm427 = vcmask 1045508
  %v428 = vsel %vm427, %v426, %v423
  %s429 = scalar_lea.vmem %s0, 654
  %s430 = smov 192
  %v431 = vld [vmem:[%s429] ss:$16 sm:%s430]
  %vm432 = vcmask 1047558
  %v433 = vsel %vm432, %v431, %v428
  %434 = vrot.lane.b32.xlu0 %v433, 112
  %v435 = vpop.permute.xlu0 %434
  %vm436 = vcmask 982912
  %s437 = scalar_lea.vmem %s1, 40
  %438 = vst.msk [vmem:[%s437] sm:$0xff] %vm436, %v435
  %s439 = scalar_lea.vmem %s0, 270
  %s440 = smov 3
  %v441 = vld [vmem:[%s439] ss:$16 sm:%s440]
  %s442 = scalar_lea.vmem %s0, 270
  %s443 = smov 12
  %v444 = vld [vmem:[%s442] ss:$16 sm:%s443]
  %vm445 = vcmask 1043458
  %v446 = vsel %vm445, %v444, %v441
  %s447 = scalar_lea.vmem %s0, 270
  %s448 = smov 48
  %v449 = vld [vmem:[%s447] ss:$16 sm:%s448]
  %vm450 = vcmask 1045508
  %v451 = vsel %vm450, %v449, %v446
  %s452 = scalar_lea.vmem %s0, 270
  %s453 = smov 192
  %v454 = vld [vmem:[%s452] ss:$16 sm:%s453]
  %vm455 = vcmask 1047558
  %v456 = vsel %vm455, %v454, %v451
  %457 = vrot.lane.b32.xlu0 %v456, 112
  %v458 = vpop.permute.xlu0 %457
  %vm459 = vcmask 982912
  %s460 = scalar_lea.vmem %s1, 16
  %461 = vst.msk [vmem:[%s460] sm:$0xff] %vm459, %v458
  %s462 = scalar_lea.vmem %s0, 782
  %s463 = smov 3
  %v464 = vld [vmem:[%s462] ss:$16 sm:%s463]
  %s465 = scalar_lea.vmem %s0, 782
  %s466 = smov 12
  %v467 = vld [vmem:[%s465] ss:$16 sm:%s466]
  %vm468 = vcmask 1043458
  %v469 = vsel %vm468, %v467, %v464
  %s470 = scalar_lea.vmem %s0, 782
  %s471 = smov 48
  %v472 = vld [vmem:[%s470] ss:$16 sm:%s471]
  %vm473 = vcmask 1045508
  %v474 = vsel %vm473, %v472, %v469
  %s475 = scalar_lea.vmem %s0, 782
  %s476 = smov 192
  %v477 = vld [vmem:[%s475] ss:$16 sm:%s476]
  %vm478 = vcmask 1047558
  %v479 = vsel %vm478, %v477, %v474
  %480 = vrot.lane.b32.xlu0 %v479, 112
  %v481 = vpop.permute.xlu0 %480
  %vm482 = vcmask 982912
  %s483 = scalar_lea.vmem %s1, 48
  %484 = vst.msk [vmem:[%s483] sm:$0xff] %vm482, %v481
  %s485 = scalar_lea.vmem %s0, 398
  %s486 = smov 3
  %v487 = vld [vmem:[%s485] ss:$16 sm:%s486]
  %s488 = scalar_lea.vmem %s0, 398
  %s489 = smov 12
  %v490 = vld [vmem:[%s488] ss:$16 sm:%s489]
  %vm491 = vcmask 1043458
  %v492 = vsel %vm491, %v490, %v487
  %s493 = scalar_lea.vmem %s0, 398
  %s494 = smov 48
  %v495 = vld [vmem:[%s493] ss:$16 sm:%s494]
  %vm496 = vcmask 1045508
  %v497 = vsel %vm496, %v495, %v492
  %s498 = scalar_lea.vmem %s0, 398
  %s499 = smov 192
  %v500 = vld [vmem:[%s498] ss:$16 sm:%s499]
  %vm501 = vcmask 1047558
  %v502 = vsel %vm501, %v500, %v497
  %503 = vrot.lane.b32.xlu0 %v502, 112
  %v504 = vpop.permute.xlu0 %503
  %vm505 = vcmask 982912
  %s506 = scalar_lea.vmem %s1, 24
  %507 = vst.msk [vmem:[%s506] sm:$0xff] %vm505, %v504
  %s508 = scalar_lea.vmem %s0, 910
  %s509 = smov 3
  %v510 = vld [vmem:[%s508] ss:$16 sm:%s509]
  %s511 = scalar_lea.vmem %s0, 910
  %s512 = smov 12
  %v513 = vld [vmem:[%s511] ss:$16 sm:%s512]
  %vm514 = vcmask 1043458
  %v515 = vsel %vm514, %v513, %v510
  %s516 = scalar_lea.vmem %s0, 910
  %s517 = smov 48
  %v518 = vld [vmem:[%s516] ss:$16 sm:%s517]
  %vm519 = vcmask 1045508
  %v520 = vsel %vm519, %v518, %v515
  %s521 = scalar_lea.vmem %s0, 910
  %s522 = smov 192
  %v523 = vld [vmem:[%s521] ss:$16 sm:%s522]
  %vm524 = vcmask 1047558
  %v525 = vsel %vm524, %v523, %v520
  %526 = vrot.lane.b32.xlu0 %v525, 112
  %v527 = vpop.permute.xlu0 %526
  %vm528 = vcmask 982912
  %s529 = scalar_lea.vmem %s1, 56
  %530 = vst.msk [vmem:[%s529] sm:$0xff] %vm528, %v527
  %s531 = scalar_lea.vmem %s0, 13
  %s532 = smov 3
  %v533 = vld [vmem:[%s531] ss:$16 sm:%s532]
  %s534 = scalar_lea.vmem %s0, 13
  %s535 = smov 12
  %v536 = vld [vmem:[%s534] ss:$16 sm:%s535]
  %vm537 = vcmask 1043458
  %v538 = vsel %vm537, %v536, %v533
  %s539 = scalar_lea.vmem %s0, 13
  %s540 = smov 48
  %v541 = vld [vmem:[%s539] ss:$16 sm:%s540]
  %vm542 = vcmask 1045508
  %v543 = vsel %vm542, %v541, %v538
  %s544 = scalar_lea.vmem %s0, 13
  %s545 = smov 192
  %v546 = vld [vmem:[%s544] ss:$16 sm:%s545]
  %vm547 = vcmask 1047558
  %v548 = vsel %vm547, %v546, %v543
  %549 = vrot.lane.b32.xlu0 %v548, 104
  %v550 = vpop.permute.xlu0 %549
  %vm551 = vcmask 917312
  %552 = vst.msk [vmem:[%s1] sm:$0xff] %vm551, %v550
  %s553 = scalar_lea.vmem %s0, 525
  %s554 = smov 3
  %v555 = vld [vmem:[%s553] ss:$16 sm:%s554]
  %s556 = scalar_lea.vmem %s0, 525
  %s557 = smov 12
  %v558 = vld [vmem:[%s556] ss:$16 sm:%s557]
  %vm559 = vcmask 1043458
  %v560 = vsel %vm559, %v558, %v555
  %s561 = scalar_lea.vmem %s0, 525
  %s562 = smov 48
  %v563 = vld [vmem:[%s561] ss:$16 sm:%s562]
  %vm564 = vcmask 1045508
  %v565 = vsel %vm564, %v563, %v560
  %s566 = scalar_lea.vmem %s0, 525
  %s567 = smov 192
  %v568 = vld [vmem:[%s566] ss:$16 sm:%s567]
  %vm569 = vcmask 1047558
  %v570 = vsel %vm569, %v568, %v565
  %571 = vrot.lane.b32.xlu0 %v570, 104
  %v572 = vpop.permute.xlu0 %571
  %vm573 = vcmask 917312
  %s574 = scalar_lea.vmem %s1, 32
  %575 = vst.msk [vmem:[%s574] sm:$0xff] %vm573, %v572
  %s576 = scalar_lea.vmem %s0, 141
  %s577 = smov 3
  %v578 = vld [vmem:[%s576] ss:$16 sm:%s577]
  %s579 = scalar_lea.vmem %s0, 141
  %s580 = smov 12
  %v581 = vld [vmem:[%s579] ss:$16 sm:%s580]
  %vm582 = vcmask 1043458
  %v583 = vsel %vm582, %v581, %v578
  %s584 = scalar_lea.vmem %s0, 141
  %s585 = smov 48
  %v586 = vld [vmem:[%s584] ss:$16 sm:%s585]
  %vm587 = vcmask 1045508
  %v588 = vsel %vm587, %v586, %v583
  %s589 = scalar_lea.vmem %s0, 141
  %s590 = smov 192
  %v591 = vld [vmem:[%s589] ss:$16 sm:%s590]
  %vm592 = vcmask 1047558
  %v593 = vsel %vm592, %v591, %v588
  %594 = vrot.lane.b32.xlu0 %v593, 104
  %v595 = vpop.permute.xlu0 %594
  %vm596 = vcmask 917312
  %s597 = scalar_lea.vmem %s1, 8
  %598 = vst.msk [vmem:[%s597] sm:$0xff] %vm596, %v595
  %s599 = scalar_lea.vmem %s0, 653
  %s600 = smov 3
  %v601 = vld [vmem:[%s599] ss:$16 sm:%s600]
  %s602 = scalar_lea.vmem %s0, 653
  %s603 = smov 12
  %v604 = vld [vmem:[%s602] ss:$16 sm:%s603]
  %vm605 = vcmask 1043458
  %v606 = vsel %vm605, %v604, %v601
  %s607 = scalar_lea.vmem %s0, 653
  %s608 = smov 48
  %v609 = vld [vmem:[%s607] ss:$16 sm:%s608]
  %vm610 = vcmask 1045508
  %v611 = vsel %vm610, %v609, %v606
  %s612 = scalar_lea.vmem %s0, 653
  %s613 = smov 192
  %v614 = vld [vmem:[%s612] ss:$16 sm:%s613]
  %vm615 = vcmask 1047558
  %v616 = vsel %vm615, %v614, %v611
  %617 = vrot.lane.b32.xlu0 %v616, 104
  %v618 = vpop.permute.xlu0 %617
  %vm619 = vcmask 917312
  %s620 = scalar_lea.vmem %s1, 40
  %621 = vst.msk [vmem:[%s620] sm:$0xff] %vm619, %v618
  %s622 = scalar_lea.vmem %s0, 269
  %s623 = smov 3
  %v624 = vld [vmem:[%s622] ss:$16 sm:%s623]
  %s625 = scalar_lea.vmem %s0, 269
  %s626 = smov 12
  %v627 = vld [vmem:[%s625] ss:$16 sm:%s626]
  %vm628 = vcmask 1043458
  %v629 = vsel %vm628, %v627, %v624
  %s630 = scalar_lea.vmem %s0, 269
  %s631 = smov 48
  %v632 = vld [vmem:[%s630] ss:$16 sm:%s631]
  %vm633 = vcmask 1045508
  %v634 = vsel %vm633, %v632, %v629
  %s635 = scalar_lea.vmem %s0, 269
  %s636 = smov 192
  %v637 = vld [vmem:[%s635] ss:$16 sm:%s636]
  %vm638 = vcmask 1047558
  %v639 = vsel %vm638, %v637, %v634
  %640 = vrot.lane.b32.xlu0 %v639, 104
  %v641 = vpop.permute.xlu0 %640
  %vm642 = vcmask 917312
  %s643 = scalar_lea.vmem %s1, 16
  %644 = vst.msk [vmem:[%s643] sm:$0xff] %vm642, %v641
  %s645 = scalar_lea.vmem %s0, 781
  %s646 = smov 3
  %v647 = vld [vmem:[%s645] ss:$16 sm:%s646]
  %s648 = scalar_lea.vmem %s0, 781
  %s649 = smov 12
  %v650 = vld [vmem:[%s648] ss:$16 sm:%s649]
  %vm651 = vcmask 1043458
  %v652 = vsel %vm651, %v650, %v647
  %s653 = scalar_lea.vmem %s0, 781
  %s654 = smov 48
  %v655 = vld [vmem:[%s653] ss:$16 sm:%s654]
  %vm656 = vcmask 1045508
  %v657 = vsel %vm656, %v655, %v652
  %s658 = scalar_lea.vmem %s0, 781
  %s659 = smov 192
  %v660 = vld [vmem:[%s658] ss:$16 sm:%s659]
  %vm661 = vcmask 1047558
  %v662 = vsel %vm661, %v660, %v657
  %663 = vrot.lane.b32.xlu0 %v662, 104
  %v664 = vpop.permute.xlu0 %663
  %vm665 = vcmask 917312
  %s666 = scalar_lea.vmem %s1, 48
  %667 = vst.msk [vmem:[%s666] sm:$0xff] %vm665, %v664
  %s668 = scalar_lea.vmem %s0, 397
  %s669 = smov 3
  %v670 = vld [vmem:[%s668] ss:$16 sm:%s669]
  %s671 = scalar_lea.vmem %s0, 397
  %s672 = smov 12
  %v673 = vld [vmem:[%s671] ss:$16 sm:%s672]
  %vm674 = vcmask 1043458
  %v675 = vsel %vm674, %v673, %v670
  %s676 = scalar_lea.vmem %s0, 397
  %s677 = smov 48
  %v678 = vld [vmem:[%s676] ss:$16 sm:%s677]
  %vm679 = vcmask 1045508
  %v680 = vsel %vm679, %v678, %v675
  %s681 = scalar_lea.vmem %s0, 397
  %s682 = smov 192
  %v683 = vld [vmem:[%s681] ss:$16 sm:%s682]
  %vm684 = vcmask 1047558
  %v685 = vsel %vm684, %v683, %v680
  %686 = vrot.lane.b32.xlu0 %v685, 104
  %v687 = vpop.permute.xlu0 %686
  %vm688 = vcmask 917312
  %s689 = scalar_lea.vmem %s1, 24
  %690 = vst.msk [vmem:[%s689] sm:$0xff] %vm688, %v687
  %s691 = scalar_lea.vmem %s0, 909
  %s692 = smov 3
  %v693 = vld [vmem:[%s691] ss:$16 sm:%s692]
  %s694 = scalar_lea.vmem %s0, 909
  %s695 = smov 12
  %v696 = vld [vmem:[%s694] ss:$16 sm:%s695]
  %vm697 = vcmask 1043458
  %v698 = vsel %vm697, %v696, %v693
  %s699 = scalar_lea.vmem %s0, 909
  %s700 = smov 48
  %v701 = vld [vmem:[%s699] ss:$16 sm:%s700]
  %vm702 = vcmask 1045508
  %v703 = vsel %vm702, %v701, %v698
  %s704 = scalar_lea.vmem %s0, 909
  %s705 = smov 192
  %v706 = vld [vmem:[%s704] ss:$16 sm:%s705]
  %vm707 = vcmask 1047558
  %v708 = vsel %vm707, %v706, %v703
  %709 = vrot.lane.b32.xlu0 %v708, 104
  %v710 = vpop.permute.xlu0 %709
  %vm711 = vcmask 917312
  %s712 = scalar_lea.vmem %s1, 56
  %713 = vst.msk [vmem:[%s712] sm:$0xff] %vm711, %v710
  %s714 = scalar_lea.vmem %s0, 12
  %s715 = smov 3
  %v716 = vld [vmem:[%s714] ss:$16 sm:%s715]
  %s717 = scalar_lea.vmem %s0, 12
  %s718 = smov 12
  %v719 = vld [vmem:[%s717] ss:$16 sm:%s718]
  %vm720 = vcmask 1043458
  %v721 = vsel %vm720, %v719, %v716
  %s722 = scalar_lea.vmem %s0, 12
  %s723 = smov 48
  %v724 = vld [vmem:[%s722] ss:$16 sm:%s723]
  %vm725 = vcmask 1045508
  %v726 = vsel %vm725, %v724, %v721
  %s727 = scalar_lea.vmem %s0, 12
  %s728 = smov 192
  %v729 = vld [vmem:[%s727] ss:$16 sm:%s728]
  %vm730 = vcmask 1047558
  %v731 = vsel %vm730, %v729, %v726
  %732 = vrot.lane.b32.xlu0 %v731, 96
  %v733 = vpop.permute.xlu0 %732
  %vm734 = vcmask 851712
  %735 = vst.msk [vmem:[%s1] sm:$0xff] %vm734, %v733
  %s736 = scalar_lea.vmem %s0, 524
  %s737 = smov 3
  %v738 = vld [vmem:[%s736] ss:$16 sm:%s737]
  %s739 = scalar_lea.vmem %s0, 524
  %s740 = smov 12
  %v741 = vld [vmem:[%s739] ss:$16 sm:%s740]
  %vm742 = vcmask 1043458
  %v743 = vsel %vm742, %v741, %v738
  %s744 = scalar_lea.vmem %s0, 524
  %s745 = smov 48
  %v746 = vld [vmem:[%s744] ss:$16 sm:%s745]
  %vm747 = vcmask 1045508
  %v748 = vsel %vm747, %v746, %v743
  %s749 = scalar_lea.vmem %s0, 524
  %s750 = smov 192
  %v751 = vld [vmem:[%s749] ss:$16 sm:%s750]
  %vm752 = vcmask 1047558
  %v753 = vsel %vm752, %v751, %v748
  %754 = vrot.lane.b32.xlu0 %v753, 96
  %v755 = vpop.permute.xlu0 %754
  %vm756 = vcmask 851712
  %s757 = scalar_lea.vmem %s1, 32
  %758 = vst.msk [vmem:[%s757] sm:$0xff] %vm756, %v755
  %s759 = scalar_lea.vmem %s0, 140
  %s760 = smov 3
  %v761 = vld [vmem:[%s759] ss:$16 sm:%s760]
  %s762 = scalar_lea.vmem %s0, 140
  %s763 = smov 12
  %v764 = vld [vmem:[%s762] ss:$16 sm:%s763]
  %vm765 = vcmask 1043458
  %v766 = vsel %vm765, %v764, %v761
  %s767 = scalar_lea.vmem %s0, 140
  %s768 = smov 48
  %v769 = vld [vmem:[%s767] ss:$16 sm:%s768]
  %vm770 = vcmask 1045508
  %v771 = vsel %vm770, %v769, %v766
  %s772 = scalar_lea.vmem %s0, 140
  %s773 = smov 192
  %v774 = vld [vmem:[%s772] ss:$16 sm:%s773]
  %vm775 = vcmask 1047558
  %v776 = vsel %vm775, %v774, %v771
  %777 = vrot.lane.b32.xlu0 %v776, 96
  %v778 = vpop.permute.xlu0 %777
  %vm779 = vcmask 851712
  %s780 = scalar_lea.vmem %s1, 8
  %781 = vst.msk [vmem:[%s780] sm:$0xff] %vm779, %v778
  %s782 = scalar_lea.vmem %s0, 652
  %s783 = smov 3
  %v784 = vld [vmem:[%s782] ss:$16 sm:%s783]
  %s785 = scalar_lea.vmem %s0, 652
  %s786 = smov 12
  %v787 = vld [vmem:[%s785] ss:$16 sm:%s786]
  %vm788 = vcmask 1043458
  %v789 = vsel %vm788, %v787, %v784
  %s790 = scalar_lea.vmem %s0, 652
  %s791 = smov 48
  %v792 = vld [vmem:[%s790] ss:$16 sm:%s791]
  %vm793 = vcmask 1045508
  %v794 = vsel %vm793, %v792, %v789
  %s795 = scalar_lea.vmem %s0, 652
  %s796 = smov 192
  %v797 = vld [vmem:[%s795] ss:$16 sm:%s796]
  %vm798 = vcmask 1047558
  %v799 = vsel %vm798, %v797, %v794
  %800 = vrot.lane.b32.xlu0 %v799, 96
  %v801 = vpop.permute.xlu0 %800
  %vm802 = vcmask 851712
  %s803 = scalar_lea.vmem %s1, 40
  %804 = vst.msk [vmem:[%s803] sm:$0xff] %vm802, %v801
  %s805 = scalar_lea.vmem %s0, 268
  %s806 = smov 3
  %v807 = vld [vmem:[%s805] ss:$16 sm:%s806]
  %s808 = scalar_lea.vmem %s0, 268
  %s809 = smov 12
  %v810 = vld [vmem:[%s808] ss:$16 sm:%s809]
  %vm811 = vcmask 1043458
  %v812 = vsel %vm811, %v810, %v807
  %s813 = scalar_lea.vmem %s0, 268
  %s814 = smov 48
  %v815 = vld [vmem:[%s813] ss:$16 sm:%s814]
  %vm816 = vcmask 1045508
  %v817 = vsel %vm816, %v815, %v812
  %s818 = scalar_lea.vmem %s0, 268
  %s819 = smov 192
  %v820 = vld [vmem:[%s818] ss:$16 sm:%s819]
  %vm821 = vcmask 1047558
  %v822 = vsel %vm821, %v820, %v817
  %823 = vrot.lane.b32.xlu0 %v822, 96
  %v824 = vpop.permute.xlu0 %823
  %vm825 = vcmask 851712
  %s826 = scalar_lea.vmem %s1, 16
  %827 = vst.msk [vmem:[%s826] sm:$0xff] %vm825, %v824
  %s828 = scalar_lea.vmem %s0, 780
  %s829 = smov 3
  %v830 = vld [vmem:[%s828] ss:$16 sm:%s829]
  %s831 = scalar_lea.vmem %s0, 780
  %s832 = smov 12
  %v833 = vld [vmem:[%s831] ss:$16 sm:%s832]
  %vm834 = vcmask 1043458
  %v835 = vsel %vm834, %v833, %v830
  %s836 = scalar_lea.vmem %s0, 780
  %s837 = smov 48
  %v838 = vld [vmem:[%s836] ss:$16 sm:%s837]
  %vm839 = vcmask 1045508
  %v840 = vsel %vm839, %v838, %v835
  %s841 = scalar_lea.vmem %s0, 780
  %s842 = smov 192
  %v843 = vld [vmem:[%s841] ss:$16 sm:%s842]
  %vm844 = vcmask 1047558
  %v845 = vsel %vm844, %v843, %v840
  %846 = vrot.lane.b32.xlu0 %v845, 96
  %v847 = vpop.permute.xlu0 %846
  %vm848 = vcmask 851712
  %s849 = scalar_lea.vmem %s1, 48
  %850 = vst.msk [vmem:[%s849] sm:$0xff] %vm848, %v847
  %s851 = scalar_lea.vmem %s0, 396
  %s852 = smov 3
  %v853 = vld [vmem:[%s851] ss:$16 sm:%s852]
  %s854 = scalar_lea.vmem %s0, 396
  %s855 = smov 12
  %v856 = vld [vmem:[%s854] ss:$16 sm:%s855]
  %vm857 = vcmask 1043458
  %v858 = vsel %vm857, %v856, %v853
  %s859 = scalar_lea.vmem %s0, 396
  %s860 = smov 48
  %v861 = vld [vmem:[%s859] ss:$16 sm:%s860]
  %vm862 = vcmask 1045508
  %v863 = vsel %vm862, %v861, %v858
  %s864 = scalar_lea.vmem %s0, 396
  %s865 = smov 192
  %v866 = vld [vmem:[%s864] ss:$16 sm:%s865]
  %vm867 = vcmask 1047558
  %v868 = vsel %vm867, %v866, %v863
  %869 = vrot.lane.b32.xlu0 %v868, 96
  %v870 = vpop.permute.xlu0 %869
  %vm871 = vcmask 851712
  %s872 = scalar_lea.vmem %s1, 24
  %873 = vst.msk [vmem:[%s872] sm:$0xff] %vm871, %v870
  %s874 = scalar_lea.vmem %s0, 908
  %s875 = smov 3
  %v876 = vld [vmem:[%s874] ss:$16 sm:%s875]
  %s877 = scalar_lea.vmem %s0, 908
  %s878 = smov 12
  %v879 = vld [vmem:[%s877] ss:$16 sm:%s878]
  %vm880 = vcmask 1043458
  %v881 = vsel %vm880, %v879, %v876
  %s882 = scalar_lea.vmem %s0, 908
  %s883 = smov 48
  %v884 = vld [vmem:[%s882] ss:$16 sm:%s883]
  %vm885 = vcmask 1045508
  %v886 = vsel %vm885, %v884, %v881
  %s887 = scalar_lea.vmem %s0, 908
  %s888 = smov 192
  %v889 = vld [vmem:[%s887] ss:$16 sm:%s888]
  %vm890 = vcmask 1047558
  %v891 = vsel %vm890, %v889, %v886
  %892 = vrot.lane.b32.xlu0 %v891, 96
  %v893 = vpop.permute.xlu0 %892
  %vm894 = vcmask 851712
  %s895 = scalar_lea.vmem %s1, 56
  %896 = vst.msk [vmem:[%s895] sm:$0xff] %vm894, %v893
  %s897 = scalar_lea.vmem %s0, 11
  %s898 = smov 3
  %v899 = vld [vmem:[%s897] ss:$16 sm:%s898]
  %s900 = scalar_lea.vmem %s0, 11
  %s901 = smov 12
  %v902 = vld [vmem:[%s900] ss:$16 sm:%s901]
  %vm903 = vcmask 1043458
  %v904 = vsel %vm903, %v902, %v899
  %s905 = scalar_lea.vmem %s0, 11
  %s906 = smov 48
  %v907 = vld [vmem:[%s905] ss:$16 sm:%s906]
  %vm908 = vcmask 1045508
  %v909 = vsel %vm908, %v907, %v904
  %s910 = scalar_lea.vmem %s0, 11
  %s911 = smov 192
  %v912 = vld [vmem:[%s910] ss:$16 sm:%s911]
  %vm913 = vcmask 1047558
  %v914 = vsel %vm913, %v912, %v909
  %915 = vrot.lane.b32.xlu0 %v914, 88
  %v916 = vpop.permute.xlu0 %915
  %vm917 = vcmask 786112
  %918 = vst.msk [vmem:[%s1] sm:$0xff] %vm917, %v916
  %s919 = scalar_lea.vmem %s0, 523
  %s920 = smov 3
  %v921 = vld [vmem:[%s919] ss:$16 sm:%s920]
  %s922 = scalar_lea.vmem %s0, 523
  %s923 = smov 12
  %v924 = vld [vmem:[%s922] ss:$16 sm:%s923]
  %vm925 = vcmask 1043458
  %v926 = vsel %vm925, %v924, %v921
  %s927 = scalar_lea.vmem %s0, 523
  %s928 = smov 48
  %v929 = vld [vmem:[%s927] ss:$16 sm:%s928]
  %vm930 = vcmask 1045508
  %v931 = vsel %vm930, %v929, %v926
  %s932 = scalar_lea.vmem %s0, 523
  %s933 = smov 192
  %v934 = vld [vmem:[%s932] ss:$16 sm:%s933]
  %vm935 = vcmask 1047558
  %v936 = vsel %vm935, %v934, %v931
  %937 = vrot.lane.b32.xlu0 %v936, 88
  %v938 = vpop.permute.xlu0 %937
  %vm939 = vcmask 786112
  %s940 = scalar_lea.vmem %s1, 32
  %941 = vst.msk [vmem:[%s940] sm:$0xff] %vm939, %v938
  %s942 = scalar_lea.vmem %s0, 139
  %s943 = smov 3
  %v944 = vld [vmem:[%s942] ss:$16 sm:%s943]
  %s945 = scalar_lea.vmem %s0, 139
  %s946 = smov 12
  %v947 = vld [vmem:[%s945] ss:$16 sm:%s946]
  %vm948 = vcmask 1043458
  %v949 = vsel %vm948, %v947, %v944
  %s950 = scalar_lea.vmem %s0, 139
  %s951 = smov 48
  %v952 = vld [vmem:[%s950] ss:$16 sm:%s951]
  %vm953 = vcmask 1045508
  %v954 = vsel %vm953, %v952, %v949
  %s955 = scalar_lea.vmem %s0, 139
  %s956 = smov 192
  %v957 = vld [vmem:[%s955] ss:$16 sm:%s956]
  %vm958 = vcmask 1047558
  %v959 = vsel %vm958, %v957, %v954
  %960 = vrot.lane.b32.xlu0 %v959, 88
  %v961 = vpop.permute.xlu0 %960
  %vm962 = vcmask 786112
  %s963 = scalar_lea.vmem %s1, 8
  %964 = vst.msk [vmem:[%s963] sm:$0xff] %vm962, %v961
  %s965 = scalar_lea.vmem %s0, 651
  %s966 = smov 3
  %v967 = vld [vmem:[%s965] ss:$16 sm:%s966]
  %s968 = scalar_lea.vmem %s0, 651
  %s969 = smov 12
  %v970 = vld [vmem:[%s968] ss:$16 sm:%s969]
  %vm971 = vcmask 1043458
  %v972 = vsel %vm971, %v970, %v967
  %s973 = scalar_lea.vmem %s0, 651
  %s974 = smov 48
  %v975 = vld [vmem:[%s973] ss:$16 sm:%s974]
  %vm976 = vcmask 1045508
  %v977 = vsel %vm976, %v975, %v972
  %s978 = scalar_lea.vmem %s0, 651
  %s979 = smov 192
  %v980 = vld [vmem:[%s978] ss:$16 sm:%s979]
  %vm981 = vcmask 1047558
  %v982 = vsel %vm981, %v980, %v977
  %983 = vrot.lane.b32.xlu0 %v982, 88
  %v984 = vpop.permute.xlu0 %983
  %vm985 = vcmask 786112
  %s986 = scalar_lea.vmem %s1, 40
  %987 = vst.msk [vmem:[%s986] sm:$0xff] %vm985, %v984
  %s988 = scalar_lea.vmem %s0, 267
  %s989 = smov 3
  %v990 = vld [vmem:[%s988] ss:$16 sm:%s989]
  %s991 = scalar_lea.vmem %s0, 267
  %s992 = smov 12
  %v993 = vld [vmem:[%s991] ss:$16 sm:%s992]
  %vm994 = vcmask 1043458
  %v995 = vsel %vm994, %v993, %v990
  %s996 = scalar_lea.vmem %s0, 267
  %s997 = smov 48
  %v998 = vld [vmem:[%s996] ss:$16 sm:%s997]
  %vm999 = vcmask 1045508
  %v1000 = vsel %vm999, %v998, %v995
  %s1001 = scalar_lea.vmem %s0, 267
  %s1002 = smov 192
  %v1003 = vld [vmem:[%s1001] ss:$16 sm:%s1002]
  %vm1004 = vcmask 1047558
  %v1005 = vsel %vm1004, %v1003, %v1000
  %1006 = vrot.lane.b32.xlu0 %v1005, 88
  %v1007 = vpop.permute.xlu0 %1006
  %vm1008 = vcmask 786112
  %s1009 = scalar_lea.vmem %s1, 16
  %1010 = vst.msk [vmem:[%s1009] sm:$0xff] %vm1008, %v1007
  %s1011 = scalar_lea.vmem %s0, 779
  %s1012 = smov 3
  %v1013 = vld [vmem:[%s1011] ss:$16 sm:%s1012]
  %s1014 = scalar_lea.vmem %s0, 779
  %s1015 = smov 12
  %v1016 = vld [vmem:[%s1014] ss:$16 sm:%s1015]
  %vm1017 = vcmask 1043458
  %v1018 = vsel %vm1017, %v1016, %v1013
  %s1019 = scalar_lea.vmem %s0, 779
  %s1020 = smov 48
  %v1021 = vld [vmem:[%s1019] ss:$16 sm:%s1020]
  %vm1022 = vcmask 1045508
  %v1023 = vsel %vm1022, %v1021, %v1018
  %s1024 = scalar_lea.vmem %s0, 779
  %s1025 = smov 192
  %v1026 = vld [vmem:[%s1024] ss:$16 sm:%s1025]
  %vm1027 = vcmask 1047558
  %v1028 = vsel %vm1027, %v1026, %v1023
  %1029 = vrot.lane.b32.xlu0 %v1028, 88
  %v1030 = vpop.permute.xlu0 %1029
  %vm1031 = vcmask 786112
  %s1032 = scalar_lea.vmem %s1, 48
  %1033 = vst.msk [vmem:[%s1032] sm:$0xff] %vm1031, %v1030
  %s1034 = scalar_lea.vmem %s0, 395
  %s1035 = smov 3
  %v1036 = vld [vmem:[%s1034] ss:$16 sm:%s1035]
  %s1037 = scalar_lea.vmem %s0, 395
  %s1038 = smov 12
  %v1039 = vld [vmem:[%s1037] ss:$16 sm:%s1038]
  %vm1040 = vcmask 1043458
  %v1041 = vsel %vm1040, %v1039, %v1036
  %s1042 = scalar_lea.vmem %s0, 395
  %s1043 = smov 48
  %v1044 = vld [vmem:[%s1042] ss:$16 sm:%s1043]
  %vm1045 = vcmask 1045508
  %v1046 = vsel %vm1045, %v1044, %v1041
  %s1047 = scalar_lea.vmem %s0, 395
  %s1048 = smov 192
  %v1049 = vld [vmem:[%s1047] ss:$16 sm:%s1048]
  %vm1050 = vcmask 1047558
  %v1051 = vsel %vm1050, %v1049, %v1046
  %1052 = vrot.lane.b32.xlu0 %v1051, 88
  %v1053 = vpop.permute.xlu0 %1052
  %vm1054 = vcmask 786112
  %s1055 = scalar_lea.vmem %s1, 24
  %1056 = vst.msk [vmem:[%s1055] sm:$0xff] %vm1054, %v1053
  %s1057 = scalar_lea.vmem %s0, 907
  %s1058 = smov 3
  %v1059 = vld [vmem:[%s1057] ss:$16 sm:%s1058]
  %s1060 = scalar_lea.vmem %s0, 907
  %s1061 = smov 12
  %v1062 = vld [vmem:[%s1060] ss:$16 sm:%s1061]
  %vm1063 = vcmask 1043458
  %v1064 = vsel %vm1063, %v1062, %v1059
  %s1065 = scalar_lea.vmem %s0, 907
  %s1066 = smov 48
  %v1067 = vld [vmem:[%s1065] ss:$16 sm:%s1066]
  %vm1068 = vcmask 1045508
  %v1069 = vsel %vm1068, %v1067, %v1064
  %s1070 = scalar_lea.vmem %s0, 907
  %s1071 = smov 192
  %v1072 = vld [vmem:[%s1070] ss:$16 sm:%s1071]
  %vm1073 = vcmask 1047558
  %v1074 = vsel %vm1073, %v1072, %v1069
  %1075 = vrot.lane.b32.xlu0 %v1074, 88
  %v1076 = vpop.permute.xlu0 %1075
  %vm1077 = vcmask 786112
  %s1078 = scalar_lea.vmem %s1, 56
  %1079 = vst.msk [vmem:[%s1078] sm:$0xff] %vm1077, %v1076
  %s1080 = scalar_lea.vmem %s0, 10
  %s1081 = smov 3
  %v1082 = vld [vmem:[%s1080] ss:$16 sm:%s1081]
  %s1083 = scalar_lea.vmem %s0, 10
  %s1084 = smov 12
  %v1085 = vld [vmem:[%s1083] ss:$16 sm:%s1084]
  %vm1086 = vcmask 1043458
  %v1087 = vsel %vm1086, %v1085, %v1082
  %s1088 = scalar_lea.vmem %s0, 10
  %s1089 = smov 48
  %v1090 = vld [vmem:[%s1088] ss:$16 sm:%s1089]
  %vm1091 = vcmask 1045508
  %v1092 = vsel %vm1091, %v1090, %v1087
  %s1093 = scalar_lea.vmem %s0, 10
  %s1094 = smov 192
  %v1095 = vld [vmem:[%s1093] ss:$16 sm:%s1094]
  %vm1096 = vcmask 1047558
  %v1097 = vsel %vm1096, %v1095, %v1092
  %1098 = vrot.lane.b32.xlu0 %v1097, 80
  %v1099 = vpop.permute.xlu0 %1098
  %vm1100 = vcmask 720512
  %1101 = vst.msk [vmem:[%s1] sm:$0xff] %vm1100, %v1099
  %s1102 = scalar_lea.vmem %s0, 522
  %s1103 = smov 3
  %v1104 = vld [vmem:[%s1102] ss:$16 sm:%s1103]
  %s1105 = scalar_lea.vmem %s0, 522
  %s1106 = smov 12
  %v1107 = vld [vmem:[%s1105] ss:$16 sm:%s1106]
  %vm1108 = vcmask 1043458
  %v1109 = vsel %vm1108, %v1107, %v1104
  %s1110 = scalar_lea.vmem %s0, 522
  %s1111 = smov 48
  %v1112 = vld [vmem:[%s1110] ss:$16 sm:%s1111]
  %vm1113 = vcmask 1045508
  %v1114 = vsel %vm1113, %v1112, %v1109
  %s1115 = scalar_lea.vmem %s0, 522
  %s1116 = smov 192
  %v1117 = vld [vmem:[%s1115] ss:$16 sm:%s1116]
  %vm1118 = vcmask 1047558
  %v1119 = vsel %vm1118, %v1117, %v1114
  %1120 = vrot.lane.b32.xlu0 %v1119, 80
  %v1121 = vpop.permute.xlu0 %1120
  %vm1122 = vcmask 720512
  %s1123 = scalar_lea.vmem %s1, 32
  %1124 = vst.msk [vmem:[%s1123] sm:$0xff] %vm1122, %v1121
  %s1125 = scalar_lea.vmem %s0, 138
  %s1126 = smov 3
  %v1127 = vld [vmem:[%s1125] ss:$16 sm:%s1126]
  %s1128 = scalar_lea.vmem %s0, 138
  %s1129 = smov 12
  %v1130 = vld [vmem:[%s1128] ss:$16 sm:%s1129]
  %vm1131 = vcmask 1043458
  %v1132 = vsel %vm1131, %v1130, %v1127
  %s1133 = scalar_lea.vmem %s0, 138
  %s1134 = smov 48
  %v1135 = vld [vmem:[%s1133] ss:$16 sm:%s1134]
  %vm1136 = vcmask 1045508
  %v1137 = vsel %vm1136, %v1135, %v1132
  %s1138 = scalar_lea.vmem %s0, 138
  %s1139 = smov 192
  %v1140 = vld [vmem:[%s1138] ss:$16 sm:%s1139]
  %vm1141 = vcmask 1047558
  %v1142 = vsel %vm1141, %v1140, %v1137
  %1143 = vrot.lane.b32.xlu0 %v1142, 80
  %v1144 = vpop.permute.xlu0 %1143
  %vm1145 = vcmask 720512
  %s1146 = scalar_lea.vmem %s1, 8
  %1147 = vst.msk [vmem:[%s1146] sm:$0xff] %vm1145, %v1144
  %s1148 = scalar_lea.vmem %s0, 650
  %s1149 = smov 3
  %v1150 = vld [vmem:[%s1148] ss:$16 sm:%s1149]
  %s1151 = scalar_lea.vmem %s0, 650
  %s1152 = smov 12
  %v1153 = vld [vmem:[%s1151] ss:$16 sm:%s1152]
  %vm1154 = vcmask 1043458
  %v1155 = vsel %vm1154, %v1153, %v1150
  %s1156 = scalar_lea.vmem %s0, 650
  %s1157 = smov 48
  %v1158 = vld [vmem:[%s1156] ss:$16 sm:%s1157]
  %vm1159 = vcmask 1045508
  %v1160 = vsel %vm1159, %v1158, %v1155
  %s1161 = scalar_lea.vmem %s0, 650
  %s1162 = smov 192
  %v1163 = vld [vmem:[%s1161] ss:$16 sm:%s1162]
  %vm1164 = vcmask 1047558
  %v1165 = vsel %vm1164, %v1163, %v1160
  %1166 = vrot.lane.b32.xlu0 %v1165, 80
  %v1167 = vpop.permute.xlu0 %1166
  %vm1168 = vcmask 720512
  %s1169 = scalar_lea.vmem %s1, 40
  %1170 = vst.msk [vmem:[%s1169] sm:$0xff] %vm1168, %v1167
  %s1171 = scalar_lea.vmem %s0, 266
  %s1172 = smov 3
  %v1173 = vld [vmem:[%s1171] ss:$16 sm:%s1172]
  %s1174 = scalar_lea.vmem %s0, 266
  %s1175 = smov 12
  %v1176 = vld [vmem:[%s1174] ss:$16 sm:%s1175]
  %vm1177 = vcmask 1043458
  %v1178 = vsel %vm1177, %v1176, %v1173
  %s1179 = scalar_lea.vmem %s0, 266
  %s1180 = smov 48
  %v1181 = vld [vmem:[%s1179] ss:$16 sm:%s1180]
  %vm1182 = vcmask 1045508
  %v1183 = vsel %vm1182, %v1181, %v1178
  %s1184 = scalar_lea.vmem %s0, 266
  %s1185 = smov 192
  %v1186 = vld [vmem:[%s1184] ss:$16 sm:%s1185]
  %vm1187 = vcmask 1047558
  %v1188 = vsel %vm1187, %v1186, %v1183
  %1189 = vrot.lane.b32.xlu0 %v1188, 80
  %v1190 = vpop.permute.xlu0 %1189
  %vm1191 = vcmask 720512
  %s1192 = scalar_lea.vmem %s1, 16
  %1193 = vst.msk [vmem:[%s1192] sm:$0xff] %vm1191, %v1190
  %s1194 = scalar_lea.vmem %s0, 778
  %s1195 = smov 3
  %v1196 = vld [vmem:[%s1194] ss:$16 sm:%s1195]
  %s1197 = scalar_lea.vmem %s0, 778
  %s1198 = smov 12
  %v1199 = vld [vmem:[%s1197] ss:$16 sm:%s1198]
  %vm1200 = vcmask 1043458
  %v1201 = vsel %vm1200, %v1199, %v1196
  %s1202 = scalar_lea.vmem %s0, 778
  %s1203 = smov 48
  %v1204 = vld [vmem:[%s1202] ss:$16 sm:%s1203]
  %vm1205 = vcmask 1045508
  %v1206 = vsel %vm1205, %v1204, %v1201
  %s1207 = scalar_lea.vmem %s0, 778
  %s1208 = smov 192
  %v1209 = vld [vmem:[%s1207] ss:$16 sm:%s1208]
  %vm1210 = vcmask 1047558
  %v1211 = vsel %vm1210, %v1209, %v1206
  %1212 = vrot.lane.b32.xlu0 %v1211, 80
  %v1213 = vpop.permute.xlu0 %1212
  %vm1214 = vcmask 720512
  %s1215 = scalar_lea.vmem %s1, 48
  %1216 = vst.msk [vmem:[%s1215] sm:$0xff] %vm1214, %v1213
  %s1217 = scalar_lea.vmem %s0, 394
  %s1218 = smov 3
  %v1219 = vld [vmem:[%s1217] ss:$16 sm:%s1218]
  %s1220 = scalar_lea.vmem %s0, 394
  %s1221 = smov 12
  %v1222 = vld [vmem:[%s1220] ss:$16 sm:%s1221]
  %vm1223 = vcmask 1043458
  %v1224 = vsel %vm1223, %v1222, %v1219
  %s1225 = scalar_lea.vmem %s0, 394
  %s1226 = smov 48
  %v1227 = vld [vmem:[%s1225] ss:$16 sm:%s1226]
  %vm1228 = vcmask 1045508
  %v1229 = vsel %vm1228, %v1227, %v1224
  %s1230 = scalar_lea.vmem %s0, 394
  %s1231 = smov 192
  %v1232 = vld [vmem:[%s1230] ss:$16 sm:%s1231]
  %vm1233 = vcmask 1047558
  %v1234 = vsel %vm1233, %v1232, %v1229
  %1235 = vrot.lane.b32.xlu0 %v1234, 80
  %v1236 = vpop.permute.xlu0 %1235
  %vm1237 = vcmask 720512
  %s1238 = scalar_lea.vmem %s1, 24
  %1239 = vst.msk [vmem:[%s1238] sm:$0xff] %vm1237, %v1236
  %s1240 = scalar_lea.vmem %s0, 906
  %s1241 = smov 3
  %v1242 = vld [vmem:[%s1240] ss:$16 sm:%s1241]
  %s1243 = scalar_lea.vmem %s0, 906
  %s1244 = smov 12
  %v1245 = vld [vmem:[%s1243] ss:$16 sm:%s1244]
  %vm1246 = vcmask 1043458
  %v1247 = vsel %vm1246, %v1245, %v1242
  %s1248 = scalar_lea.vmem %s0, 906
  %s1249 = smov 48
  %v1250 = vld [vmem:[%s1248] ss:$16 sm:%s1249]
  %vm1251 = vcmask 1045508
  %v1252 = vsel %vm1251, %v1250, %v1247
  %s1253 = scalar_lea.vmem %s0, 906
  %s1254 = smov 192
  %v1255 = vld [vmem:[%s1253] ss:$16 sm:%s1254]
  %vm1256 = vcmask 1047558
  %v1257 = vsel %vm1256, %v1255, %v1252
  %1258 = vrot.lane.b32.xlu0 %v1257, 80
  %v1259 = vpop.permute.xlu0 %1258
  %vm1260 = vcmask 720512
  %s1261 = scalar_lea.vmem %s1, 56
  %1262 = vst.msk [vmem:[%s1261] sm:$0xff] %vm1260, %v1259
  %s1263 = scalar_lea.vmem %s0, 9
  %s1264 = smov 3
  %v1265 = vld [vmem:[%s1263] ss:$16 sm:%s1264]
  %s1266 = scalar_lea.vmem %s0, 9
  %s1267 = smov 12
  %v1268 = vld [vmem:[%s1266] ss:$16 sm:%s1267]
  %vm1269 = vcmask 1043458
  %v1270 = vsel %vm1269, %v1268, %v1265
  %s1271 = scalar_lea.vmem %s0, 9
  %s1272 = smov 48
  %v1273 = vld [vmem:[%s1271] ss:$16 sm:%s1272]
  %vm1274 = vcmask 1045508
  %v1275 = vsel %vm1274, %v1273, %v1270
  %s1276 = scalar_lea.vmem %s0, 9
  %s1277 = smov 192
  %v1278 = vld [vmem:[%s1276] ss:$16 sm:%s1277]
  %vm1279 = vcmask 1047558
  %v1280 = vsel %vm1279, %v1278, %v1275
  %1281 = vrot.lane.b32.xlu0 %v1280, 72
  %v1282 = vpop.permute.xlu0 %1281
  %vm1283 = vcmask 654912
  %1284 = vst.msk [vmem:[%s1] sm:$0xff] %vm1283, %v1282
  %s1285 = scalar_lea.vmem %s0, 521
  %s1286 = smov 3
  %v1287 = vld [vmem:[%s1285] ss:$16 sm:%s1286]
  %s1288 = scalar_lea.vmem %s0, 521
  %s1289 = smov 12
  %v1290 = vld [vmem:[%s1288] ss:$16 sm:%s1289]
  %vm1291 = vcmask 1043458
  %v1292 = vsel %vm1291, %v1290, %v1287
  %s1293 = scalar_lea.vmem %s0, 521
  %s1294 = smov 48
  %v1295 = vld [vmem:[%s1293] ss:$16 sm:%s1294]
  %vm1296 = vcmask 1045508
  %v1297 = vsel %vm1296, %v1295, %v1292
  %s1298 = scalar_lea.vmem %s0, 521
  %s1299 = smov 192
  %v1300 = vld [vmem:[%s1298] ss:$16 sm:%s1299]
  %vm1301 = vcmask 1047558
  %v1302 = vsel %vm1301, %v1300, %v1297
  %1303 = vrot.lane.b32.xlu0 %v1302, 72
  %v1304 = vpop.permute.xlu0 %1303
  %vm1305 = vcmask 654912
  %s1306 = scalar_lea.vmem %s1, 32
  %1307 = vst.msk [vmem:[%s1306] sm:$0xff] %vm1305, %v1304
  %s1308 = scalar_lea.vmem %s0, 137
  %s1309 = smov 3
  %v1310 = vld [vmem:[%s1308] ss:$16 sm:%s1309]
  %s1311 = scalar_lea.vmem %s0, 137
  %s1312 = smov 12
  %v1313 = vld [vmem:[%s1311] ss:$16 sm:%s1312]
  %vm1314 = vcmask 1043458
  %v1315 = vsel %vm1314, %v1313, %v1310
  %s1316 = scalar_lea.vmem %s0, 137
  %s1317 = smov 48
  %v1318 = vld [vmem:[%s1316] ss:$16 sm:%s1317]
  %vm1319 = vcmask 1045508
  %v1320 = vsel %vm1319, %v1318, %v1315
  %s1321 = scalar_lea.vmem %s0, 137
  %s1322 = smov 192
  %v1323 = vld [vmem:[%s1321] ss:$16 sm:%s1322]
  %vm1324 = vcmask 1047558
  %v1325 = vsel %vm1324, %v1323, %v1320
  %1326 = vrot.lane.b32.xlu0 %v1325, 72
  %v1327 = vpop.permute.xlu0 %1326
  %vm1328 = vcmask 654912
  %s1329 = scalar_lea.vmem %s1, 8
  %1330 = vst.msk [vmem:[%s1329] sm:$0xff] %vm1328, %v1327
  %s1331 = scalar_lea.vmem %s0, 649
  %s1332 = smov 3
  %v1333 = vld [vmem:[%s1331] ss:$16 sm:%s1332]
  %s1334 = scalar_lea.vmem %s0, 649
  %s1335 = smov 12
  %v1336 = vld [vmem:[%s1334] ss:$16 sm:%s1335]
  %vm1337 = vcmask 1043458
  %v1338 = vsel %vm1337, %v1336, %v1333
  %s1339 = scalar_lea.vmem %s0, 649
  %s1340 = smov 48
  %v1341 = vld [vmem:[%s1339] ss:$16 sm:%s1340]
  %vm1342 = vcmask 1045508
  %v1343 = vsel %vm1342, %v1341, %v1338
  %s1344 = scalar_lea.vmem %s0, 649
  %s1345 = smov 192
  %v1346 = vld [vmem:[%s1344] ss:$16 sm:%s1345]
  %vm1347 = vcmask 1047558
  %v1348 = vsel %vm1347, %v1346, %v1343
  %1349 = vrot.lane.b32.xlu0 %v1348, 72
  %v1350 = vpop.permute.xlu0 %1349
  %vm1351 = vcmask 654912
  %s1352 = scalar_lea.vmem %s1, 40
  %1353 = vst.msk [vmem:[%s1352] sm:$0xff] %vm1351, %v1350
  %s1354 = scalar_lea.vmem %s0, 265
  %s1355 = smov 3
  %v1356 = vld [vmem:[%s1354] ss:$16 sm:%s1355]
  %s1357 = scalar_lea.vmem %s0, 265
  %s1358 = smov 12
  %v1359 = vld [vmem:[%s1357] ss:$16 sm:%s1358]
  %vm1360 = vcmask 1043458
  %v1361 = vsel %vm1360, %v1359, %v1356
  %s1362 = scalar_lea.vmem %s0, 265
  %s1363 = smov 48
  %v1364 = vld [vmem:[%s1362] ss:$16 sm:%s1363]
  %vm1365 = vcmask 1045508
  %v1366 = vsel %vm1365, %v1364, %v1361
  %s1367 = scalar_lea.vmem %s0, 265
  %s1368 = smov 192
  %v1369 = vld [vmem:[%s1367] ss:$16 sm:%s1368]
  %vm1370 = vcmask 1047558
  %v1371 = vsel %vm1370, %v1369, %v1366
  %1372 = vrot.lane.b32.xlu0 %v1371, 72
  %v1373 = vpop.permute.xlu0 %1372
  %vm1374 = vcmask 654912
  %s1375 = scalar_lea.vmem %s1, 16
  %1376 = vst.msk [vmem:[%s1375] sm:$0xff] %vm1374, %v1373
  %s1377 = scalar_lea.vmem %s0, 777
  %s1378 = smov 3
  %v1379 = vld [vmem:[%s1377] ss:$16 sm:%s1378]
  %s1380 = scalar_lea.vmem %s0, 777
  %s1381 = smov 12
  %v1382 = vld [vmem:[%s1380] ss:$16 sm:%s1381]
  %vm1383 = vcmask 1043458
  %v1384 = vsel %vm1383, %v1382, %v1379
  %s1385 = scalar_lea.vmem %s0, 777
  %s1386 = smov 48
  %v1387 = vld [vmem:[%s1385] ss:$16 sm:%s1386]
  %vm1388 = vcmask 1045508
  %v1389 = vsel %vm1388, %v1387, %v1384
  %s1390 = scalar_lea.vmem %s0, 777
  %s1391 = smov 192
  %v1392 = vld [vmem:[%s1390] ss:$16 sm:%s1391]
  %vm1393 = vcmask 1047558
  %v1394 = vsel %vm1393, %v1392, %v1389
  %1395 = vrot.lane.b32.xlu0 %v1394, 72
  %v1396 = vpop.permute.xlu0 %1395
  %vm1397 = vcmask 654912
  %s1398 = scalar_lea.vmem %s1, 48
  %1399 = vst.msk [vmem:[%s1398] sm:$0xff] %vm1397, %v1396
  %s1400 = scalar_lea.vmem %s0, 393
  %s1401 = smov 3
  %v1402 = vld [vmem:[%s1400] ss:$16 sm:%s1401]
  %s1403 = scalar_lea.vmem %s0, 393
  %s1404 = smov 12
  %v1405 = vld [vmem:[%s1403] ss:$16 sm:%s1404]
  %vm1406 = vcmask 1043458
  %v1407 = vsel %vm1406, %v1405, %v1402
  %s1408 = scalar_lea.vmem %s0, 393
  %s1409 = smov 48
  %v1410 = vld [vmem:[%s1408] ss:$16 sm:%s1409]
  %vm1411 = vcmask 1045508
  %v1412 = vsel %vm1411, %v1410, %v1407
  %s1413 = scalar_lea.vmem %s0, 393
  %s1414 = smov 192
  %v1415 = vld [vmem:[%s1413] ss:$16 sm:%s1414]
  %vm1416 = vcmask 1047558
  %v1417 = vsel %vm1416, %v1415, %v1412
  %1418 = vrot.lane.b32.xlu0 %v1417, 72
  %v1419 = vpop.permute.xlu0 %1418
  %vm1420 = vcmask 654912
  %s1421 = scalar_lea.vmem %s1, 24
  %1422 = vst.msk [vmem:[%s1421] sm:$0xff] %vm1420, %v1419
  %s1423 = scalar_lea.vmem %s0, 905
  %s1424 = smov 3
  %v1425 = vld [vmem:[%s1423] ss:$16 sm:%s1424]
  %s1426 = scalar_lea.vmem %s0, 905
  %s1427 = smov 12
  %v1428 = vld [vmem:[%s1426] ss:$16 sm:%s1427]
  %vm1429 = vcmask 1043458
  %v1430 = vsel %vm1429, %v1428, %v1425
  %s1431 = scalar_lea.vmem %s0, 905
  %s1432 = smov 48
  %v1433 = vld [vmem:[%s1431] ss:$16 sm:%s1432]
  %vm1434 = vcmask 1045508
  %v1435 = vsel %vm1434, %v1433, %v1430
  %s1436 = scalar_lea.vmem %s0, 905
  %s1437 = smov 192
  %v1438 = vld [vmem:[%s1436] ss:$16 sm:%s1437]
  %vm1439 = vcmask 1047558
  %v1440 = vsel %vm1439, %v1438, %v1435
  %1441 = vrot.lane.b32.xlu0 %v1440, 72
  %v1442 = vpop.permute.xlu0 %1441
  %vm1443 = vcmask 654912
  %s1444 = scalar_lea.vmem %s1, 56
  %1445 = vst.msk [vmem:[%s1444] sm:$0xff] %vm1443, %v1442
  %s1446 = scalar_lea.vmem %s0, 8
  %s1447 = smov 3
  %v1448 = vld [vmem:[%s1446] ss:$16 sm:%s1447]
  %s1449 = scalar_lea.vmem %s0, 8
  %s1450 = smov 12
  %v1451 = vld [vmem:[%s1449] ss:$16 sm:%s1450]
  %vm1452 = vcmask 1043458
  %v1453 = vsel %vm1452, %v1451, %v1448
  %s1454 = scalar_lea.vmem %s0, 8
  %s1455 = smov 48
  %v1456 = vld [vmem:[%s1454] ss:$16 sm:%s1455]
  %vm1457 = vcmask 1045508
  %v1458 = vsel %vm1457, %v1456, %v1453
  %s1459 = scalar_lea.vmem %s0, 8
  %s1460 = smov 192
  %v1461 = vld [vmem:[%s1459] ss:$16 sm:%s1460]
  %vm1462 = vcmask 1047558
  %v1463 = vsel %vm1462, %v1461, %v1458
  %1464 = vrot.lane.b32.xlu0 %v1463, 64
  %v1465 = vpop.permute.xlu0 %1464
  %vm1466 = vcmask 589312
  %1467 = vst.msk [vmem:[%s1] sm:$0xff] %vm1466, %v1465
  %s1468 = scalar_lea.vmem %s0, 520
  %s1469 = smov 3
  %v1470 = vld [vmem:[%s1468] ss:$16 sm:%s1469]
  %s1471 = scalar_lea.vmem %s0, 520
  %s1472 = smov 12
  %v1473 = vld [vmem:[%s1471] ss:$16 sm:%s1472]
  %vm1474 = vcmask 1043458
  %v1475 = vsel %vm1474, %v1473, %v1470
  %s1476 = scalar_lea.vmem %s0, 520
  %s1477 = smov 48
  %v1478 = vld [vmem:[%s1476] ss:$16 sm:%s1477]
  %vm1479 = vcmask 1045508
  %v1480 = vsel %vm1479, %v1478, %v1475
  %s1481 = scalar_lea.vmem %s0, 520
  %s1482 = smov 192
  %v1483 = vld [vmem:[%s1481] ss:$16 sm:%s1482]
  %vm1484 = vcmask 1047558
  %v1485 = vsel %vm1484, %v1483, %v1480
  %1486 = vrot.lane.b32.xlu0 %v1485, 64
  %v1487 = vpop.permute.xlu0 %1486
  %vm1488 = vcmask 589312
  %s1489 = scalar_lea.vmem %s1, 32
  %1490 = vst.msk [vmem:[%s1489] sm:$0xff] %vm1488, %v1487
  %s1491 = scalar_lea.vmem %s0, 136
  %s1492 = smov 3
  %v1493 = vld [vmem:[%s1491] ss:$16 sm:%s1492]
  %s1494 = scalar_lea.vmem %s0, 136
  %s1495 = smov 12
  %v1496 = vld [vmem:[%s1494] ss:$16 sm:%s1495]
  %vm1497 = vcmask 1043458
  %v1498 = vsel %vm1497, %v1496, %v1493
  %s1499 = scalar_lea.vmem %s0, 136
  %s1500 = smov 48
  %v1501 = vld [vmem:[%s1499] ss:$16 sm:%s1500]
  %vm1502 = vcmask 1045508
  %v1503 = vsel %vm1502, %v1501, %v1498
  %s1504 = scalar_lea.vmem %s0, 136
  %s1505 = smov 192
  %v1506 = vld [vmem:[%s1504] ss:$16 sm:%s1505]
  %vm1507 = vcmask 1047558
  %v1508 = vsel %vm1507, %v1506, %v1503
  %1509 = vrot.lane.b32.xlu0 %v1508, 64
  %v1510 = vpop.permute.xlu0 %1509
  %vm1511 = vcmask 589312
  %s1512 = scalar_lea.vmem %s1, 8
  %1513 = vst.msk [vmem:[%s1512] sm:$0xff] %vm1511, %v1510
  %s1514 = scalar_lea.vmem %s0, 648
  %s1515 = smov 3
  %v1516 = vld [vmem:[%s1514] ss:$16 sm:%s1515]
  %s1517 = scalar_lea.vmem %s0, 648
  %s1518 = smov 12
  %v1519 = vld [vmem:[%s1517] ss:$16 sm:%s1518]
  %vm1520 = vcmask 1043458
  %v1521 = vsel %vm1520, %v1519, %v1516
  %s1522 = scalar_lea.vmem %s0, 648
  %s1523 = smov 48
  %v1524 = vld [vmem:[%s1522] ss:$16 sm:%s1523]
  %vm1525 = vcmask 1045508
  %v1526 = vsel %vm1525, %v1524, %v1521
  %s1527 = scalar_lea.vmem %s0, 648
  %s1528 = smov 192
  %v1529 = vld [vmem:[%s1527] ss:$16 sm:%s1528]
  %vm1530 = vcmask 1047558
  %v1531 = vsel %vm1530, %v1529, %v1526
  %1532 = vrot.lane.b32.xlu0 %v1531, 64
  %v1533 = vpop.permute.xlu0 %1532
  %vm1534 = vcmask 589312
  %s1535 = scalar_lea.vmem %s1, 40
  %1536 = vst.msk [vmem:[%s1535] sm:$0xff] %vm1534, %v1533
  %s1537 = scalar_lea.vmem %s0, 264
  %s1538 = smov 3
  %v1539 = vld [vmem:[%s1537] ss:$16 sm:%s1538]
  %s1540 = scalar_lea.vmem %s0, 264
  %s1541 = smov 12
  %v1542 = vld [vmem:[%s1540] ss:$16 sm:%s1541]
  %vm1543 = vcmask 1043458
  %v1544 = vsel %vm1543, %v1542, %v1539
  %s1545 = scalar_lea.vmem %s0, 264
  %s1546 = smov 48
  %v1547 = vld [vmem:[%s1545] ss:$16 sm:%s1546]
  %vm1548 = vcmask 1045508
  %v1549 = vsel %vm1548, %v1547, %v1544
  %s1550 = scalar_lea.vmem %s0, 264
  %s1551 = smov 192
  %v1552 = vld [vmem:[%s1550] ss:$16 sm:%s1551]
  %vm1553 = vcmask 1047558
  %v1554 = vsel %vm1553, %v1552, %v1549
  %1555 = vrot.lane.b32.xlu0 %v1554, 64
  %v1556 = vpop.permute.xlu0 %1555
  %vm1557 = vcmask 589312
  %s1558 = scalar_lea.vmem %s1, 16
  %1559 = vst.msk [vmem:[%s1558] sm:$0xff] %vm1557, %v1556
  %s1560 = scalar_lea.vmem %s0, 776
  %s1561 = smov 3
  %v1562 = vld [vmem:[%s1560] ss:$16 sm:%s1561]
  %s1563 = scalar_lea.vmem %s0, 776
  %s1564 = smov 12
  %v1565 = vld [vmem:[%s1563] ss:$16 sm:%s1564]
  %vm1566 = vcmask 1043458
  %v1567 = vsel %vm1566, %v1565, %v1562
  %s1568 = scalar_lea.vmem %s0, 776
  %s1569 = smov 48
  %v1570 = vld [vmem:[%s1568] ss:$16 sm:%s1569]
  %vm1571 = vcmask 1045508
  %v1572 = vsel %vm1571, %v1570, %v1567
  %s1573 = scalar_lea.vmem %s0, 776
  %s1574 = smov 192
  %v1575 = vld [vmem:[%s1573] ss:$16 sm:%s1574]
  %vm1576 = vcmask 1047558
  %v1577 = vsel %vm1576, %v1575, %v1572
  %1578 = vrot.lane.b32.xlu0 %v1577, 64
  %v1579 = vpop.permute.xlu0 %1578
  %vm1580 = vcmask 589312
  %s1581 = scalar_lea.vmem %s1, 48
  %1582 = vst.msk [vmem:[%s1581] sm:$0xff] %vm1580, %v1579
  %s1583 = scalar_lea.vmem %s0, 392
  %s1584 = smov 3
  %v1585 = vld [vmem:[%s1583] ss:$16 sm:%s1584]
  %s1586 = scalar_lea.vmem %s0, 392
  %s1587 = smov 12
  %v1588 = vld [vmem:[%s1586] ss:$16 sm:%s1587]
  %vm1589 = vcmask 1043458
  %v1590 = vsel %vm1589, %v1588, %v1585
  %s1591 = scalar_lea.vmem %s0, 392
  %s1592 = smov 48
  %v1593 = vld [vmem:[%s1591] ss:$16 sm:%s1592]
  %vm1594 = vcmask 1045508
  %v1595 = vsel %vm1594, %v1593, %v1590
  %s1596 = scalar_lea.vmem %s0, 392
  %s1597 = smov 192
  %v1598 = vld [vmem:[%s1596] ss:$16 sm:%s1597]
  %vm1599 = vcmask 1047558
  %v1600 = vsel %vm1599, %v1598, %v1595
  %1601 = vrot.lane.b32.xlu0 %v1600, 64
  %v1602 = vpop.permute.xlu0 %1601
  %vm1603 = vcmask 589312
  %s1604 = scalar_lea.vmem %s1, 24
  %1605 = vst.msk [vmem:[%s1604] sm:$0xff] %vm1603, %v1602
  %s1606 = scalar_lea.vmem %s0, 904
  %s1607 = smov 3
  %v1608 = vld [vmem:[%s1606] ss:$16 sm:%s1607]
  %s1609 = scalar_lea.vmem %s0, 904
  %s1610 = smov 12
  %v1611 = vld [vmem:[%s1609] ss:$16 sm:%s1610]
  %vm1612 = vcmask 1043458
  %v1613 = vsel %vm1612, %v1611, %v1608
  %s1614 = scalar_lea.vmem %s0, 904
  %s1615 = smov 48
  %v1616 = vld [vmem:[%s1614] ss:$16 sm:%s1615]
  %vm1617 = vcmask 1045508
  %v1618 = vsel %vm1617, %v1616, %v1613
  %s1619 = scalar_lea.vmem %s0, 904
  %s1620 = smov 192
  %v1621 = vld [vmem:[%s1619] ss:$16 sm:%s1620]
  %vm1622 = vcmask 1047558
  %v1623 = vsel %vm1622, %v1621, %v1618
  %1624 = vrot.lane.b32.xlu0 %v1623, 64
  %v1625 = vpop.permute.xlu0 %1624
  %vm1626 = vcmask 589312
  %s1627 = scalar_lea.vmem %s1, 56
  %1628 = vst.msk [vmem:[%s1627] sm:$0xff] %vm1626, %v1625
  %s1629 = scalar_lea.vmem %s0, 7
  %s1630 = smov 3
  %v1631 = vld [vmem:[%s1629] ss:$16 sm:%s1630]
  %s1632 = scalar_lea.vmem %s0, 7
  %s1633 = smov 12
  %v1634 = vld [vmem:[%s1632] ss:$16 sm:%s1633]
  %vm1635 = vcmask 1043458
  %v1636 = vsel %vm1635, %v1634, %v1631
  %s1637 = scalar_lea.vmem %s0, 7
  %s1638 = smov 48
  %v1639 = vld [vmem:[%s1637] ss:$16 sm:%s1638]
  %vm1640 = vcmask 1045508
  %v1641 = vsel %vm1640, %v1639, %v1636
  %s1642 = scalar_lea.vmem %s0, 7
  %s1643 = smov 192
  %v1644 = vld [vmem:[%s1642] ss:$16 sm:%s1643]
  %vm1645 = vcmask 1047558
  %v1646 = vsel %vm1645, %v1644, %v1641
  %1647 = vrot.lane.b32.xlu0 %v1646, 56
  %v1648 = vpop.permute.xlu0 %1647
  %vm1649 = vcmask 523712
  %1650 = vst.msk [vmem:[%s1] sm:$0xff] %vm1649, %v1648
  %s1651 = scalar_lea.vmem %s0, 519
  %s1652 = smov 3
  %v1653 = vld [vmem:[%s1651] ss:$16 sm:%s1652]
  %s1654 = scalar_lea.vmem %s0, 519
  %s1655 = smov 12
  %v1656 = vld [vmem:[%s1654] ss:$16 sm:%s1655]
  %vm1657 = vcmask 1043458
  %v1658 = vsel %vm1657, %v1656, %v1653
  %s1659 = scalar_lea.vmem %s0, 519
  %s1660 = smov 48
  %v1661 = vld [vmem:[%s1659] ss:$16 sm:%s1660]
  %vm1662 = vcmask 1045508
  %v1663 = vsel %vm1662, %v1661, %v1658
  %s1664 = scalar_lea.vmem %s0, 519
  %s1665 = smov 192
  %v1666 = vld [vmem:[%s1664] ss:$16 sm:%s1665]
  %vm1667 = vcmask 1047558
  %v1668 = vsel %vm1667, %v1666, %v1663
  %1669 = vrot.lane.b32.xlu0 %v1668, 56
  %v1670 = vpop.permute.xlu0 %1669
  %vm1671 = vcmask 523712
  %s1672 = scalar_lea.vmem %s1, 32
  %1673 = vst.msk [vmem:[%s1672] sm:$0xff] %vm1671, %v1670
  %s1674 = scalar_lea.vmem %s0, 135
  %s1675 = smov 3
  %v1676 = vld [vmem:[%s1674] ss:$16 sm:%s1675]
  %s1677 = scalar_lea.vmem %s0, 135
  %s1678 = smov 12
  %v1679 = vld [vmem:[%s1677] ss:$16 sm:%s1678]
  %vm1680 = vcmask 1043458
  %v1681 = vsel %vm1680, %v1679, %v1676
  %s1682 = scalar_lea.vmem %s0, 135
  %s1683 = smov 48
  %v1684 = vld [vmem:[%s1682] ss:$16 sm:%s1683]
  %vm1685 = vcmask 1045508
  %v1686 = vsel %vm1685, %v1684, %v1681
  %s1687 = scalar_lea.vmem %s0, 135
  %s1688 = smov 192
  %v1689 = vld [vmem:[%s1687] ss:$16 sm:%s1688]
  %vm1690 = vcmask 1047558
  %v1691 = vsel %vm1690, %v1689, %v1686
  %1692 = vrot.lane.b32.xlu0 %v1691, 56
  %v1693 = vpop.permute.xlu0 %1692
  %vm1694 = vcmask 523712
  %s1695 = scalar_lea.vmem %s1, 8
  %1696 = vst.msk [vmem:[%s1695] sm:$0xff] %vm1694, %v1693
  %s1697 = scalar_lea.vmem %s0, 647
  %s1698 = smov 3
  %v1699 = vld [vmem:[%s1697] ss:$16 sm:%s1698]
  %s1700 = scalar_lea.vmem %s0, 647
  %s1701 = smov 12
  %v1702 = vld [vmem:[%s1700] ss:$16 sm:%s1701]
  %vm1703 = vcmask 1043458
  %v1704 = vsel %vm1703, %v1702, %v1699
  %s1705 = scalar_lea.vmem %s0, 647
  %s1706 = smov 48
  %v1707 = vld [vmem:[%s1705] ss:$16 sm:%s1706]
  %vm1708 = vcmask 1045508
  %v1709 = vsel %vm1708, %v1707, %v1704
  %s1710 = scalar_lea.vmem %s0, 647
  %s1711 = smov 192
  %v1712 = vld [vmem:[%s1710] ss:$16 sm:%s1711]
  %vm1713 = vcmask 1047558
  %v1714 = vsel %vm1713, %v1712, %v1709
  %1715 = vrot.lane.b32.xlu0 %v1714, 56
  %v1716 = vpop.permute.xlu0 %1715
  %vm1717 = vcmask 523712
  %s1718 = scalar_lea.vmem %s1, 40
  %1719 = vst.msk [vmem:[%s1718] sm:$0xff] %vm1717, %v1716
  %s1720 = scalar_lea.vmem %s0, 263
  %s1721 = smov 3
  %v1722 = vld [vmem:[%s1720] ss:$16 sm:%s1721]
  %s1723 = scalar_lea.vmem %s0, 263
  %s1724 = smov 12
  %v1725 = vld [vmem:[%s1723] ss:$16 sm:%s1724]
  %vm1726 = vcmask 1043458
  %v1727 = vsel %vm1726, %v1725, %v1722
  %s1728 = scalar_lea.vmem %s0, 263
  %s1729 = smov 48
  %v1730 = vld [vmem:[%s1728] ss:$16 sm:%s1729]
  %vm1731 = vcmask 1045508
  %v1732 = vsel %vm1731, %v1730, %v1727
  %s1733 = scalar_lea.vmem %s0, 263
  %s1734 = smov 192
  %v1735 = vld [vmem:[%s1733] ss:$16 sm:%s1734]
  %vm1736 = vcmask 1047558
  %v1737 = vsel %vm1736, %v1735, %v1732
  %1738 = vrot.lane.b32.xlu0 %v1737, 56
  %v1739 = vpop.permute.xlu0 %1738
  %vm1740 = vcmask 523712
  %s1741 = scalar_lea.vmem %s1, 16
  %1742 = vst.msk [vmem:[%s1741] sm:$0xff] %vm1740, %v1739
  %s1743 = scalar_lea.vmem %s0, 775
  %s1744 = smov 3
  %v1745 = vld [vmem:[%s1743] ss:$16 sm:%s1744]
  %s1746 = scalar_lea.vmem %s0, 775
  %s1747 = smov 12
  %v1748 = vld [vmem:[%s1746] ss:$16 sm:%s1747]
  %vm1749 = vcmask 1043458
  %v1750 = vsel %vm1749, %v1748, %v1745
  %s1751 = scalar_lea.vmem %s0, 775
  %s1752 = smov 48
  %v1753 = vld [vmem:[%s1751] ss:$16 sm:%s1752]
  %vm1754 = vcmask 1045508
  %v1755 = vsel %vm1754, %v1753, %v1750
  %s1756 = scalar_lea.vmem %s0, 775
  %s1757 = smov 192
  %v1758 = vld [vmem:[%s1756] ss:$16 sm:%s1757]
  %vm1759 = vcmask 1047558
  %v1760 = vsel %vm1759, %v1758, %v1755
  %1761 = vrot.lane.b32.xlu0 %v1760, 56
  %v1762 = vpop.permute.xlu0 %1761
  %vm1763 = vcmask 523712
  %s1764 = scalar_lea.vmem %s1, 48
  %1765 = vst.msk [vmem:[%s1764] sm:$0xff] %vm1763, %v1762
  %s1766 = scalar_lea.vmem %s0, 391
  %s1767 = smov 3
  %v1768 = vld [vmem:[%s1766] ss:$16 sm:%s1767]
  %s1769 = scalar_lea.vmem %s0, 391
  %s1770 = smov 12
  %v1771 = vld [vmem:[%s1769] ss:$16 sm:%s1770]
  %vm1772 = vcmask 1043458
  %v1773 = vsel %vm1772, %v1771, %v1768
  %s1774 = scalar_lea.vmem %s0, 391
  %s1775 = smov 48
  %v1776 = vld [vmem:[%s1774] ss:$16 sm:%s1775]
  %vm1777 = vcmask 1045508
  %v1778 = vsel %vm1777, %v1776, %v1773
  %s1779 = scalar_lea.vmem %s0, 391
  %s1780 = smov 192
  %v1781 = vld [vmem:[%s1779] ss:$16 sm:%s1780]
  %vm1782 = vcmask 1047558
  %v1783 = vsel %vm1782, %v1781, %v1778
  %1784 = vrot.lane.b32.xlu0 %v1783, 56
  %v1785 = vpop.permute.xlu0 %1784
  %vm1786 = vcmask 523712
  %s1787 = scalar_lea.vmem %s1, 24
  %1788 = vst.msk [vmem:[%s1787] sm:$0xff] %vm1786, %v1785
  %s1789 = scalar_lea.vmem %s0, 903
  %s1790 = smov 3
  %v1791 = vld [vmem:[%s1789] ss:$16 sm:%s1790]
  %s1792 = scalar_lea.vmem %s0, 903
  %s1793 = smov 12
  %v1794 = vld [vmem:[%s1792] ss:$16 sm:%s1793]
  %vm1795 = vcmask 1043458
  %v1796 = vsel %vm1795, %v1794, %v1791
  %s1797 = scalar_lea.vmem %s0, 903
  %s1798 = smov 48
  %v1799 = vld [vmem:[%s1797] ss:$16 sm:%s1798]
  %vm1800 = vcmask 1045508
  %v1801 = vsel %vm1800, %v1799, %v1796
  %s1802 = scalar_lea.vmem %s0, 903
  %s1803 = smov 192
  %v1804 = vld [vmem:[%s1802] ss:$16 sm:%s1803]
  %vm1805 = vcmask 1047558
  %v1806 = vsel %vm1805, %v1804, %v1801
  %1807 = vrot.lane.b32.xlu0 %v1806, 56
  %v1808 = vpop.permute.xlu0 %1807
  %vm1809 = vcmask 523712
  %s1810 = scalar_lea.vmem %s1, 56
  %1811 = vst.msk [vmem:[%s1810] sm:$0xff] %vm1809, %v1808
  %s1812 = scalar_lea.vmem %s0, 6
  %s1813 = smov 3
  %v1814 = vld [vmem:[%s1812] ss:$16 sm:%s1813]
  %s1815 = scalar_lea.vmem %s0, 6
  %s1816 = smov 12
  %v1817 = vld [vmem:[%s1815] ss:$16 sm:%s1816]
  %vm1818 = vcmask 1043458
  %v1819 = vsel %vm1818, %v1817, %v1814
  %s1820 = scalar_lea.vmem %s0, 6
  %s1821 = smov 48
  %v1822 = vld [vmem:[%s1820] ss:$16 sm:%s1821]
  %vm1823 = vcmask 1045508
  %v1824 = vsel %vm1823, %v1822, %v1819
  %s1825 = scalar_lea.vmem %s0, 6
  %s1826 = smov 192
  %v1827 = vld [vmem:[%s1825] ss:$16 sm:%s1826]
  %vm1828 = vcmask 1047558
  %v1829 = vsel %vm1828, %v1827, %v1824
  %1830 = vrot.lane.b32.xlu0 %v1829, 48
  %v1831 = vpop.permute.xlu0 %1830
  %vm1832 = vcmask 458112
  %1833 = vst.msk [vmem:[%s1] sm:$0xff] %vm1832, %v1831
  %s1834 = scalar_lea.vmem %s0, 518
  %s1835 = smov 3
  %v1836 = vld [vmem:[%s1834] ss:$16 sm:%s1835]
  %s1837 = scalar_lea.vmem %s0, 518
  %s1838 = smov 12
  %v1839 = vld [vmem:[%s1837] ss:$16 sm:%s1838]
  %vm1840 = vcmask 1043458
  %v1841 = vsel %vm1840, %v1839, %v1836
  %s1842 = scalar_lea.vmem %s0, 518
  %s1843 = smov 48
  %v1844 = vld [vmem:[%s1842] ss:$16 sm:%s1843]
  %vm1845 = vcmask 1045508
  %v1846 = vsel %vm1845, %v1844, %v1841
  %s1847 = scalar_lea.vmem %s0, 518
  %s1848 = smov 192
  %v1849 = vld [vmem:[%s1847] ss:$16 sm:%s1848]
  %vm1850 = vcmask 1047558
  %v1851 = vsel %vm1850, %v1849, %v1846
  %1852 = vrot.lane.b32.xlu0 %v1851, 48
  %v1853 = vpop.permute.xlu0 %1852
  %vm1854 = vcmask 458112
  %s1855 = scalar_lea.vmem %s1, 32
  %1856 = vst.msk [vmem:[%s1855] sm:$0xff] %vm1854, %v1853
  %s1857 = scalar_lea.vmem %s0, 134
  %s1858 = smov 3
  %v1859 = vld [vmem:[%s1857] ss:$16 sm:%s1858]
  %s1860 = scalar_lea.vmem %s0, 134
  %s1861 = smov 12
  %v1862 = vld [vmem:[%s1860] ss:$16 sm:%s1861]
  %vm1863 = vcmask 1043458
  %v1864 = vsel %vm1863, %v1862, %v1859
  %s1865 = scalar_lea.vmem %s0, 134
  %s1866 = smov 48
  %v1867 = vld [vmem:[%s1865] ss:$16 sm:%s1866]
  %vm1868 = vcmask 1045508
  %v1869 = vsel %vm1868, %v1867, %v1864
  %s1870 = scalar_lea.vmem %s0, 134
  %s1871 = smov 192
  %v1872 = vld [vmem:[%s1870] ss:$16 sm:%s1871]
  %vm1873 = vcmask 1047558
  %v1874 = vsel %vm1873, %v1872, %v1869
  %1875 = vrot.lane.b32.xlu0 %v1874, 48
  %v1876 = vpop.permute.xlu0 %1875
  %vm1877 = vcmask 458112
  %s1878 = scalar_lea.vmem %s1, 8
  %1879 = vst.msk [vmem:[%s1878] sm:$0xff] %vm1877, %v1876
  %s1880 = scalar_lea.vmem %s0, 646
  %s1881 = smov 3
  %v1882 = vld [vmem:[%s1880] ss:$16 sm:%s1881]
  %s1883 = scalar_lea.vmem %s0, 646
  %s1884 = smov 12
  %v1885 = vld [vmem:[%s1883] ss:$16 sm:%s1884]
  %vm1886 = vcmask 1043458
  %v1887 = vsel %vm1886, %v1885, %v1882
  %s1888 = scalar_lea.vmem %s0, 646
  %s1889 = smov 48
  %v1890 = vld [vmem:[%s1888] ss:$16 sm:%s1889]
  %vm1891 = vcmask 1045508
  %v1892 = vsel %vm1891, %v1890, %v1887
  %s1893 = scalar_lea.vmem %s0, 646
  %s1894 = smov 192
  %v1895 = vld [vmem:[%s1893] ss:$16 sm:%s1894]
  %vm1896 = vcmask 1047558
  %v1897 = vsel %vm1896, %v1895, %v1892
  %1898 = vrot.lane.b32.xlu0 %v1897, 48
  %v1899 = vpop.permute.xlu0 %1898
  %vm1900 = vcmask 458112
  %s1901 = scalar_lea.vmem %s1, 40
  %1902 = vst.msk [vmem:[%s1901] sm:$0xff] %vm1900, %v1899
  %s1903 = scalar_lea.vmem %s0, 262
  %s1904 = smov 3
  %v1905 = vld [vmem:[%s1903] ss:$16 sm:%s1904]
  %s1906 = scalar_lea.vmem %s0, 262
  %s1907 = smov 12
  %v1908 = vld [vmem:[%s1906] ss:$16 sm:%s1907]
  %vm1909 = vcmask 1043458
  %v1910 = vsel %vm1909, %v1908, %v1905
  %s1911 = scalar_lea.vmem %s0, 262
  %s1912 = smov 48
  %v1913 = vld [vmem:[%s1911] ss:$16 sm:%s1912]
  %vm1914 = vcmask 1045508
  %v1915 = vsel %vm1914, %v1913, %v1910
  %s1916 = scalar_lea.vmem %s0, 262
  %s1917 = smov 192
  %v1918 = vld [vmem:[%s1916] ss:$16 sm:%s1917]
  %vm1919 = vcmask 1047558
  %v1920 = vsel %vm1919, %v1918, %v1915
  %1921 = vrot.lane.b32.xlu0 %v1920, 48
  %v1922 = vpop.permute.xlu0 %1921
  %vm1923 = vcmask 458112
  %s1924 = scalar_lea.vmem %s1, 16
  %1925 = vst.msk [vmem:[%s1924] sm:$0xff] %vm1923, %v1922
  %s1926 = scalar_lea.vmem %s0, 774
  %s1927 = smov 3
  %v1928 = vld [vmem:[%s1926] ss:$16 sm:%s1927]
  %s1929 = scalar_lea.vmem %s0, 774
  %s1930 = smov 12
  %v1931 = vld [vmem:[%s1929] ss:$16 sm:%s1930]
  %vm1932 = vcmask 1043458
  %v1933 = vsel %vm1932, %v1931, %v1928
  %s1934 = scalar_lea.vmem %s0, 774
  %s1935 = smov 48
  %v1936 = vld [vmem:[%s1934] ss:$16 sm:%s1935]
  %vm1937 = vcmask 1045508
  %v1938 = vsel %vm1937, %v1936, %v1933
  %s1939 = scalar_lea.vmem %s0, 774
  %s1940 = smov 192
  %v1941 = vld [vmem:[%s1939] ss:$16 sm:%s1940]
  %vm1942 = vcmask 1047558
  %v1943 = vsel %vm1942, %v1941, %v1938
  %1944 = vrot.lane.b32.xlu0 %v1943, 48
  %v1945 = vpop.permute.xlu0 %1944
  %vm1946 = vcmask 458112
  %s1947 = scalar_lea.vmem %s1, 48
  %1948 = vst.msk [vmem:[%s1947] sm:$0xff] %vm1946, %v1945
  %s1949 = scalar_lea.vmem %s0, 390
  %s1950 = smov 3
  %v1951 = vld [vmem:[%s1949] ss:$16 sm:%s1950]
  %s1952 = scalar_lea.vmem %s0, 390
  %s1953 = smov 12
  %v1954 = vld [vmem:[%s1952] ss:$16 sm:%s1953]
  %vm1955 = vcmask 1043458
  %v1956 = vsel %vm1955, %v1954, %v1951
  %s1957 = scalar_lea.vmem %s0, 390
  %s1958 = smov 48
  %v1959 = vld [vmem:[%s1957] ss:$16 sm:%s1958]
  %vm1960 = vcmask 1045508
  %v1961 = vsel %vm1960, %v1959, %v1956
  %s1962 = scalar_lea.vmem %s0, 390
  %s1963 = smov 192
  %v1964 = vld [vmem:[%s1962] ss:$16 sm:%s1963]
  %vm1965 = vcmask 1047558
  %v1966 = vsel %vm1965, %v1964, %v1961
  %1967 = vrot.lane.b32.xlu0 %v1966, 48
  %v1968 = vpop.permute.xlu0 %1967
  %vm1969 = vcmask 458112
  %s1970 = scalar_lea.vmem %s1, 24
  %1971 = vst.msk [vmem:[%s1970] sm:$0xff] %vm1969, %v1968
  %s1972 = scalar_lea.vmem %s0, 902
  %s1973 = smov 3
  %v1974 = vld [vmem:[%s1972] ss:$16 sm:%s1973]
  %s1975 = scalar_lea.vmem %s0, 902
  %s1976 = smov 12
  %v1977 = vld [vmem:[%s1975] ss:$16 sm:%s1976]
  %vm1978 = vcmask 1043458
  %v1979 = vsel %vm1978, %v1977, %v1974
  %s1980 = scalar_lea.vmem %s0, 902
  %s1981 = smov 48
  %v1982 = vld [vmem:[%s1980] ss:$16 sm:%s1981]
  %vm1983 = vcmask 1045508
  %v1984 = vsel %vm1983, %v1982, %v1979
  %s1985 = scalar_lea.vmem %s0, 902
  %s1986 = smov 192
  %v1987 = vld [vmem:[%s1985] ss:$16 sm:%s1986]
  %vm1988 = vcmask 1047558
  %v1989 = vsel %vm1988, %v1987, %v1984
  %1990 = vrot.lane.b32.xlu0 %v1989, 48
  %v1991 = vpop.permute.xlu0 %1990
  %vm1992 = vcmask 458112
  %s1993 = scalar_lea.vmem %s1, 56
  %1994 = vst.msk [vmem:[%s1993] sm:$0xff] %vm1992, %v1991
  %s1995 = scalar_lea.vmem %s0, 5
  %s1996 = smov 3
  %v1997 = vld [vmem:[%s1995] ss:$16 sm:%s1996]
  %s1998 = scalar_lea.vmem %s0, 5
  %s1999 = smov 12
  %v2000 = vld [vmem:[%s1998] ss:$16 sm:%s1999]
  %vm2001 = vcmask 1043458
  %v2002 = vsel %vm2001, %v2000, %v1997
  %s2003 = scalar_lea.vmem %s0, 5
  %s2004 = smov 48
  %v2005 = vld [vmem:[%s2003] ss:$16 sm:%s2004]
  %vm2006 = vcmask 1045508
  %v2007 = vsel %vm2006, %v2005, %v2002
  %s2008 = scalar_lea.vmem %s0, 5
  %s2009 = smov 192
  %v2010 = vld [vmem:[%s2008] ss:$16 sm:%s2009]
  %vm2011 = vcmask 1047558
  %v2012 = vsel %vm2011, %v2010, %v2007
  %2013 = vrot.lane.b32.xlu0 %v2012, 40
  %v2014 = vpop.permute.xlu0 %2013
  %vm2015 = vcmask 392512
  %2016 = vst.msk [vmem:[%s1] sm:$0xff] %vm2015, %v2014
  %s2017 = scalar_lea.vmem %s0, 517
  %s2018 = smov 3
  %v2019 = vld [vmem:[%s2017] ss:$16 sm:%s2018]
  %s2020 = scalar_lea.vmem %s0, 517
  %s2021 = smov 12
  %v2022 = vld [vmem:[%s2020] ss:$16 sm:%s2021]
  %vm2023 = vcmask 1043458
  %v2024 = vsel %vm2023, %v2022, %v2019
  %s2025 = scalar_lea.vmem %s0, 517
  %s2026 = smov 48
  %v2027 = vld [vmem:[%s2025] ss:$16 sm:%s2026]
  %vm2028 = vcmask 1045508
  %v2029 = vsel %vm2028, %v2027, %v2024
  %s2030 = scalar_lea.vmem %s0, 517
  %s2031 = smov 192
  %v2032 = vld [vmem:[%s2030] ss:$16 sm:%s2031]
  %vm2033 = vcmask 1047558
  %v2034 = vsel %vm2033, %v2032, %v2029
  %2035 = vrot.lane.b32.xlu0 %v2034, 40
  %v2036 = vpop.permute.xlu0 %2035
  %vm2037 = vcmask 392512
  %s2038 = scalar_lea.vmem %s1, 32
  %2039 = vst.msk [vmem:[%s2038] sm:$0xff] %vm2037, %v2036
  %s2040 = scalar_lea.vmem %s0, 133
  %s2041 = smov 3
  %v2042 = vld [vmem:[%s2040] ss:$16 sm:%s2041]
  %s2043 = scalar_lea.vmem %s0, 133
  %s2044 = smov 12
  %v2045 = vld [vmem:[%s2043] ss:$16 sm:%s2044]
  %vm2046 = vcmask 1043458
  %v2047 = vsel %vm2046, %v2045, %v2042
  %s2048 = scalar_lea.vmem %s0, 133
  %s2049 = smov 48
  %v2050 = vld [vmem:[%s2048] ss:$16 sm:%s2049]
  %vm2051 = vcmask 1045508
  %v2052 = vsel %vm2051, %v2050, %v2047
  %s2053 = scalar_lea.vmem %s0, 133
  %s2054 = smov 192
  %v2055 = vld [vmem:[%s2053] ss:$16 sm:%s2054]
  %vm2056 = vcmask 1047558
  %v2057 = vsel %vm2056, %v2055, %v2052
  %2058 = vrot.lane.b32.xlu0 %v2057, 40
  %v2059 = vpop.permute.xlu0 %2058
  %vm2060 = vcmask 392512
  %s2061 = scalar_lea.vmem %s1, 8
  %2062 = vst.msk [vmem:[%s2061] sm:$0xff] %vm2060, %v2059
  %s2063 = scalar_lea.vmem %s0, 645
  %s2064 = smov 3
  %v2065 = vld [vmem:[%s2063] ss:$16 sm:%s2064]
  %s2066 = scalar_lea.vmem %s0, 645
  %s2067 = smov 12
  %v2068 = vld [vmem:[%s2066] ss:$16 sm:%s2067]
  %vm2069 = vcmask 1043458
  %v2070 = vsel %vm2069, %v2068, %v2065
  %s2071 = scalar_lea.vmem %s0, 645
  %s2072 = smov 48
  %v2073 = vld [vmem:[%s2071] ss:$16 sm:%s2072]
  %vm2074 = vcmask 1045508
  %v2075 = vsel %vm2074, %v2073, %v2070
  %s2076 = scalar_lea.vmem %s0, 645
  %s2077 = smov 192
  %v2078 = vld [vmem:[%s2076] ss:$16 sm:%s2077]
  %vm2079 = vcmask 1047558
  %v2080 = vsel %vm2079, %v2078, %v2075
  %2081 = vrot.lane.b32.xlu0 %v2080, 40
  %v2082 = vpop.permute.xlu0 %2081
  %vm2083 = vcmask 392512
  %s2084 = scalar_lea.vmem %s1, 40
  %2085 = vst.msk [vmem:[%s2084] sm:$0xff] %vm2083, %v2082
  %s2086 = scalar_lea.vmem %s0, 261
  %s2087 = smov 3
  %v2088 = vld [vmem:[%s2086] ss:$16 sm:%s2087]
  %s2089 = scalar_lea.vmem %s0, 261
  %s2090 = smov 12
  %v2091 = vld [vmem:[%s2089] ss:$16 sm:%s2090]
  %vm2092 = vcmask 1043458
  %v2093 = vsel %vm2092, %v2091, %v2088
  %s2094 = scalar_lea.vmem %s0, 261
  %s2095 = smov 48
  %v2096 = vld [vmem:[%s2094] ss:$16 sm:%s2095]
  %vm2097 = vcmask 1045508
  %v2098 = vsel %vm2097, %v2096, %v2093
  %s2099 = scalar_lea.vmem %s0, 261
  %s2100 = smov 192
  %v2101 = vld [vmem:[%s2099] ss:$16 sm:%s2100]
  %vm2102 = vcmask 1047558
  %v2103 = vsel %vm2102, %v2101, %v2098
  %2104 = vrot.lane.b32.xlu0 %v2103, 40
  %v2105 = vpop.permute.xlu0 %2104
  %vm2106 = vcmask 392512
  %s2107 = scalar_lea.vmem %s1, 16
  %2108 = vst.msk [vmem:[%s2107] sm:$0xff] %vm2106, %v2105
  %s2109 = scalar_lea.vmem %s0, 773
  %s2110 = smov 3
  %v2111 = vld [vmem:[%s2109] ss:$16 sm:%s2110]
  %s2112 = scalar_lea.vmem %s0, 773
  %s2113 = smov 12
  %v2114 = vld [vmem:[%s2112] ss:$16 sm:%s2113]
  %vm2115 = vcmask 1043458
  %v2116 = vsel %vm2115, %v2114, %v2111
  %s2117 = scalar_lea.vmem %s0, 773
  %s2118 = smov 48
  %v2119 = vld [vmem:[%s2117] ss:$16 sm:%s2118]
  %vm2120 = vcmask 1045508
  %v2121 = vsel %vm2120, %v2119, %v2116
  %s2122 = scalar_lea.vmem %s0, 773
  %s2123 = smov 192
  %v2124 = vld [vmem:[%s2122] ss:$16 sm:%s2123]
  %vm2125 = vcmask 1047558
  %v2126 = vsel %vm2125, %v2124, %v2121
  %2127 = vrot.lane.b32.xlu0 %v2126, 40
  %v2128 = vpop.permute.xlu0 %2127
  %vm2129 = vcmask 392512
  %s2130 = scalar_lea.vmem %s1, 48
  %2131 = vst.msk [vmem:[%s2130] sm:$0xff] %vm2129, %v2128
  %s2132 = scalar_lea.vmem %s0, 389
  %s2133 = smov 3
  %v2134 = vld [vmem:[%s2132] ss:$16 sm:%s2133]
  %s2135 = scalar_lea.vmem %s0, 389
  %s2136 = smov 12
  %v2137 = vld [vmem:[%s2135] ss:$16 sm:%s2136]
  %vm2138 = vcmask 1043458
  %v2139 = vsel %vm2138, %v2137, %v2134
  %s2140 = scalar_lea.vmem %s0, 389
  %s2141 = smov 48
  %v2142 = vld [vmem:[%s2140] ss:$16 sm:%s2141]
  %vm2143 = vcmask 1045508
  %v2144 = vsel %vm2143, %v2142, %v2139
  %s2145 = scalar_lea.vmem %s0, 389
  %s2146 = smov 192
  %v2147 = vld [vmem:[%s2145] ss:$16 sm:%s2146]
  %vm2148 = vcmask 1047558
  %v2149 = vsel %vm2148, %v2147, %v2144
  %2150 = vrot.lane.b32.xlu0 %v2149, 40
  %v2151 = vpop.permute.xlu0 %2150
  %vm2152 = vcmask 392512
  %s2153 = scalar_lea.vmem %s1, 24
  %2154 = vst.msk [vmem:[%s2153] sm:$0xff] %vm2152, %v2151
  %s2155 = scalar_lea.vmem %s0, 901
  %s2156 = smov 3
  %v2157 = vld [vmem:[%s2155] ss:$16 sm:%s2156]
  %s2158 = scalar_lea.vmem %s0, 901
  %s2159 = smov 12
  %v2160 = vld [vmem:[%s2158] ss:$16 sm:%s2159]
  %vm2161 = vcmask 1043458
  %v2162 = vsel %vm2161, %v2160, %v2157
  %s2163 = scalar_lea.vmem %s0, 901
  %s2164 = smov 48
  %v2165 = vld [vmem:[%s2163] ss:$16 sm:%s2164]
  %vm2166 = vcmask 1045508
  %v2167 = vsel %vm2166, %v2165, %v2162
  %s2168 = scalar_lea.vmem %s0, 901
  %s2169 = smov 192
  %v2170 = vld [vmem:[%s2168] ss:$16 sm:%s2169]
  %vm2171 = vcmask 1047558
  %v2172 = vsel %vm2171, %v2170, %v2167
  %2173 = vrot.lane.b32.xlu0 %v2172, 40
  %v2174 = vpop.permute.xlu0 %2173
  %vm2175 = vcmask 392512
  %s2176 = scalar_lea.vmem %s1, 56
  %2177 = vst.msk [vmem:[%s2176] sm:$0xff] %vm2175, %v2174
  %s2178 = scalar_lea.vmem %s0, 4
  %s2179 = smov 3
  %v2180 = vld [vmem:[%s2178] ss:$16 sm:%s2179]
  %s2181 = scalar_lea.vmem %s0, 4
  %s2182 = smov 12
  %v2183 = vld [vmem:[%s2181] ss:$16 sm:%s2182]
  %vm2184 = vcmask 1043458
  %v2185 = vsel %vm2184, %v2183, %v2180
  %s2186 = scalar_lea.vmem %s0, 4
  %s2187 = smov 48
  %v2188 = vld [vmem:[%s2186] ss:$16 sm:%s2187]
  %vm2189 = vcmask 1045508
  %v2190 = vsel %vm2189, %v2188, %v2185
  %s2191 = scalar_lea.vmem %s0, 4
  %s2192 = smov 192
  %v2193 = vld [vmem:[%s2191] ss:$16 sm:%s2192]
  %vm2194 = vcmask 1047558
  %v2195 = vsel %vm2194, %v2193, %v2190
  %2196 = vrot.lane.b32.xlu0 %v2195, 32
  %v2197 = vpop.permute.xlu0 %2196
  %vm2198 = vcmask 326912
  %2199 = vst.msk [vmem:[%s1] sm:$0xff] %vm2198, %v2197
  %s2200 = scalar_lea.vmem %s0, 516
  %s2201 = smov 3
  %v2202 = vld [vmem:[%s2200] ss:$16 sm:%s2201]
  %s2203 = scalar_lea.vmem %s0, 516
  %s2204 = smov 12
  %v2205 = vld [vmem:[%s2203] ss:$16 sm:%s2204]
  %vm2206 = vcmask 1043458
  %v2207 = vsel %vm2206, %v2205, %v2202
  %s2208 = scalar_lea.vmem %s0, 516
  %s2209 = smov 48
  %v2210 = vld [vmem:[%s2208] ss:$16 sm:%s2209]
  %vm2211 = vcmask 1045508
  %v2212 = vsel %vm2211, %v2210, %v2207
  %s2213 = scalar_lea.vmem %s0, 516
  %s2214 = smov 192
  %v2215 = vld [vmem:[%s2213] ss:$16 sm:%s2214]
  %vm2216 = vcmask 1047558
  %v2217 = vsel %vm2216, %v2215, %v2212
  %2218 = vrot.lane.b32.xlu0 %v2217, 32
  %v2219 = vpop.permute.xlu0 %2218
  %vm2220 = vcmask 326912
  %s2221 = scalar_lea.vmem %s1, 32
  %2222 = vst.msk [vmem:[%s2221] sm:$0xff] %vm2220, %v2219
  %s2223 = scalar_lea.vmem %s0, 132
  %s2224 = smov 3
  %v2225 = vld [vmem:[%s2223] ss:$16 sm:%s2224]
  %s2226 = scalar_lea.vmem %s0, 132
  %s2227 = smov 12
  %v2228 = vld [vmem:[%s2226] ss:$16 sm:%s2227]
  %vm2229 = vcmask 1043458
  %v2230 = vsel %vm2229, %v2228, %v2225
  %s2231 = scalar_lea.vmem %s0, 132
  %s2232 = smov 48
  %v2233 = vld [vmem:[%s2231] ss:$16 sm:%s2232]
  %vm2234 = vcmask 1045508
  %v2235 = vsel %vm2234, %v2233, %v2230
  %s2236 = scalar_lea.vmem %s0, 132
  %s2237 = smov 192
  %v2238 = vld [vmem:[%s2236] ss:$16 sm:%s2237]
  %vm2239 = vcmask 1047558
  %v2240 = vsel %vm2239, %v2238, %v2235
  %2241 = vrot.lane.b32.xlu0 %v2240, 32
  %v2242 = vpop.permute.xlu0 %2241
  %vm2243 = vcmask 326912
  %s2244 = scalar_lea.vmem %s1, 8
  %2245 = vst.msk [vmem:[%s2244] sm:$0xff] %vm2243, %v2242
  %s2246 = scalar_lea.vmem %s0, 644
  %s2247 = smov 3
  %v2248 = vld [vmem:[%s2246] ss:$16 sm:%s2247]
  %s2249 = scalar_lea.vmem %s0, 644
  %s2250 = smov 12
  %v2251 = vld [vmem:[%s2249] ss:$16 sm:%s2250]
  %vm2252 = vcmask 1043458
  %v2253 = vsel %vm2252, %v2251, %v2248
  %s2254 = scalar_lea.vmem %s0, 644
  %s2255 = smov 48
  %v2256 = vld [vmem:[%s2254] ss:$16 sm:%s2255]
  %vm2257 = vcmask 1045508
  %v2258 = vsel %vm2257, %v2256, %v2253
  %s2259 = scalar_lea.vmem %s0, 644
  %s2260 = smov 192
  %v2261 = vld [vmem:[%s2259] ss:$16 sm:%s2260]
  %vm2262 = vcmask 1047558
  %v2263 = vsel %vm2262, %v2261, %v2258
  %2264 = vrot.lane.b32.xlu0 %v2263, 32
  %v2265 = vpop.permute.xlu0 %2264
  %vm2266 = vcmask 326912
  %s2267 = scalar_lea.vmem %s1, 40
  %2268 = vst.msk [vmem:[%s2267] sm:$0xff] %vm2266, %v2265
  %s2269 = scalar_lea.vmem %s0, 260
  %s2270 = smov 3
  %v2271 = vld [vmem:[%s2269] ss:$16 sm:%s2270]
  %s2272 = scalar_lea.vmem %s0, 260
  %s2273 = smov 12
  %v2274 = vld [vmem:[%s2272] ss:$16 sm:%s2273]
  %vm2275 = vcmask 1043458
  %v2276 = vsel %vm2275, %v2274, %v2271
  %s2277 = scalar_lea.vmem %s0, 260
  %s2278 = smov 48
  %v2279 = vld [vmem:[%s2277] ss:$16 sm:%s2278]
  %vm2280 = vcmask 1045508
  %v2281 = vsel %vm2280, %v2279, %v2276
  %s2282 = scalar_lea.vmem %s0, 260
  %s2283 = smov 192
  %v2284 = vld [vmem:[%s2282] ss:$16 sm:%s2283]
  %vm2285 = vcmask 1047558
  %v2286 = vsel %vm2285, %v2284, %v2281
  %2287 = vrot.lane.b32.xlu0 %v2286, 32
  %v2288 = vpop.permute.xlu0 %2287
  %vm2289 = vcmask 326912
  %s2290 = scalar_lea.vmem %s1, 16
  %2291 = vst.msk [vmem:[%s2290] sm:$0xff] %vm2289, %v2288
  %s2292 = scalar_lea.vmem %s0, 772
  %s2293 = smov 3
  %v2294 = vld [vmem:[%s2292] ss:$16 sm:%s2293]
  %s2295 = scalar_lea.vmem %s0, 772
  %s2296 = smov 12
  %v2297 = vld [vmem:[%s2295] ss:$16 sm:%s2296]
  %vm2298 = vcmask 1043458
  %v2299 = vsel %vm2298, %v2297, %v2294
  %s2300 = scalar_lea.vmem %s0, 772
  %s2301 = smov 48
  %v2302 = vld [vmem:[%s2300] ss:$16 sm:%s2301]
  %vm2303 = vcmask 1045508
  %v2304 = vsel %vm2303, %v2302, %v2299
  %s2305 = scalar_lea.vmem %s0, 772
  %s2306 = smov 192
  %v2307 = vld [vmem:[%s2305] ss:$16 sm:%s2306]
  %vm2308 = vcmask 1047558
  %v2309 = vsel %vm2308, %v2307, %v2304
  %2310 = vrot.lane.b32.xlu0 %v2309, 32
  %v2311 = vpop.permute.xlu0 %2310
  %vm2312 = vcmask 326912
  %s2313 = scalar_lea.vmem %s1, 48
  %2314 = vst.msk [vmem:[%s2313] sm:$0xff] %vm2312, %v2311
  %s2315 = scalar_lea.vmem %s0, 388
  %s2316 = smov 3
  %v2317 = vld [vmem:[%s2315] ss:$16 sm:%s2316]
  %s2318 = scalar_lea.vmem %s0, 388
  %s2319 = smov 12
  %v2320 = vld [vmem:[%s2318] ss:$16 sm:%s2319]
  %vm2321 = vcmask 1043458
  %v2322 = vsel %vm2321, %v2320, %v2317
  %s2323 = scalar_lea.vmem %s0, 388
  %s2324 = smov 48
  %v2325 = vld [vmem:[%s2323] ss:$16 sm:%s2324]
  %vm2326 = vcmask 1045508
  %v2327 = vsel %vm2326, %v2325, %v2322
  %s2328 = scalar_lea.vmem %s0, 388
  %s2329 = smov 192
  %v2330 = vld [vmem:[%s2328] ss:$16 sm:%s2329]
  %vm2331 = vcmask 1047558
  %v2332 = vsel %vm2331, %v2330, %v2327
  %2333 = vrot.lane.b32.xlu0 %v2332, 32
  %v2334 = vpop.permute.xlu0 %2333
  %vm2335 = vcmask 326912
  %s2336 = scalar_lea.vmem %s1, 24
  %2337 = vst.msk [vmem:[%s2336] sm:$0xff] %vm2335, %v2334
  %s2338 = scalar_lea.vmem %s0, 900
  %s2339 = smov 3
  %v2340 = vld [vmem:[%s2338] ss:$16 sm:%s2339]
  %s2341 = scalar_lea.vmem %s0, 900
  %s2342 = smov 12
  %v2343 = vld [vmem:[%s2341] ss:$16 sm:%s2342]
  %vm2344 = vcmask 1043458
  %v2345 = vsel %vm2344, %v2343, %v2340
  %s2346 = scalar_lea.vmem %s0, 900
  %s2347 = smov 48
  %v2348 = vld [vmem:[%s2346] ss:$16 sm:%s2347]
  %vm2349 = vcmask 1045508
  %v2350 = vsel %vm2349, %v2348, %v2345
  %s2351 = scalar_lea.vmem %s0, 900
  %s2352 = smov 192
  %v2353 = vld [vmem:[%s2351] ss:$16 sm:%s2352]
  %vm2354 = vcmask 1047558
  %v2355 = vsel %vm2354, %v2353, %v2350
  %2356 = vrot.lane.b32.xlu0 %v2355, 32
  %v2357 = vpop.permute.xlu0 %2356
  %vm2358 = vcmask 326912
  %s2359 = scalar_lea.vmem %s1, 56
  %2360 = vst.msk [vmem:[%s2359] sm:$0xff] %vm2358, %v2357
  %s2361 = scalar_lea.vmem %s0, 3
  %s2362 = smov 3
  %v2363 = vld [vmem:[%s2361] ss:$16 sm:%s2362]
  %s2364 = scalar_lea.vmem %s0, 3
  %s2365 = smov 12
  %v2366 = vld [vmem:[%s2364] ss:$16 sm:%s2365]
  %vm2367 = vcmask 1043458
  %v2368 = vsel %vm2367, %v2366, %v2363
  %s2369 = scalar_lea.vmem %s0, 3
  %s2370 = smov 48
  %v2371 = vld [vmem:[%s2369] ss:$16 sm:%s2370]
  %vm2372 = vcmask 1045508
  %v2373 = vsel %vm2372, %v2371, %v2368
  %s2374 = scalar_lea.vmem %s0, 3
  %s2375 = smov 192
  %v2376 = vld [vmem:[%s2374] ss:$16 sm:%s2375]
  %vm2377 = vcmask 1047558
  %v2378 = vsel %vm2377, %v2376, %v2373
  %2379 = vrot.lane.b32.xlu0 %v2378, 24
  %v2380 = vpop.permute.xlu0 %2379
  %vm2381 = vcmask 261312
  %2382 = vst.msk [vmem:[%s1] sm:$0xff] %vm2381, %v2380
  %s2383 = scalar_lea.vmem %s0, 515
  %s2384 = smov 3
  %v2385 = vld [vmem:[%s2383] ss:$16 sm:%s2384]
  %s2386 = scalar_lea.vmem %s0, 515
  %s2387 = smov 12
  %v2388 = vld [vmem:[%s2386] ss:$16 sm:%s2387]
  %vm2389 = vcmask 1043458
  %v2390 = vsel %vm2389, %v2388, %v2385
  %s2391 = scalar_lea.vmem %s0, 515
  %s2392 = smov 48
  %v2393 = vld [vmem:[%s2391] ss:$16 sm:%s2392]
  %vm2394 = vcmask 1045508
  %v2395 = vsel %vm2394, %v2393, %v2390
  %s2396 = scalar_lea.vmem %s0, 515
  %s2397 = smov 192
  %v2398 = vld [vmem:[%s2396] ss:$16 sm:%s2397]
  %vm2399 = vcmask 1047558
  %v2400 = vsel %vm2399, %v2398, %v2395
  %2401 = vrot.lane.b32.xlu0 %v2400, 24
  %v2402 = vpop.permute.xlu0 %2401
  %vm2403 = vcmask 261312
  %s2404 = scalar_lea.vmem %s1, 32
  %2405 = vst.msk [vmem:[%s2404] sm:$0xff] %vm2403, %v2402
  %s2406 = scalar_lea.vmem %s0, 131
  %s2407 = smov 3
  %v2408 = vld [vmem:[%s2406] ss:$16 sm:%s2407]
  %s2409 = scalar_lea.vmem %s0, 131
  %s2410 = smov 12
  %v2411 = vld [vmem:[%s2409] ss:$16 sm:%s2410]
  %vm2412 = vcmask 1043458
  %v2413 = vsel %vm2412, %v2411, %v2408
  %s2414 = scalar_lea.vmem %s0, 131
  %s2415 = smov 48
  %v2416 = vld [vmem:[%s2414] ss:$16 sm:%s2415]
  %vm2417 = vcmask 1045508
  %v2418 = vsel %vm2417, %v2416, %v2413
  %s2419 = scalar_lea.vmem %s0, 131
  %s2420 = smov 192
  %v2421 = vld [vmem:[%s2419] ss:$16 sm:%s2420]
  %vm2422 = vcmask 1047558
  %v2423 = vsel %vm2422, %v2421, %v2418
  %2424 = vrot.lane.b32.xlu0 %v2423, 24
  %v2425 = vpop.permute.xlu0 %2424
  %vm2426 = vcmask 261312
  %s2427 = scalar_lea.vmem %s1, 8
  %2428 = vst.msk [vmem:[%s2427] sm:$0xff] %vm2426, %v2425
  %s2429 = scalar_lea.vmem %s0, 643
  %s2430 = smov 3
  %v2431 = vld [vmem:[%s2429] ss:$16 sm:%s2430]
  %s2432 = scalar_lea.vmem %s0, 643
  %s2433 = smov 12
  %v2434 = vld [vmem:[%s2432] ss:$16 sm:%s2433]
  %vm2435 = vcmask 1043458
  %v2436 = vsel %vm2435, %v2434, %v2431
  %s2437 = scalar_lea.vmem %s0, 643
  %s2438 = smov 48
  %v2439 = vld [vmem:[%s2437] ss:$16 sm:%s2438]
  %vm2440 = vcmask 1045508
  %v2441 = vsel %vm2440, %v2439, %v2436
  %s2442 = scalar_lea.vmem %s0, 643
  %s2443 = smov 192
  %v2444 = vld [vmem:[%s2442] ss:$16 sm:%s2443]
  %vm2445 = vcmask 1047558
  %v2446 = vsel %vm2445, %v2444, %v2441
  %2447 = vrot.lane.b32.xlu0 %v2446, 24
  %v2448 = vpop.permute.xlu0 %2447
  %vm2449 = vcmask 261312
  %s2450 = scalar_lea.vmem %s1, 40
  %2451 = vst.msk [vmem:[%s2450] sm:$0xff] %vm2449, %v2448
  %s2452 = scalar_lea.vmem %s0, 259
  %s2453 = smov 3
  %v2454 = vld [vmem:[%s2452] ss:$16 sm:%s2453]
  %s2455 = scalar_lea.vmem %s0, 259
  %s2456 = smov 12
  %v2457 = vld [vmem:[%s2455] ss:$16 sm:%s2456]
  %vm2458 = vcmask 1043458
  %v2459 = vsel %vm2458, %v2457, %v2454
  %s2460 = scalar_lea.vmem %s0, 259
  %s2461 = smov 48
  %v2462 = vld [vmem:[%s2460] ss:$16 sm:%s2461]
  %vm2463 = vcmask 1045508
  %v2464 = vsel %vm2463, %v2462, %v2459
  %s2465 = scalar_lea.vmem %s0, 259
  %s2466 = smov 192
  %v2467 = vld [vmem:[%s2465] ss:$16 sm:%s2466]
  %vm2468 = vcmask 1047558
  %v2469 = vsel %vm2468, %v2467, %v2464
  %2470 = vrot.lane.b32.xlu0 %v2469, 24
  %v2471 = vpop.permute.xlu0 %2470
  %vm2472 = vcmask 261312
  %s2473 = scalar_lea.vmem %s1, 16
  %2474 = vst.msk [vmem:[%s2473] sm:$0xff] %vm2472, %v2471
  %s2475 = scalar_lea.vmem %s0, 771
  %s2476 = smov 3
  %v2477 = vld [vmem:[%s2475] ss:$16 sm:%s2476]
  %s2478 = scalar_lea.vmem %s0, 771
  %s2479 = smov 12
  %v2480 = vld [vmem:[%s2478] ss:$16 sm:%s2479]
  %vm2481 = vcmask 1043458
  %v2482 = vsel %vm2481, %v2480, %v2477
  %s2483 = scalar_lea.vmem %s0, 771
  %s2484 = smov 48
  %v2485 = vld [vmem:[%s2483] ss:$16 sm:%s2484]
  %vm2486 = vcmask 1045508
  %v2487 = vsel %vm2486, %v2485, %v2482
  %s2488 = scalar_lea.vmem %s0, 771
  %s2489 = smov 192
  %v2490 = vld [vmem:[%s2488] ss:$16 sm:%s2489]
  %vm2491 = vcmask 1047558
  %v2492 = vsel %vm2491, %v2490, %v2487
  %2493 = vrot.lane.b32.xlu0 %v2492, 24
  %v2494 = vpop.permute.xlu0 %2493
  %vm2495 = vcmask 261312
  %s2496 = scalar_lea.vmem %s1, 48
  %2497 = vst.msk [vmem:[%s2496] sm:$0xff] %vm2495, %v2494
  %s2498 = scalar_lea.vmem %s0, 387
  %s2499 = smov 3
  %v2500 = vld [vmem:[%s2498] ss:$16 sm:%s2499]
  %s2501 = scalar_lea.vmem %s0, 387
  %s2502 = smov 12
  %v2503 = vld [vmem:[%s2501] ss:$16 sm:%s2502]
  %vm2504 = vcmask 1043458
  %v2505 = vsel %vm2504, %v2503, %v2500
  %s2506 = scalar_lea.vmem %s0, 387
  %s2507 = smov 48
  %v2508 = vld [vmem:[%s2506] ss:$16 sm:%s2507]
  %vm2509 = vcmask 1045508
  %v2510 = vsel %vm2509, %v2508, %v2505
  %s2511 = scalar_lea.vmem %s0, 387
  %s2512 = smov 192
  %v2513 = vld [vmem:[%s2511] ss:$16 sm:%s2512]
  %vm2514 = vcmask 1047558
  %v2515 = vsel %vm2514, %v2513, %v2510
  %2516 = vrot.lane.b32.xlu0 %v2515, 24
  %v2517 = vpop.permute.xlu0 %2516
  %vm2518 = vcmask 261312
  %s2519 = scalar_lea.vmem %s1, 24
  %2520 = vst.msk [vmem:[%s2519] sm:$0xff] %vm2518, %v2517
  %s2521 = scalar_lea.vmem %s0, 899
  %s2522 = smov 3
  %v2523 = vld [vmem:[%s2521] ss:$16 sm:%s2522]
  %s2524 = scalar_lea.vmem %s0, 899
  %s2525 = smov 12
  %v2526 = vld [vmem:[%s2524] ss:$16 sm:%s2525]
  %vm2527 = vcmask 1043458
  %v2528 = vsel %vm2527, %v2526, %v2523
  %s2529 = scalar_lea.vmem %s0, 899
  %s2530 = smov 48
  %v2531 = vld [vmem:[%s2529] ss:$16 sm:%s2530]
  %vm2532 = vcmask 1045508
  %v2533 = vsel %vm2532, %v2531, %v2528
  %s2534 = scalar_lea.vmem %s0, 899
  %s2535 = smov 192
  %v2536 = vld [vmem:[%s2534] ss:$16 sm:%s2535]
  %vm2537 = vcmask 1047558
  %v2538 = vsel %vm2537, %v2536, %v2533
  %2539 = vrot.lane.b32.xlu0 %v2538, 24
  %v2540 = vpop.permute.xlu0 %2539
  %vm2541 = vcmask 261312
  %s2542 = scalar_lea.vmem %s1, 56
  %2543 = vst.msk [vmem:[%s2542] sm:$0xff] %vm2541, %v2540
  %s2544 = scalar_lea.vmem %s0, 2
  %s2545 = smov 3
  %v2546 = vld [vmem:[%s2544] ss:$16 sm:%s2545]
  %s2547 = scalar_lea.vmem %s0, 2
  %s2548 = smov 12
  %v2549 = vld [vmem:[%s2547] ss:$16 sm:%s2548]
  %vm2550 = vcmask 1043458
  %v2551 = vsel %vm2550, %v2549, %v2546
  %s2552 = scalar_lea.vmem %s0, 2
  %s2553 = smov 48
  %v2554 = vld [vmem:[%s2552] ss:$16 sm:%s2553]
  %vm2555 = vcmask 1045508
  %v2556 = vsel %vm2555, %v2554, %v2551
  %s2557 = scalar_lea.vmem %s0, 2
  %s2558 = smov 192
  %v2559 = vld [vmem:[%s2557] ss:$16 sm:%s2558]
  %vm2560 = vcmask 1047558
  %v2561 = vsel %vm2560, %v2559, %v2556
  %2562 = vrot.lane.b32.xlu0 %v2561, 16
  %v2563 = vpop.permute.xlu0 %2562
  %vm2564 = vcmask 195712
  %2565 = vst.msk [vmem:[%s1] sm:$0xff] %vm2564, %v2563
  %s2566 = scalar_lea.vmem %s0, 514
  %s2567 = smov 3
  %v2568 = vld [vmem:[%s2566] ss:$16 sm:%s2567]
  %s2569 = scalar_lea.vmem %s0, 514
  %s2570 = smov 12
  %v2571 = vld [vmem:[%s2569] ss:$16 sm:%s2570]
  %vm2572 = vcmask 1043458
  %v2573 = vsel %vm2572, %v2571, %v2568
  %s2574 = scalar_lea.vmem %s0, 514
  %s2575 = smov 48
  %v2576 = vld [vmem:[%s2574] ss:$16 sm:%s2575]
  %vm2577 = vcmask 1045508
  %v2578 = vsel %vm2577, %v2576, %v2573
  %s2579 = scalar_lea.vmem %s0, 514
  %s2580 = smov 192
  %v2581 = vld [vmem:[%s2579] ss:$16 sm:%s2580]
  %vm2582 = vcmask 1047558
  %v2583 = vsel %vm2582, %v2581, %v2578
  %2584 = vrot.lane.b32.xlu0 %v2583, 16
  %v2585 = vpop.permute.xlu0 %2584
  %vm2586 = vcmask 195712
  %s2587 = scalar_lea.vmem %s1, 32
  %2588 = vst.msk [vmem:[%s2587] sm:$0xff] %vm2586, %v2585
  %s2589 = scalar_lea.vmem %s0, 130
  %s2590 = smov 3
  %v2591 = vld [vmem:[%s2589] ss:$16 sm:%s2590]
  %s2592 = scalar_lea.vmem %s0, 130
  %s2593 = smov 12
  %v2594 = vld [vmem:[%s2592] ss:$16 sm:%s2593]
  %vm2595 = vcmask 1043458
  %v2596 = vsel %vm2595, %v2594, %v2591
  %s2597 = scalar_lea.vmem %s0, 130
  %s2598 = smov 48
  %v2599 = vld [vmem:[%s2597] ss:$16 sm:%s2598]
  %vm2600 = vcmask 1045508
  %v2601 = vsel %vm2600, %v2599, %v2596
  %s2602 = scalar_lea.vmem %s0, 130
  %s2603 = smov 192
  %v2604 = vld [vmem:[%s2602] ss:$16 sm:%s2603]
  %vm2605 = vcmask 1047558
  %v2606 = vsel %vm2605, %v2604, %v2601
  %2607 = vrot.lane.b32.xlu0 %v2606, 16
  %v2608 = vpop.permute.xlu0 %2607
  %vm2609 = vcmask 195712
  %s2610 = scalar_lea.vmem %s1, 8
  %2611 = vst.msk [vmem:[%s2610] sm:$0xff] %vm2609, %v2608
  %s2612 = scalar_lea.vmem %s0, 642
  %s2613 = smov 3
  %v2614 = vld [vmem:[%s2612] ss:$16 sm:%s2613]
  %s2615 = scalar_lea.vmem %s0, 642
  %s2616 = smov 12
  %v2617 = vld [vmem:[%s2615] ss:$16 sm:%s2616]
  %vm2618 = vcmask 1043458
  %v2619 = vsel %vm2618, %v2617, %v2614
  %s2620 = scalar_lea.vmem %s0, 642
  %s2621 = smov 48
  %v2622 = vld [vmem:[%s2620] ss:$16 sm:%s2621]
  %vm2623 = vcmask 1045508
  %v2624 = vsel %vm2623, %v2622, %v2619
  %s2625 = scalar_lea.vmem %s0, 642
  %s2626 = smov 192
  %v2627 = vld [vmem:[%s2625] ss:$16 sm:%s2626]
  %vm2628 = vcmask 1047558
  %v2629 = vsel %vm2628, %v2627, %v2624
  %2630 = vrot.lane.b32.xlu0 %v2629, 16
  %v2631 = vpop.permute.xlu0 %2630
  %vm2632 = vcmask 195712
  %s2633 = scalar_lea.vmem %s1, 40
  %2634 = vst.msk [vmem:[%s2633] sm:$0xff] %vm2632, %v2631
  %s2635 = scalar_lea.vmem %s0, 258
  %s2636 = smov 3
  %v2637 = vld [vmem:[%s2635] ss:$16 sm:%s2636]
  %s2638 = scalar_lea.vmem %s0, 258
  %s2639 = smov 12
  %v2640 = vld [vmem:[%s2638] ss:$16 sm:%s2639]
  %vm2641 = vcmask 1043458
  %v2642 = vsel %vm2641, %v2640, %v2637
  %s2643 = scalar_lea.vmem %s0, 258
  %s2644 = smov 48
  %v2645 = vld [vmem:[%s2643] ss:$16 sm:%s2644]
  %vm2646 = vcmask 1045508
  %v2647 = vsel %vm2646, %v2645, %v2642
  %s2648 = scalar_lea.vmem %s0, 258
  %s2649 = smov 192
  %v2650 = vld [vmem:[%s2648] ss:$16 sm:%s2649]
  %vm2651 = vcmask 1047558
  %v2652 = vsel %vm2651, %v2650, %v2647
  %2653 = vrot.lane.b32.xlu0 %v2652, 16
  %v2654 = vpop.permute.xlu0 %2653
  %vm2655 = vcmask 195712
  %s2656 = scalar_lea.vmem %s1, 16
  %2657 = vst.msk [vmem:[%s2656] sm:$0xff] %vm2655, %v2654
  %s2658 = scalar_lea.vmem %s0, 770
  %s2659 = smov 3
  %v2660 = vld [vmem:[%s2658] ss:$16 sm:%s2659]
  %s2661 = scalar_lea.vmem %s0, 770
  %s2662 = smov 12
  %v2663 = vld [vmem:[%s2661] ss:$16 sm:%s2662]
  %vm2664 = vcmask 1043458
  %v2665 = vsel %vm2664, %v2663, %v2660
  %s2666 = scalar_lea.vmem %s0, 770
  %s2667 = smov 48
  %v2668 = vld [vmem:[%s2666] ss:$16 sm:%s2667]
  %vm2669 = vcmask 1045508
  %v2670 = vsel %vm2669, %v2668, %v2665
  %s2671 = scalar_lea.vmem %s0, 770
  %s2672 = smov 192
  %v2673 = vld [vmem:[%s2671] ss:$16 sm:%s2672]
  %vm2674 = vcmask 1047558
  %v2675 = vsel %vm2674, %v2673, %v2670
  %2676 = vrot.lane.b32.xlu0 %v2675, 16
  %v2677 = vpop.permute.xlu0 %2676
  %vm2678 = vcmask 195712
  %s2679 = scalar_lea.vmem %s1, 48
  %2680 = vst.msk [vmem:[%s2679] sm:$0xff] %vm2678, %v2677
  %s2681 = scalar_lea.vmem %s0, 386
  %s2682 = smov 3
  %v2683 = vld [vmem:[%s2681] ss:$16 sm:%s2682]
  %s2684 = scalar_lea.vmem %s0, 386
  %s2685 = smov 12
  %v2686 = vld [vmem:[%s2684] ss:$16 sm:%s2685]
  %vm2687 = vcmask 1043458
  %v2688 = vsel %vm2687, %v2686, %v2683
  %s2689 = scalar_lea.vmem %s0, 386
  %s2690 = smov 48
  %v2691 = vld [vmem:[%s2689] ss:$16 sm:%s2690]
  %vm2692 = vcmask 1045508
  %v2693 = vsel %vm2692, %v2691, %v2688
  %s2694 = scalar_lea.vmem %s0, 386
  %s2695 = smov 192
  %v2696 = vld [vmem:[%s2694] ss:$16 sm:%s2695]
  %vm2697 = vcmask 1047558
  %v2698 = vsel %vm2697, %v2696, %v2693
  %2699 = vrot.lane.b32.xlu0 %v2698, 16
  %v2700 = vpop.permute.xlu0 %2699
  %vm2701 = vcmask 195712
  %s2702 = scalar_lea.vmem %s1, 24
  %2703 = vst.msk [vmem:[%s2702] sm:$0xff] %vm2701, %v2700
  %s2704 = scalar_lea.vmem %s0, 898
  %s2705 = smov 3
  %v2706 = vld [vmem:[%s2704] ss:$16 sm:%s2705]
  %s2707 = scalar_lea.vmem %s0, 898
  %s2708 = smov 12
  %v2709 = vld [vmem:[%s2707] ss:$16 sm:%s2708]
  %vm2710 = vcmask 1043458
  %v2711 = vsel %vm2710, %v2709, %v2706
  %s2712 = scalar_lea.vmem %s0, 898
  %s2713 = smov 48
  %v2714 = vld [vmem:[%s2712] ss:$16 sm:%s2713]
  %vm2715 = vcmask 1045508
  %v2716 = vsel %vm2715, %v2714, %v2711
  %s2717 = scalar_lea.vmem %s0, 898
  %s2718 = smov 192
  %v2719 = vld [vmem:[%s2717] ss:$16 sm:%s2718]
  %vm2720 = vcmask 1047558
  %v2721 = vsel %vm2720, %v2719, %v2716
  %2722 = vrot.lane.b32.xlu0 %v2721, 16
  %v2723 = vpop.permute.xlu0 %2722
  %vm2724 = vcmask 195712
  %s2725 = scalar_lea.vmem %s1, 56
  %2726 = vst.msk [vmem:[%s2725] sm:$0xff] %vm2724, %v2723
  %s2727 = scalar_lea.vmem %s0, 1
  %s2728 = smov 3
  %v2729 = vld [vmem:[%s2727] ss:$16 sm:%s2728]
  %s2730 = scalar_lea.vmem %s0, 1
  %s2731 = smov 12
  %v2732 = vld [vmem:[%s2730] ss:$16 sm:%s2731]
  %vm2733 = vcmask 1043458
  %v2734 = vsel %vm2733, %v2732, %v2729
  %s2735 = scalar_lea.vmem %s0, 1
  %s2736 = smov 48
  %v2737 = vld [vmem:[%s2735] ss:$16 sm:%s2736]
  %vm2738 = vcmask 1045508
  %v2739 = vsel %vm2738, %v2737, %v2734
  %s2740 = scalar_lea.vmem %s0, 1
  %s2741 = smov 192
  %v2742 = vld [vmem:[%s2740] ss:$16 sm:%s2741]
  %vm2743 = vcmask 1047558
  %v2744 = vsel %vm2743, %v2742, %v2739
  %2745 = vrot.lane.b32.xlu0 %v2744, 8
  %v2746 = vpop.permute.xlu0 %2745
  %vm2747 = vcmask 130112
  %2748 = vst.msk [vmem:[%s1] sm:$0xff] %vm2747, %v2746
  %s2749 = scalar_lea.vmem %s0, 513
  %s2750 = smov 3
  %v2751 = vld [vmem:[%s2749] ss:$16 sm:%s2750]
  %s2752 = scalar_lea.vmem %s0, 513
  %s2753 = smov 12
  %v2754 = vld [vmem:[%s2752] ss:$16 sm:%s2753]
  %vm2755 = vcmask 1043458
  %v2756 = vsel %vm2755, %v2754, %v2751
  %s2757 = scalar_lea.vmem %s0, 513
  %s2758 = smov 48
  %v2759 = vld [vmem:[%s2757] ss:$16 sm:%s2758]
  %vm2760 = vcmask 1045508
  %v2761 = vsel %vm2760, %v2759, %v2756
  %s2762 = scalar_lea.vmem %s0, 513
  %s2763 = smov 192
  %v2764 = vld [vmem:[%s2762] ss:$16 sm:%s2763]
  %vm2765 = vcmask 1047558
  %v2766 = vsel %vm2765, %v2764, %v2761
  %2767 = vrot.lane.b32.xlu0 %v2766, 8
  %v2768 = vpop.permute.xlu0 %2767
  %vm2769 = vcmask 130112
  %s2770 = scalar_lea.vmem %s1, 32
  %2771 = vst.msk [vmem:[%s2770] sm:$0xff] %vm2769, %v2768
  %s2772 = scalar_lea.vmem %s0, 129
  %s2773 = smov 3
  %v2774 = vld [vmem:[%s2772] ss:$16 sm:%s2773]
  %s2775 = scalar_lea.vmem %s0, 129
  %s2776 = smov 12
  %v2777 = vld [vmem:[%s2775] ss:$16 sm:%s2776]
  %vm2778 = vcmask 1043458
  %v2779 = vsel %vm2778, %v2777, %v2774
  %s2780 = scalar_lea.vmem %s0, 129
  %s2781 = smov 48
  %v2782 = vld [vmem:[%s2780] ss:$16 sm:%s2781]
  %vm2783 = vcmask 1045508
  %v2784 = vsel %vm2783, %v2782, %v2779
  %s2785 = scalar_lea.vmem %s0, 129
  %s2786 = smov 192
  %v2787 = vld [vmem:[%s2785] ss:$16 sm:%s2786]
  %vm2788 = vcmask 1047558
  %v2789 = vsel %vm2788, %v2787, %v2784
  %2790 = vrot.lane.b32.xlu0 %v2789, 8
  %v2791 = vpop.permute.xlu0 %2790
  %vm2792 = vcmask 130112
  %s2793 = scalar_lea.vmem %s1, 8
  %2794 = vst.msk [vmem:[%s2793] sm:$0xff] %vm2792, %v2791
  %s2795 = scalar_lea.vmem %s0, 641
  %s2796 = smov 3
  %v2797 = vld [vmem:[%s2795] ss:$16 sm:%s2796]
  %s2798 = scalar_lea.vmem %s0, 641
  %s2799 = smov 12
  %v2800 = vld [vmem:[%s2798] ss:$16 sm:%s2799]
  %vm2801 = vcmask 1043458
  %v2802 = vsel %vm2801, %v2800, %v2797
  %s2803 = scalar_lea.vmem %s0, 641
  %s2804 = smov 48
  %v2805 = vld [vmem:[%s2803] ss:$16 sm:%s2804]
  %vm2806 = vcmask 1045508
  %v2807 = vsel %vm2806, %v2805, %v2802
  %s2808 = scalar_lea.vmem %s0, 641
  %s2809 = smov 192
  %v2810 = vld [vmem:[%s2808] ss:$16 sm:%s2809]
  %vm2811 = vcmask 1047558
  %v2812 = vsel %vm2811, %v2810, %v2807
  %2813 = vrot.lane.b32.xlu0 %v2812, 8
  %v2814 = vpop.permute.xlu0 %2813
  %vm2815 = vcmask 130112
  %s2816 = scalar_lea.vmem %s1, 40
  %2817 = vst.msk [vmem:[%s2816] sm:$0xff] %vm2815, %v2814
  %s2818 = scalar_lea.vmem %s0, 257
  %s2819 = smov 3
  %v2820 = vld [vmem:[%s2818] ss:$16 sm:%s2819]
  %s2821 = scalar_lea.vmem %s0, 257
  %s2822 = smov 12
  %v2823 = vld [vmem:[%s2821] ss:$16 sm:%s2822]
  %vm2824 = vcmask 1043458
  %v2825 = vsel %vm2824, %v2823, %v2820
  %s2826 = scalar_lea.vmem %s0, 257
  %s2827 = smov 48
  %v2828 = vld [vmem:[%s2826] ss:$16 sm:%s2827]
  %vm2829 = vcmask 1045508
  %v2830 = vsel %vm2829, %v2828, %v2825
  %s2831 = scalar_lea.vmem %s0, 257
  %s2832 = smov 192
  %v2833 = vld [vmem:[%s2831] ss:$16 sm:%s2832]
  %vm2834 = vcmask 1047558
  %v2835 = vsel %vm2834, %v2833, %v2830
  %2836 = vrot.lane.b32.xlu0 %v2835, 8
  %v2837 = vpop.permute.xlu0 %2836
  %vm2838 = vcmask 130112
  %s2839 = scalar_lea.vmem %s1, 16
  %2840 = vst.msk [vmem:[%s2839] sm:$0xff] %vm2838, %v2837
  %s2841 = scalar_lea.vmem %s0, 769
  %s2842 = smov 3
  %v2843 = vld [vmem:[%s2841] ss:$16 sm:%s2842]
  %s2844 = scalar_lea.vmem %s0, 769
  %s2845 = smov 12
  %v2846 = vld [vmem:[%s2844] ss:$16 sm:%s2845]
  %vm2847 = vcmask 1043458
  %v2848 = vsel %vm2847, %v2846, %v2843
  %s2849 = scalar_lea.vmem %s0, 769
  %s2850 = smov 48
  %v2851 = vld [vmem:[%s2849] ss:$16 sm:%s2850]
  %vm2852 = vcmask 1045508
  %v2853 = vsel %vm2852, %v2851, %v2848
  %s2854 = scalar_lea.vmem %s0, 769
  %s2855 = smov 192
  %v2856 = vld [vmem:[%s2854] ss:$16 sm:%s2855]
  %vm2857 = vcmask 1047558
  %v2858 = vsel %vm2857, %v2856, %v2853
  %2859 = vrot.lane.b32.xlu0 %v2858, 8
  %v2860 = vpop.permute.xlu0 %2859
  %vm2861 = vcmask 130112
  %s2862 = scalar_lea.vmem %s1, 48
  %2863 = vst.msk [vmem:[%s2862] sm:$0xff] %vm2861, %v2860
  %s2864 = scalar_lea.vmem %s0, 385
  %s2865 = smov 3
  %v2866 = vld [vmem:[%s2864] ss:$16 sm:%s2865]
  %s2867 = scalar_lea.vmem %s0, 385
  %s2868 = smov 12
  %v2869 = vld [vmem:[%s2867] ss:$16 sm:%s2868]
  %vm2870 = vcmask 1043458
  %v2871 = vsel %vm2870, %v2869, %v2866
  %s2872 = scalar_lea.vmem %s0, 385
  %s2873 = smov 48
  %v2874 = vld [vmem:[%s2872] ss:$16 sm:%s2873]
  %vm2875 = vcmask 1045508
  %v2876 = vsel %vm2875, %v2874, %v2871
  %s2877 = scalar_lea.vmem %s0, 385
  %s2878 = smov 192
  %v2879 = vld [vmem:[%s2877] ss:$16 sm:%s2878]
  %vm2880 = vcmask 1047558
  %v2881 = vsel %vm2880, %v2879, %v2876
  %2882 = vrot.lane.b32.xlu0 %v2881, 8
  %v2883 = vpop.permute.xlu0 %2882
  %vm2884 = vcmask 130112
  %s2885 = scalar_lea.vmem %s1, 24
  %2886 = vst.msk [vmem:[%s2885] sm:$0xff] %vm2884, %v2883
  %s2887 = scalar_lea.vmem %s0, 897
  %s2888 = smov 3
  %v2889 = vld [vmem:[%s2887] ss:$16 sm:%s2888]
  %s2890 = scalar_lea.vmem %s0, 897
  %s2891 = smov 12
  %v2892 = vld [vmem:[%s2890] ss:$16 sm:%s2891]
  %vm2893 = vcmask 1043458
  %v2894 = vsel %vm2893, %v2892, %v2889
  %s2895 = scalar_lea.vmem %s0, 897
  %s2896 = smov 48
  %v2897 = vld [vmem:[%s2895] ss:$16 sm:%s2896]
  %vm2898 = vcmask 1045508
  %v2899 = vsel %vm2898, %v2897, %v2894
  %s2900 = scalar_lea.vmem %s0, 897
  %s2901 = smov 192
  %v2902 = vld [vmem:[%s2900] ss:$16 sm:%s2901]
  %vm2903 = vcmask 1047558
  %v2904 = vsel %vm2903, %v2902, %v2899
  %2905 = vrot.lane.b32.xlu0 %v2904, 8
  %v2906 = vpop.permute.xlu0 %2905
  %vm2907 = vcmask 130112
  %s2908 = scalar_lea.vmem %s1, 56
  %2909 = vst.msk [vmem:[%s2908] sm:$0xff] %vm2907, %v2906

// kernel: resunit_forward_pallas.1
$region0: #{resunit_forward_pallas.1}
  #allocation0 [shape = 'u32[]', space=smem, size = 0x4, offset = 0x4, fixed_abs, tag = 'smem constant byte address 0x4 - core index']
  #allocation1 [shape = 'u32[72,128]{1,0:T(1,128)}', space=vmem, size = 0x9000, scoped, tag = 'internal scratch']
  #allocation2 [shape = 'f32[36,128]{1,0:T(8,128)}', space=vmem, size = 0x5000, scoped, tag = 'scratch operand']
  %s0 = inlined_call_operand.vmem [shape: f32[36,64], index: 0, kind: input, shape index: {}]
  %s1 = inlined_call_operand.vmem [shape: f32[34,1], index: 1, kind: input, shape index: {}]
  %s2 = inlined_call_operand.vmem [shape: f32[3,64,256], index: 2, kind: input, shape index: {}]
  %s3 = inlined_call_operand.vmem [shape: f32[3,128,128], index: 3, kind: input, shape index: {}]
  %s4 = inlined_call_operand.vmem [shape: f32[128,128], index: 4, kind: input, shape index: {}]
  %s5 = inlined_call_operand.vmem [shape: f32[1,128], index: 5, kind: input, shape index: {}]
  %s6 = inlined_call_operand.vmem [shape: f32[1,128], index: 6, kind: input, shape index: {}]
  %s7 = inlined_call_operand.vmem [shape: f32[1,128], index: 7, kind: input, shape index: {}]
  %s8 = inlined_call_operand.vmem [shape: f32[1,128], index: 8, kind: input, shape index: {}]
  %s9 = inlined_call_operand.vmem [shape: f32[1,128], index: 9, kind: input, shape index: {}]
  %s10 = inlined_call_operand.vmem [shape: f32[34,128], index: 10, kind: output, shape index: {}]
  %s11 = sld [smem:[#allocation0]]
  $region50: #{resunit_forward_pallas.1} parent=0
    _
  %s13 = ssub.s32 1, %s11
  %s14 = scalar_select 0, %s13, %s11
  // Predicated region
  $region2: #{resunit_forward_pallas.1} parent=0 // pred_check
    _
  $region3: #{resunit_forward_pallas.1} parent=0 // pred_check_branch
    %16 = sbr.rel (0) target = $region5
  $region4: #{resunit_forward_pallas.1} parent=0 // pred_region
    _
  $region5: #{resunit_forward_pallas.1} parent=0 // pred_fallthru
    _
  // Predicated region
  $region6: #{resunit_forward_pallas.1} parent=0 // pred_check
    _
  $region7: #{resunit_forward_pallas.1} parent=0 // pred_check_branch
    %18 = sbr.rel (0) target = $region9
  $region8: #{resunit_forward_pallas.1} parent=0 // pred_region
    _
  $region9: #{resunit_forward_pallas.1} parent=0 // pred_fallthru
    _
  // Predicated region
  $region10: #{resunit_forward_pallas.1} parent=0 // pred_check
    _
  $region11: #{resunit_forward_pallas.1} parent=0 // pred_check_branch
    %20 = sbr.rel (0) target = $region13
  $region12: #{resunit_forward_pallas.1} parent=0 // pred_region
    _
  $region13: #{resunit_forward_pallas.1} parent=0 // pred_fallthru
    _
  // Predicated region
  $region14: #{resunit_forward_pallas.1} parent=0 // pred_check
    _
  $region15: #{resunit_forward_pallas.1} parent=0 // pred_check_branch
    %22 = sbr.rel (0) target = $region17
  $region16: #{resunit_forward_pallas.1} parent=0 // pred_region
    _
  $region17: #{resunit_forward_pallas.1} parent=0 // pred_fallthru
    _
  // Predicated region
  $region18: #{resunit_forward_pallas.1} parent=0 // pred_check
    _
  $region19: #{resunit_forward_pallas.1} parent=0 // pred_check_branch
    %24 = sbr.rel (0) target = $region21
  $region20: #{resunit_forward_pallas.1} parent=0 // pred_region
    _
  $region21: #{resunit_forward_pallas.1} parent=0 // pred_fallthru
    _
  // Predicated region
  $region22: #{resunit_forward_pallas.1} parent=0 // pred_check
    _
  $region23: #{resunit_forward_pallas.1} parent=0 // pred_check_branch
    %26 = sbr.rel (0) target = $region25
  $region24: #{resunit_forward_pallas.1} parent=0 // pred_region
    _
  $region25: #{resunit_forward_pallas.1} parent=0 // pred_fallthru
    _
  // Predicated region
  $region26: #{resunit_forward_pallas.1} parent=0 // pred_check
    _
  $region27: #{resunit_forward_pallas.1} parent=0 // pred_check_branch
    %28 = sbr.rel (0) target = $region29
  $region28: #{resunit_forward_pallas.1} parent=0 // pred_region
    _
  $region29: #{resunit_forward_pallas.1} parent=0 // pred_fallthru
    _
  // Predicated region
  $region30: #{resunit_forward_pallas.1} parent=0 // pred_check
    _
  $region31: #{resunit_forward_pallas.1} parent=0 // pred_check_branch
    %30 = sbr.rel (0) target = $region33
  $region32: #{resunit_forward_pallas.1} parent=0 // pred_region
    _
  $region33: #{resunit_forward_pallas.1} parent=0 // pred_fallthru
    _
  // Predicated region
  $region34: #{resunit_forward_pallas.1} parent=0 // pred_check
    _
  $region35: #{resunit_forward_pallas.1} parent=0 // pred_check_branch
    %32 = sbr.rel (0) target = $region37
  $region36: #{resunit_forward_pallas.1} parent=0 // pred_region
    _
  $region37: #{resunit_forward_pallas.1} parent=0 // pred_fallthru
    _
  // Predicated region
  $region38: #{resunit_forward_pallas.1} parent=0 // pred_check
    _
  $region39: #{resunit_forward_pallas.1} parent=0 // pred_check_branch
    %34 = sbr.rel (0) target = $region41
  $region40: #{resunit_forward_pallas.1} parent=0 // pred_region
    _
  $region41: #{resunit_forward_pallas.1} parent=0 // pred_fallthru
    _
  %v35 = vld [vmem:[%s1] sm:$0xff]
  %v36 = vld [vmem:[%s1 + $0x8] sm:$0xff]
  %v37 = vld [vmem:[%s1 + $0x10] sm:$0xff]
  %v38 = vld [vmem:[%s1 + $0x18] sm:$0xff]
  %v39 = vld [vmem:[%s1 + $0x20] sm:$0x3]
  %v40 = vld [vmem:[%s0] sm:$0xff]
  %v41 = vld [vmem:[%s0 + $0x8] sm:$0xff]
  %v42 = vld [vmem:[%s0 + $0x10] sm:$0xff]
  %v43 = vld [vmem:[%s0 + $0x18] sm:$0xff]
  %v44 = vld [vmem:[%s0 + $0x20] sm:$0x3]
  %v45 = vld [vmem:[%s2] sm:$0xff]
  %v46 = vld [vmem:[%s2 + $0x8] sm:$0xff]
  %v47 = vld [vmem:[%s2 + $0x10] sm:$0xff]
  %v48 = vld [vmem:[%s2 + $0x18] sm:$0xff]
  %v49 = vld [vmem:[%s2 + $0x20] sm:$0xff]
  %v50 = vld [vmem:[%s2 + $0x28] sm:$0xff]
  %v51 = vld [vmem:[%s2 + $0x30] sm:$0xff]
  %v52 = vld [vmem:[%s2 + $0x38] sm:$0xff]
  %v53 = vld [vmem:[%s2 + $0x40] sm:$0xff]
  %v54 = vld [vmem:[%s2 + $0x48] sm:$0xff]
  %v55 = vld [vmem:[%s2 + $0x50] sm:$0xff]
  %v56 = vld [vmem:[%s2 + $0x58] sm:$0xff]
  %v57 = vld [vmem:[%s2 + $0x60] sm:$0xff]
  %v58 = vld [vmem:[%s2 + $0x68] sm:$0xff]
  %v59 = vld [vmem:[%s2 + $0x70] sm:$0xff]
  %v60 = vld [vmem:[%s2 + $0x78] sm:$0xff]
  %v61 = vld [vmem:[%s0 + $0x1] sm:$0xff]
  %v62 = vld [vmem:[%s0 + $0x9] sm:$0xff]
  %v63 = vld [vmem:[%s0 + $0x11] sm:$0xff]
  %v64 = vld [vmem:[%s0 + $0x19] sm:$0xff]
  %v65 = vld [vmem:[%s0 + $0x21] sm:$0x3]
  %s66 = scalar_lea.vmem %s2, 128
  %v67 = vld [vmem:[%s66] sm:$0xff]
  %v68 = vld [vmem:[%s66 + $0x8] sm:$0xff]
  %v69 = vld [vmem:[%s66 + $0x10] sm:$0xff]
  %v70 = vld [vmem:[%s66 + $0x18] sm:$0xff]
  %v71 = vld [vmem:[%s66 + $0x20] sm:$0xff]
  %v72 = vld [vmem:[%s66 + $0x28] sm:$0xff]
  %v73 = vld [vmem:[%s66 + $0x30] sm:$0xff]
  %v74 = vld [vmem:[%s66 + $0x38] sm:$0xff]
  %v75 = vld [vmem:[%s66 + $0x40] sm:$0xff]
  %v76 = vld [vmem:[%s66 + $0x48] sm:$0xff]
  %v77 = vld [vmem:[%s66 + $0x50] sm:$0xff]
  %v78 = vld [vmem:[%s66 + $0x58] sm:$0xff]
  %v79 = vld [vmem:[%s66 + $0x60] sm:$0xff]
  %v80 = vld [vmem:[%s66 + $0x68] sm:$0xff]
  %v81 = vld [vmem:[%s66 + $0x70] sm:$0xff]
  %v82 = vld [vmem:[%s66 + $0x78] sm:$0xff]
  %vm83 = vcmask 523264
  %v85 = vsel %vm83, %v61, 0
  %v88 = vsel %vm83, %v62, 0
  %v91 = vsel %vm83, %v63, 0
  %v94 = vsel %vm83, %v64, 0
  %v97 = vsel %vm83, %v65, 0
  %99 = vmatpush.msra.mxu0 0.0
  %100 = vmatpush.msra.mxu0 0.0
  %101 = vmatpush.msra.mxu0 0.0
  %102 = vmatpush.msra.mxu0 0.0
  %103 = vmatpush.msra.mxu0 0.0
  %104 = vmatpush.msra.mxu0 0.0
  %105 = vmatpush.msra.mxu0 0.0
  %106 = vmatpush.msra.mxu0 0.0
  %107 = vmatpush.msra.mxu0 %v81
  %108 = vmatpush.msra.mxu0 %v79
  %109 = vmatpush.msra.mxu0 %v77
  %110 = vmatpush.msra.mxu0 %v75
  %111 = vmatpush.msra.mxu0 %v73
  %112 = vmatpush.msra.mxu0 %v71
  %113 = vmatpush.msra.mxu0 %v69
  %114 = vmatpush.msra.mxu0 %v67
  %115 = vmatmul.f32.gmra.mxu0 %v85
  %v116 = vpop.f32.mrf.mxu0
  %v117 = vadd.f32 0.0, %v116
  %118 = vmatmul.f32.gmra.mxu0 %v88
  %v119 = vpop.f32.mrf.mxu0
  %v120 = vadd.f32 0.0, %v119
  %121 = vmatmul.f32.gmra.mxu0 %v91
  %v122 = vpop.f32.mrf.mxu0
  %v123 = vadd.f32 0.0, %v122
  %124 = vmatmul.f32.gmra.mxu0 %v94
  %v125 = vpop.f32.mrf.mxu0
  %v126 = vadd.f32 0.0, %v125
  %127 = vmatmul.f32.gmra.mxu0 %v97
  %v128 = vpop.f32.mrf.mxu0
  %v129 = vadd.f32 0.0, %v128
  %130 = vdwg.mxu0
  %131 = vmatpush.msra.mxu0 0.0
  %132 = vmatpush.msra.mxu0 0.0
  %133 = vmatpush.msra.mxu0 0.0
  %134 = vmatpush.msra.mxu0 0.0
  %135 = vmatpush.msra.mxu0 0.0
  %136 = vmatpush.msra.mxu0 0.0
  %137 = vmatpush.msra.mxu0 0.0
  %138 = vmatpush.msra.mxu0 0.0
  %139 = vmatpush.msra.mxu0 %v82
  %140 = vmatpush.msra.mxu0 %v80
  %141 = vmatpush.msra.mxu0 %v78
  %142 = vmatpush.msra.mxu0 %v76
  %143 = vmatpush.msra.mxu0 %v74
  %144 = vmatpush.msra.mxu0 %v72
  %145 = vmatpush.msra.mxu0 %v70
  %146 = vmatpush.msra.mxu0 %v68
  %147 = vmatmul.f32.gmra.mxu0 %v85
  %v148 = vpop.f32.mrf.mxu0
  %v149 = vadd.f32 0.0, %v148
  %150 = vmatmul.f32.gmra.mxu0 %v88
  %v151 = vpop.f32.mrf.mxu0
  %v152 = vadd.f32 0.0, %v151
  %153 = vmatmul.f32.gmra.mxu0 %v91
  %v154 = vpop.f32.mrf.mxu0
  %v155 = vadd.f32 0.0, %v154
  %156 = vmatmul.f32.gmra.mxu0 %v94
  %v157 = vpop.f32.mrf.mxu0
  %v158 = vadd.f32 0.0, %v157
  %159 = vmatmul.f32.gmra.mxu0 %v97
  %v160 = vpop.f32.mrf.mxu0
  %v161 = vadd.f32 0.0, %v160
  %162 = vdwg.mxu0
  %v164 = vsel %vm83, %v40, 0
  %v167 = vsel %vm83, %v41, 0
  %v170 = vsel %vm83, %v42, 0
  %v173 = vsel %vm83, %v43, 0
  %v176 = vsel %vm83, %v44, 0
  %178 = vmatpush.msra.mxu0 0.0
  %179 = vmatpush.msra.mxu0 0.0
  %180 = vmatpush.msra.mxu0 0.0
  %181 = vmatpush.msra.mxu0 0.0
  %182 = vmatpush.msra.mxu0 0.0
  %183 = vmatpush.msra.mxu0 0.0
  %184 = vmatpush.msra.mxu0 0.0
  %185 = vmatpush.msra.mxu0 0.0
  %186 = vmatpush.msra.mxu0 %v59
  %187 = vmatpush.msra.mxu0 %v57
  %188 = vmatpush.msra.mxu0 %v55
  %189 = vmatpush.msra.mxu0 %v53
  %190 = vmatpush.msra.mxu0 %v51
  %191 = vmatpush.msra.mxu0 %v49
  %192 = vmatpush.msra.mxu0 %v47
  %193 = vmatpush.msra.mxu0 %v45
  %194 = vmatmul.f32.gmra.mxu0 %v164
  %v195 = vpop.f32.mrf.mxu0
  %v196 = vadd.f32 %v117, %v195
  %197 = vmatmul.f32.gmra.mxu0 %v167
  %v198 = vpop.f32.mrf.mxu0
  %v199 = vadd.f32 %v120, %v198
  %200 = vmatmul.f32.gmra.mxu0 %v170
  %v201 = vpop.f32.mrf.mxu0
  %v202 = vadd.f32 %v123, %v201
  %203 = vmatmul.f32.gmra.mxu0 %v173
  %v204 = vpop.f32.mrf.mxu0
  %v205 = vadd.f32 %v126, %v204
  %206 = vmatmul.f32.gmra.mxu0 %v176
  %v207 = vpop.f32.mrf.mxu0
  %v208 = vadd.f32 %v129, %v207
  %209 = vdwg.mxu0
  %210 = vmatpush.msra.mxu0 0.0
  %211 = vmatpush.msra.mxu0 0.0
  %212 = vmatpush.msra.mxu0 0.0
  %213 = vmatpush.msra.mxu0 0.0
  %214 = vmatpush.msra.mxu0 0.0
  %215 = vmatpush.msra.mxu0 0.0
  %216 = vmatpush.msra.mxu0 0.0
  %217 = vmatpush.msra.mxu0 0.0
  %218 = vmatpush.msra.mxu0 %v60
  %219 = vmatpush.msra.mxu0 %v58
  %220 = vmatpush.msra.mxu0 %v56
  %221 = vmatpush.msra.mxu0 %v54
  %222 = vmatpush.msra.mxu0 %v52
  %223 = vmatpush.msra.mxu0 %v50
  %224 = vmatpush.msra.mxu0 %v48
  %225 = vmatpush.msra.mxu0 %v46
  %226 = vmatmul.f32.gmra.mxu0 %v164
  %v227 = vpop.f32.mrf.mxu0
  %v228 = vadd.f32 %v149, %v227
  %229 = vmatmul.f32.gmra.mxu0 %v167
  %v230 = vpop.f32.mrf.mxu0
  %v231 = vadd.f32 %v152, %v230
  %232 = vmatmul.f32.gmra.mxu0 %v170
  %v233 = vpop.f32.mrf.mxu0
  %v234 = vadd.f32 %v155, %v233
  %235 = vmatmul.f32.gmra.mxu0 %v173
  %v236 = vpop.f32.mrf.mxu0
  %v237 = vadd.f32 %v158, %v236
  %238 = vmatmul.f32.gmra.mxu0 %v176
  %v239 = vpop.f32.mrf.mxu0
  %v240 = vadd.f32 %v161, %v239
  %241 = vdwg.mxu0
  %v242 = vld [vmem:[%s0 + $0x2] sm:$0xff]
  %v243 = vld [vmem:[%s0 + $0xa] sm:$0xff]
  %v244 = vld [vmem:[%s0 + $0x12] sm:$0xff]
  %v245 = vld [vmem:[%s0 + $0x1a] sm:$0xff]
  %v246 = vld [vmem:[%s0 + $0x22] sm:$0x3]
  %s247 = scalar_lea.vmem %s2, 256
  %v248 = vld [vmem:[%s247] sm:$0xff]
  %v249 = vld [vmem:[%s247 + $0x8] sm:$0xff]
  %v250 = vld [vmem:[%s247 + $0x10] sm:$0xff]
  %v251 = vld [vmem:[%s247 + $0x18] sm:$0xff]
  %v252 = vld [vmem:[%s247 + $0x20] sm:$0xff]
  %v253 = vld [vmem:[%s247 + $0x28] sm:$0xff]
  %v254 = vld [vmem:[%s247 + $0x30] sm:$0xff]
  %v255 = vld [vmem:[%s247 + $0x38] sm:$0xff]
  %v256 = vld [vmem:[%s247 + $0x40] sm:$0xff]
  %v257 = vld [vmem:[%s247 + $0x48] sm:$0xff]
  %v258 = vld [vmem:[%s247 + $0x50] sm:$0xff]
  %v259 = vld [vmem:[%s247 + $0x58] sm:$0xff]
  %v260 = vld [vmem:[%s247 + $0x60] sm:$0xff]
  %v261 = vld [vmem:[%s247 + $0x68] sm:$0xff]
  %v262 = vld [vmem:[%s247 + $0x70] sm:$0xff]
  %v263 = vld [vmem:[%s247 + $0x78] sm:$0xff]
  %v265 = vsel %vm83, %v242, 0
  %v268 = vsel %vm83, %v243, 0
  %v271 = vsel %vm83, %v244, 0
  %v274 = vsel %vm83, %v245, 0
  %v277 = vsel %vm83, %v246, 0
  %279 = vmatpush.msra.mxu0 0.0
  %280 = vmatpush.msra.mxu0 0.0
  %281 = vmatpush.msra.mxu0 0.0
  %282 = vmatpush.msra.mxu0 0.0
  %283 = vmatpush.msra.mxu0 0.0
  %284 = vmatpush.msra.mxu0 0.0
  %285 = vmatpush.msra.mxu0 0.0
  %286 = vmatpush.msra.mxu0 0.0
  %287 = vmatpush.msra.mxu0 %v262
  %288 = vmatpush.msra.mxu0 %v260
  %289 = vmatpush.msra.mxu0 %v258
  %290 = vmatpush.msra.mxu0 %v256
  %291 = vmatpush.msra.mxu0 %v254
  %292 = vmatpush.msra.mxu0 %v252
  %293 = vmatpush.msra.mxu0 %v250
  %294 = vmatpush.msra.mxu0 %v248
  %295 = vmatmul.f32.gmra.mxu0 %v265
  %v296 = vpop.f32.mrf.mxu0
  %v297 = vadd.f32 0.0, %v296
  %298 = vmatmul.f32.gmra.mxu0 %v268
  %v299 = vpop.f32.mrf.mxu0
  %v300 = vadd.f32 0.0, %v299
  %301 = vmatmul.f32.gmra.mxu0 %v271
  %v302 = vpop.f32.mrf.mxu0
  %v303 = vadd.f32 0.0, %v302
  %304 = vmatmul.f32.gmra.mxu0 %v274
  %v305 = vpop.f32.mrf.mxu0
  %v306 = vadd.f32 0.0, %v305
  %307 = vmatmul.f32.gmra.mxu0 %v277
  %v308 = vpop.f32.mrf.mxu0
  %v309 = vadd.f32 0.0, %v308
  %310 = vdwg.mxu0
  %311 = vmatpush.msra.mxu0 0.0
  %312 = vmatpush.msra.mxu0 0.0
  %313 = vmatpush.msra.mxu0 0.0
  %314 = vmatpush.msra.mxu0 0.0
  %315 = vmatpush.msra.mxu0 0.0
  %316 = vmatpush.msra.mxu0 0.0
  %317 = vmatpush.msra.mxu0 0.0
  %318 = vmatpush.msra.mxu0 0.0
  %319 = vmatpush.msra.mxu0 %v263
  %320 = vmatpush.msra.mxu0 %v261
  %321 = vmatpush.msra.mxu0 %v259
  %322 = vmatpush.msra.mxu0 %v257
  %323 = vmatpush.msra.mxu0 %v255
  %324 = vmatpush.msra.mxu0 %v253
  %325 = vmatpush.msra.mxu0 %v251
  %326 = vmatpush.msra.mxu0 %v249
  %327 = vmatmul.f32.gmra.mxu0 %v265
  %v328 = vpop.f32.mrf.mxu0
  %v329 = vadd.f32 0.0, %v328
  %330 = vmatmul.f32.gmra.mxu0 %v268
  %v331 = vpop.f32.mrf.mxu0
  %v332 = vadd.f32 0.0, %v331
  %333 = vmatmul.f32.gmra.mxu0 %v271
  %v334 = vpop.f32.mrf.mxu0
  %v335 = vadd.f32 0.0, %v334
  %336 = vmatmul.f32.gmra.mxu0 %v274
  %v337 = vpop.f32.mrf.mxu0
  %v338 = vadd.f32 0.0, %v337
  %339 = vmatmul.f32.gmra.mxu0 %v277
  %v340 = vpop.f32.mrf.mxu0
  %v341 = vadd.f32 0.0, %v340
  %342 = vdwg.mxu0
  %v343 = vadd.f32 %v196, %v297
  %v344 = vadd.f32 %v228, %v329
  %v345 = vadd.f32 %v199, %v300
  %v346 = vadd.f32 %v231, %v332
  %v347 = vadd.f32 %v202, %v303
  %v348 = vadd.f32 %v234, %v335
  %v349 = vadd.f32 %v205, %v306
  %v350 = vadd.f32 %v237, %v338
  %v351 = vadd.f32 %v208, %v309
  %v352 = vadd.f32 %v240, %v341
  %v353 = vld [vmem:[%s9] sm:$0x1]
  %v355 = vperm.slane %v353, 0
  %v357 = vadd.f32 %v344, %v355
  %v358 = vadd.f32 %v346, %v355
  %v359 = vadd.f32 %v348, %v355
  %v360 = vadd.f32 %v350, %v355
  %v361 = vadd.f32 %v352, %v355
  %v362 = vld [vmem:[%s5] sm:$0x1]
  %v363 = vld [vmem:[%s6] sm:$0x1]
  %365 = vset.pattern.permute.xlu0 0
  %366 = vperm.xlu0 %365, %v35
  %v367 = vpop.permute.xlu0 %366
  %370 = vset.pattern.permute.xlu0 0
  %371 = vperm.xlu0 %370, %v36
  %v372 = vpop.permute.xlu0 %371
  %375 = vset.pattern.permute.xlu0 0
  %376 = vperm.xlu0 %375, %v37
  %v377 = vpop.permute.xlu0 %376
  %380 = vset.pattern.permute.xlu0 0
  %381 = vperm.xlu0 %380, %v38
  %v382 = vpop.permute.xlu0 %381
  %385 = vset.pattern.permute.xlu0 0
  %386 = vperm.xlu0 %385, %v39
  %v387 = vpop.permute.xlu0 %386
  %v389 = vmul.f32 %v343, %v367
  %v390 = vmul.f32 %v345, %v372
  %v391 = vmul.f32 %v347, %v377
  %v392 = vmul.f32 %v349, %v382
  %v393 = vmul.f32 %v351, %v387
  %v394 = vadd.f32 %v389, %v390
  %v395 = vadd.f32 %v394, %v391
  %v396 = vadd.f32 %v395, %v392
  %vm397 = vcmask 1041408
  %v398 = vsel %vm397, %v393, 0.0
  %v399 = vadd.f32 %v396, %v398
  %v400 = vrot.slane %v399, 4
  %v401 = vadd.f32 %v399, %v400
  %v402 = vrot.slane %v401, 2
  %v403 = vadd.f32 %v401, %v402
  %v404 = vrot.slane %v403, 1
  %v405 = vadd.f32 %v403, %v404
  %v406 = vmul.f32 %v343, %v343
  %v407 = vmul.f32 %v345, %v345
  %v408 = vmul.f32 %v347, %v347
  %v409 = vmul.f32 %v349, %v349
  %v410 = vmul.f32 %v351, %v351
  %v411 = vmul.f32 %v406, %v367
  %v412 = vmul.f32 %v407, %v372
  %v413 = vmul.f32 %v408, %v377
  %v414 = vmul.f32 %v409, %v382
  %v415 = vmul.f32 %v410, %v387
  %v416 = vadd.f32 %v411, %v412
  %v417 = vadd.f32 %v416, %v413
  %v418 = vadd.f32 %v417, %v414
  %v419 = vsel %vm397, %v415, 0.0
  %v420 = vadd.f32 %v418, %v419
  %v421 = vrot.slane %v420, 4
  %v422 = vadd.f32 %v420, %v421
  %v423 = vrot.slane %v422, 2
  %v424 = vadd.f32 %v422, %v423
  %v425 = vrot.slane %v424, 1
  %v426 = vadd.f32 %v424, %v425
  %v427 = vld [vmem:[%s4] sm:$0xff]
  %v428 = vld [vmem:[%s4 + $0x8] sm:$0xff]
  %v429 = vld [vmem:[%s4 + $0x10] sm:$0xff]
  %v430 = vld [vmem:[%s4 + $0x18] sm:$0xff]
  %v431 = vld [vmem:[%s4 + $0x20] sm:$0xff]
  %v432 = vld [vmem:[%s4 + $0x28] sm:$0xff]
  %v433 = vld [vmem:[%s4 + $0x30] sm:$0xff]
  %v434 = vld [vmem:[%s4 + $0x38] sm:$0xff]
  %v435 = vld [vmem:[%s4 + $0x40] sm:$0xff]
  %v436 = vld [vmem:[%s4 + $0x48] sm:$0xff]
  %v437 = vld [vmem:[%s4 + $0x50] sm:$0xff]
  %v438 = vld [vmem:[%s4 + $0x58] sm:$0xff]
  %v439 = vld [vmem:[%s4 + $0x60] sm:$0xff]
  %v440 = vld [vmem:[%s4 + $0x68] sm:$0xff]
  %v441 = vld [vmem:[%s4 + $0x70] sm:$0xff]
  %v442 = vld [vmem:[%s4 + $0x78] sm:$0xff]
  %443 = vmatpush.msra.mxu0 %v442
  %444 = vmatpush.msra.mxu0 %v441
  %445 = vmatpush.msra.mxu0 %v440
  %446 = vmatpush.msra.mxu0 %v439
  %447 = vmatpush.msra.mxu0 %v438
  %448 = vmatpush.msra.mxu0 %v437
  %449 = vmatpush.msra.mxu0 %v436
  %450 = vmatpush.msra.mxu0 %v435
  %451 = vmatpush.msra.mxu0 %v434
  %452 = vmatpush.msra.mxu0 %v433
  %453 = vmatpush.msra.mxu0 %v432
  %454 = vmatpush.msra.mxu0 %v431
  %455 = vmatpush.msra.mxu0 %v430
  %456 = vmatpush.msra.mxu0 %v429
  %457 = vmatpush.msra.mxu0 %v428
  %458 = vmatpush.msra.mxu0 %v427
  %459 = vmatmul.f32.gmra.mxu0 %v405
  %v460 = vpop.f32.mrf.mxu0
  %v461 = vadd.f32 0.0, %v460
  %462 = vdwg.mxu0
  %v463 = vmul.f32 %v461, 0.001953125
  %464 = vmatpush.msra.mxu0 %v442
  %465 = vmatpush.msra.mxu0 %v441
  %466 = vmatpush.msra.mxu0 %v440
  %467 = vmatpush.msra.mxu0 %v439
  %468 = vmatpush.msra.mxu0 %v438
  %469 = vmatpush.msra.mxu0 %v437
  %470 = vmatpush.msra.mxu0 %v436
  %471 = vmatpush.msra.mxu0 %v435
  %472 = vmatpush.msra.mxu0 %v434
  %473 = vmatpush.msra.mxu0 %v433
  %474 = vmatpush.msra.mxu0 %v432
  %475 = vmatpush.msra.mxu0 %v431
  %476 = vmatpush.msra.mxu0 %v430
  %477 = vmatpush.msra.mxu0 %v429
  %478 = vmatpush.msra.mxu0 %v428
  %479 = vmatpush.msra.mxu0 %v427
  %480 = vmatmul.f32.gmra.mxu0 %v426
  %v481 = vpop.f32.mrf.mxu0
  %v482 = vadd.f32 0.0, %v481
  %483 = vdwg.mxu0
  %v484 = vmul.f32 %v482, 0.001953125
  %v485 = vmul.f32 %v463, %v463
  %v486 = vsub.f32 %v484, %v485
  %v487 = vmax.f32 %v486, 0.0
  %v488 = vperm.slane %v463, 0
  %v489 = vsub.f32 %v343, %v488
  %v490 = vsub.f32 %v345, %v488
  %v491 = vsub.f32 %v347, %v488
  %v492 = vsub.f32 %v349, %v488
  %v493 = vsub.f32 %v351, %v488
  %v494 = vadd.f32 %v487, 1e-05
  %v495 = vrsqrt.pop %v494
  %v496 = vmul.f32 %v495, %v494
  %v497 = vmul.f32 %v496, %v495
  %v498 = vmul.f32 0.5, %v497
  %v499 = vsub.f32 1.5, %v498
  %v500 = vmul.f32 %v495, %v499
  %vm501 = vweird.f32 %v494
  %vm502 = vweird.f32 %v495
  %vm503 = vmor %vm501, %vm502
  %v504 = vsel %vm503, %v495, %v500
  %v505 = vmul.f32 %v362, %v504
  %v507 = vperm.slane %v505, 0
  %v509 = vmul.f32 %v489, %v507
  %v510 = vmul.f32 %v490, %v507
  %v511 = vmul.f32 %v491, %v507
  %v512 = vmul.f32 %v492, %v507
  %v513 = vmul.f32 %v493, %v507
  %v515 = vperm.slane %v363, 0
  %v517 = vadd.f32 %v509, %v515
  %v518 = vadd.f32 %v510, %v515
  %v519 = vadd.f32 %v511, %v515
  %v520 = vadd.f32 %v512, %v515
  %v521 = vadd.f32 %v513, %v515
  %v522 = vmul.f32 %v517, 0.1
  %v523 = vmul.f32 %v518, 0.1
  %v524 = vmul.f32 %v519, 0.1
  %v525 = vmul.f32 %v520, 0.1
  %v526 = vmul.f32 %v521, 0.1
  %v527 = vmax.f32 %v517, %v522
  %v528 = vmax.f32 %v518, %v523
  %v529 = vmax.f32 %v519, %v524
  %v530 = vmax.f32 %v520, %v525
  %v531 = vmax.f32 %v521, %v526
  %532 = vst [vmem:[#allocation2] sm:$0x1] 0.0
  %533 = vst [vmem:[#allocation2 + $0x23] sm:$0x1] 0.0
  %v534 = vmul.f32 %v527, %v367
  %v535 = vmul.f32 %v528, %v372
  %v536 = vmul.f32 %v529, %v377
  %v537 = vmul.f32 %v530, %v382
  %v538 = vmul.f32 %v531, %v387
  %539 = vst [vmem:[#allocation2 + $0x1] sm:$0xff] %v534
  %540 = vst [vmem:[#allocation2 + $0x9] sm:$0xff] %v535
  %541 = vst [vmem:[#allocation2 + $0x11] sm:$0xff] %v536
  %542 = vst [vmem:[#allocation2 + $0x19] sm:$0xff] %v537
  %543 = vst [vmem:[#allocation2 + $0x21] sm:$0x3] %v538
  %v544 = vld [vmem:[#allocation2] sm:$0xff]
  %v545 = vld [vmem:[#allocation2 + $0x8] sm:$0xff]
  %v546 = vld [vmem:[#allocation2 + $0x10] sm:$0xff]
  %v547 = vld [vmem:[#allocation2 + $0x18] sm:$0xff]
  %v548 = vld [vmem:[#allocation2 + $0x20] sm:$0x3]
  %v549 = vld [vmem:[%s3] sm:$0xff]
  %v550 = vld [vmem:[%s3 + $0x8] sm:$0xff]
  %v551 = vld [vmem:[%s3 + $0x10] sm:$0xff]
  %v552 = vld [vmem:[%s3 + $0x18] sm:$0xff]
  %v553 = vld [vmem:[%s3 + $0x20] sm:$0xff]
  %v554 = vld [vmem:[%s3 + $0x28] sm:$0xff]
  %v555 = vld [vmem:[%s3 + $0x30] sm:$0xff]
  %v556 = vld [vmem:[%s3 + $0x38] sm:$0xff]
  %v557 = vld [vmem:[%s3 + $0x40] sm:$0xff]
  %v558 = vld [vmem:[%s3 + $0x48] sm:$0xff]
  %v559 = vld [vmem:[%s3 + $0x50] sm:$0xff]
  %v560 = vld [vmem:[%s3 + $0x58] sm:$0xff]
  %v561 = vld [vmem:[%s3 + $0x60] sm:$0xff]
  %v562 = vld [vmem:[%s3 + $0x68] sm:$0xff]
  %v563 = vld [vmem:[%s3 + $0x70] sm:$0xff]
  %v564 = vld [vmem:[%s3 + $0x78] sm:$0xff]
  %v565 = vld [vmem:[#allocation2 + $0x1] sm:$0xff]
  %v566 = vld [vmem:[#allocation2 + $0x9] sm:$0xff]
  %v567 = vld [vmem:[#allocation2 + $0x11] sm:$0xff]
  %v568 = vld [vmem:[#allocation2 + $0x19] sm:$0xff]
  %v569 = vld [vmem:[#allocation2 + $0x21] sm:$0x3]
  %s570 = scalar_lea.vmem %s3, 128
  %v571 = vld [vmem:[%s570] sm:$0xff]
  %v572 = vld [vmem:[%s570 + $0x8] sm:$0xff]
  %v573 = vld [vmem:[%s570 + $0x10] sm:$0xff]
  %v574 = vld [vmem:[%s570 + $0x18] sm:$0xff]
  %v575 = vld [vmem:[%s570 + $0x20] sm:$0xff]
  %v576 = vld [vmem:[%s570 + $0x28] sm:$0xff]
  %v577 = vld [vmem:[%s570 + $0x30] sm:$0xff]
  %v578 = vld [vmem:[%s570 + $0x38] sm:$0xff]
  %v579 = vld [vmem:[%s570 + $0x40] sm:$0xff]
  %v580 = vld [vmem:[%s570 + $0x48] sm:$0xff]
  %v581 = vld [vmem:[%s570 + $0x50] sm:$0xff]
  %v582 = vld [vmem:[%s570 + $0x58] sm:$0xff]
  %v583 = vld [vmem:[%s570 + $0x60] sm:$0xff]
  %v584 = vld [vmem:[%s570 + $0x68] sm:$0xff]
  %v585 = vld [vmem:[%s570 + $0x70] sm:$0xff]
  %v586 = vld [vmem:[%s570 + $0x78] sm:$0xff]
  %587 = vmatpush.msra.mxu0 %v586
  %588 = vmatpush.msra.mxu0 %v585
  %589 = vmatpush.msra.mxu0 %v584
  %590 = vmatpush.msra.mxu0 %v583
  %591 = vmatpush.msra.mxu0 %v582
  %592 = vmatpush.msra.mxu0 %v581
  %593 = vmatpush.msra.mxu0 %v580
  %594 = vmatpush.msra.mxu0 %v579
  %595 = vmatpush.msra.mxu0 %v578
  %596 = vmatpush.msra.mxu0 %v577
  %597 = vmatpush.msra.mxu0 %v576
  %598 = vmatpush.msra.mxu0 %v575
  %599 = vmatpush.msra.mxu0 %v574
  %600 = vmatpush.msra.mxu0 %v573
  %601 = vmatpush.msra.mxu0 %v572
  %602 = vmatpush.msra.mxu0 %v571
  %603 = vmatmul.f32.gmra.mxu0 %v565
  %v604 = vpop.f32.mrf.mxu0
  %v605 = vadd.f32 0.0, %v604
  %606 = vmatmul.f32.gmra.mxu0 %v566
  %v607 = vpop.f32.mrf.mxu0
  %v608 = vadd.f32 0.0, %v607
  %609 = vmatmul.f32.gmra.mxu0 %v567
  %v610 = vpop.f32.mrf.mxu0
  %v611 = vadd.f32 0.0, %v610
  %612 = vmatmul.f32.gmra.mxu0 %v568
  %v613 = vpop.f32.mrf.mxu0
  %v614 = vadd.f32 0.0, %v613
  %615 = vmatmul.f32.gmra.mxu0 %v569
  %v616 = vpop.f32.mrf.mxu0
  %v617 = vadd.f32 0.0, %v616
  %618 = vdwg.mxu0
  %619 = vmatpush.msra.mxu0 %v564
  %620 = vmatpush.msra.mxu0 %v563
  %621 = vmatpush.msra.mxu0 %v562
  %622 = vmatpush.msra.mxu0 %v561
  %623 = vmatpush.msra.mxu0 %v560
  %624 = vmatpush.msra.mxu0 %v559
  %625 = vmatpush.msra.mxu0 %v558
  %626 = vmatpush.msra.mxu0 %v557
  %627 = vmatpush.msra.mxu0 %v556
  %628 = vmatpush.msra.mxu0 %v555
  %629 = vmatpush.msra.mxu0 %v554
  %630 = vmatpush.msra.mxu0 %v553
  %631 = vmatpush.msra.mxu0 %v552
  %632 = vmatpush.msra.mxu0 %v551
  %633 = vmatpush.msra.mxu0 %v550
  %634 = vmatpush.msra.mxu0 %v549
  %635 = vmatmul.f32.gmra.mxu0 %v544
  %v636 = vpop.f32.mrf.mxu0
  %v637 = vadd.f32 %v605, %v636
  %638 = vmatmul.f32.gmra.mxu0 %v545
  %v639 = vpop.f32.mrf.mxu0
  %v640 = vadd.f32 %v608, %v639
  %641 = vmatmul.f32.gmra.mxu0 %v546
  %v642 = vpop.f32.mrf.mxu0
  %v643 = vadd.f32 %v611, %v642
  %644 = vmatmul.f32.gmra.mxu0 %v547
  %v645 = vpop.f32.mrf.mxu0
  %v646 = vadd.f32 %v614, %v645
  %647 = vmatmul.f32.gmra.mxu0 %v548
  %v648 = vpop.f32.mrf.mxu0
  %v649 = vadd.f32 %v617, %v648
  %650 = vdwg.mxu0
  %v651 = vld [vmem:[#allocation2 + $0x2] sm:$0xff]
  %v652 = vld [vmem:[#allocation2 + $0xa] sm:$0xff]
  %v653 = vld [vmem:[#allocation2 + $0x12] sm:$0xff]
  %v654 = vld [vmem:[#allocation2 + $0x1a] sm:$0xff]
  %v655 = vld [vmem:[#allocation2 + $0x22] sm:$0x3]
  %s656 = scalar_lea.vmem %s3, 256
  %v657 = vld [vmem:[%s656] sm:$0xff]
  %v658 = vld [vmem:[%s656 + $0x8] sm:$0xff]
  %v659 = vld [vmem:[%s656 + $0x10] sm:$0xff]
  %v660 = vld [vmem:[%s656 + $0x18] sm:$0xff]
  %v661 = vld [vmem:[%s656 + $0x20] sm:$0xff]
  %v662 = vld [vmem:[%s656 + $0x28] sm:$0xff]
  %v663 = vld [vmem:[%s656 + $0x30] sm:$0xff]
  %v664 = vld [vmem:[%s656 + $0x38] sm:$0xff]
  %v665 = vld [vmem:[%s656 + $0x40] sm:$0xff]
  %v666 = vld [vmem:[%s656 + $0x48] sm:$0xff]
  %v667 = vld [vmem:[%s656 + $0x50] sm:$0xff]
  %v668 = vld [vmem:[%s656 + $0x58] sm:$0xff]
  %v669 = vld [vmem:[%s656 + $0x60] sm:$0xff]
  %v670 = vld [vmem:[%s656 + $0x68] sm:$0xff]
  %v671 = vld [vmem:[%s656 + $0x70] sm:$0xff]
  %v672 = vld [vmem:[%s656 + $0x78] sm:$0xff]
  %673 = vmatpush.msra.mxu0 %v672
  %674 = vmatpush.msra.mxu0 %v671
  %675 = vmatpush.msra.mxu0 %v670
  %676 = vmatpush.msra.mxu0 %v669
  %677 = vmatpush.msra.mxu0 %v668
  %678 = vmatpush.msra.mxu0 %v667
  %679 = vmatpush.msra.mxu0 %v666
  %680 = vmatpush.msra.mxu0 %v665
  %681 = vmatpush.msra.mxu0 %v664
  %682 = vmatpush.msra.mxu0 %v663
  %683 = vmatpush.msra.mxu0 %v662
  %684 = vmatpush.msra.mxu0 %v661
  %685 = vmatpush.msra.mxu0 %v660
  %686 = vmatpush.msra.mxu0 %v659
  %687 = vmatpush.msra.mxu0 %v658
  %688 = vmatpush.msra.mxu0 %v657
  %689 = vmatmul.f32.gmra.mxu0 %v651
  %v690 = vpop.f32.mrf.mxu0
  %v691 = vadd.f32 0.0, %v690
  %692 = vmatmul.f32.gmra.mxu0 %v652
  %v693 = vpop.f32.mrf.mxu0
  %v694 = vadd.f32 0.0, %v693
  %695 = vmatmul.f32.gmra.mxu0 %v653
  %v696 = vpop.f32.mrf.mxu0
  %v697 = vadd.f32 0.0, %v696
  %698 = vmatmul.f32.gmra.mxu0 %v654
  %v699 = vpop.f32.mrf.mxu0
  %v700 = vadd.f32 0.0, %v699
  %701 = vmatmul.f32.gmra.mxu0 %v655
  %v702 = vpop.f32.mrf.mxu0
  %v703 = vadd.f32 0.0, %v702
  %704 = vdwg.mxu0
  %v705 = vadd.f32 %v637, %v691
  %v706 = vadd.f32 %v640, %v694
  %v707 = vadd.f32 %v643, %v697
  %v708 = vadd.f32 %v646, %v700
  %v709 = vadd.f32 %v649, %v703
  %v710 = vld [vmem:[%s7] sm:$0x1]
  %v711 = vld [vmem:[%s8] sm:$0x1]
  %v712 = vmul.f32 %v705, %v367
  %v713 = vmul.f32 %v706, %v372
  %v714 = vmul.f32 %v707, %v377
  %v715 = vmul.f32 %v708, %v382
  %v716 = vmul.f32 %v709, %v387
  %v717 = vadd.f32 %v712, %v713
  %v718 = vadd.f32 %v717, %v714
  %v719 = vadd.f32 %v718, %v715
  %v720 = vsel %vm397, %v716, 0.0
  %v721 = vadd.f32 %v719, %v720
  %v722 = vrot.slane %v721, 4
  %v723 = vadd.f32 %v721, %v722
  %v724 = vrot.slane %v723, 2
  %v725 = vadd.f32 %v723, %v724
  %v726 = vrot.slane %v725, 1
  %v727 = vadd.f32 %v725, %v726
  %v728 = vmul.f32 %v705, %v705
  %v729 = vmul.f32 %v706, %v706
  %v730 = vmul.f32 %v707, %v707
  %v731 = vmul.f32 %v708, %v708
  %v732 = vmul.f32 %v709, %v709
  %v733 = vmul.f32 %v728, %v367
  %v734 = vmul.f32 %v729, %v372
  %v735 = vmul.f32 %v730, %v377
  %v736 = vmul.f32 %v731, %v382
  %v737 = vmul.f32 %v732, %v387
  %v738 = vadd.f32 %v733, %v734
  %v739 = vadd.f32 %v738, %v735
  %v740 = vadd.f32 %v739, %v736
  %v741 = vsel %vm397, %v737, 0.0
  %v742 = vadd.f32 %v740, %v741
  %v743 = vrot.slane %v742, 4
  %v744 = vadd.f32 %v742, %v743
  %v745 = vrot.slane %v744, 2
  %v746 = vadd.f32 %v744, %v745
  %v747 = vrot.slane %v746, 1
  %v748 = vadd.f32 %v746, %v747
  %v749 = vld [vmem:[%s4] sm:$0xff]
  %v750 = vld [vmem:[%s4 + $0x8] sm:$0xff]
  %v751 = vld [vmem:[%s4 + $0x10] sm:$0xff]
  %v752 = vld [vmem:[%s4 + $0x18] sm:$0xff]
  %v753 = vld [vmem:[%s4 + $0x20] sm:$0xff]
  %v754 = vld [vmem:[%s4 + $0x28] sm:$0xff]
  %v755 = vld [vmem:[%s4 + $0x30] sm:$0xff]
  %v756 = vld [vmem:[%s4 + $0x38] sm:$0xff]
  %v757 = vld [vmem:[%s4 + $0x40] sm:$0xff]
  %v758 = vld [vmem:[%s4 + $0x48] sm:$0xff]
  %v759 = vld [vmem:[%s4 + $0x50] sm:$0xff]
  %v760 = vld [vmem:[%s4 + $0x58] sm:$0xff]
  %v761 = vld [vmem:[%s4 + $0x60] sm:$0xff]
  %v762 = vld [vmem:[%s4 + $0x68] sm:$0xff]
  %v763 = vld [vmem:[%s4 + $0x70] sm:$0xff]
  %v764 = vld [vmem:[%s4 + $0x78] sm:$0xff]
  %765 = vmatpush.msra.mxu0 %v764
  %766 = vmatpush.msra.mxu0 %v763
  %767 = vmatpush.msra.mxu0 %v762
  %768 = vmatpush.msra.mxu0 %v761
  %769 = vmatpush.msra.mxu0 %v760
  %770 = vmatpush.msra.mxu0 %v759
  %771 = vmatpush.msra.mxu0 %v758
  %772 = vmatpush.msra.mxu0 %v757
  %773 = vmatpush.msra.mxu0 %v756
  %774 = vmatpush.msra.mxu0 %v755
  %775 = vmatpush.msra.mxu0 %v754
  %776 = vmatpush.msra.mxu0 %v753
  %777 = vmatpush.msra.mxu0 %v752
  %778 = vmatpush.msra.mxu0 %v751
  %779 = vmatpush.msra.mxu0 %v750
  %780 = vmatpush.msra.mxu0 %v749
  %781 = vmatmul.f32.gmra.mxu0 %v727
  %v782 = vpop.f32.mrf.mxu0
  %v783 = vadd.f32 0.0, %v782
  %784 = vdwg.mxu0
  %v785 = vmul.f32 %v783, 0.001953125
  %786 = vmatpush.msra.mxu0 %v764
  %787 = vmatpush.msra.mxu0 %v763
  %788 = vmatpush.msra.mxu0 %v762
  %789 = vmatpush.msra.mxu0 %v761
  %790 = vmatpush.msra.mxu0 %v760
  %791 = vmatpush.msra.mxu0 %v759
  %792 = vmatpush.msra.mxu0 %v758
  %793 = vmatpush.msra.mxu0 %v757
  %794 = vmatpush.msra.mxu0 %v756
  %795 = vmatpush.msra.mxu0 %v755
  %796 = vmatpush.msra.mxu0 %v754
  %797 = vmatpush.msra.mxu0 %v753
  %798 = vmatpush.msra.mxu0 %v752
  %799 = vmatpush.msra.mxu0 %v751
  %800 = vmatpush.msra.mxu0 %v750
  %801 = vmatpush.msra.mxu0 %v749
  %802 = vmatmul.f32.gmra.mxu0 %v748
  %v803 = vpop.f32.mrf.mxu0
  %v804 = vadd.f32 0.0, %v803
  %805 = vdwg.mxu0
  %v806 = vmul.f32 %v804, 0.001953125
  %v807 = vmul.f32 %v785, %v785
  %v808 = vsub.f32 %v806, %v807
  %v809 = vmax.f32 %v808, 0.0
  %v810 = vperm.slane %v785, 0
  %v811 = vsub.f32 %v705, %v810
  %v812 = vsub.f32 %v706, %v810
  %v813 = vsub.f32 %v707, %v810
  %v814 = vsub.f32 %v708, %v810
  %v815 = vsub.f32 %v709, %v810
  %v816 = vadd.f32 %v809, 1e-05
  %v817 = vrsqrt.pop %v816
  %v818 = vmul.f32 %v817, %v816
  %v819 = vmul.f32 %v818, %v817
  %v820 = vmul.f32 0.5, %v819
  %v821 = vsub.f32 1.5, %v820
  %v822 = vmul.f32 %v817, %v821
  %vm823 = vweird.f32 %v816
  %vm824 = vweird.f32 %v817
  %vm825 = vmor %vm823, %vm824
  %v826 = vsel %vm825, %v817, %v822
  %v827 = vmul.f32 %v710, %v826
  %v829 = vperm.slane %v827, 0
  %v831 = vmul.f32 %v811, %v829
  %v832 = vmul.f32 %v812, %v829
  %v833 = vmul.f32 %v813, %v829
  %v834 = vmul.f32 %v814, %v829
  %v835 = vmul.f32 %v815, %v829
  %v837 = vperm.slane %v711, 0
  %v839 = vadd.f32 %v831, %v837
  %v840 = vadd.f32 %v832, %v837
  %v841 = vadd.f32 %v833, %v837
  %v842 = vadd.f32 %v834, %v837
  %v843 = vadd.f32 %v835, %v837
  %v844 = vmul.f32 %v839, 0.1
  %v845 = vmul.f32 %v840, 0.1
  %v846 = vmul.f32 %v841, 0.1
  %v847 = vmul.f32 %v842, 0.1
  %v848 = vmul.f32 %v843, 0.1
  %v849 = vmax.f32 %v839, %v844
  %v850 = vmax.f32 %v840, %v845
  %v851 = vmax.f32 %v841, %v846
  %v852 = vmax.f32 %v842, %v847
  %v853 = vmax.f32 %v843, %v848
  %v854 = vadd.f32 %v849, %v357
  %v855 = vadd.f32 %v850, %v358
  %v856 = vadd.f32 %v851, %v359
  %v857 = vadd.f32 %v852, %v360
  %v858 = vadd.f32 %v853, %v361
  %859 = vst [vmem:[%s10] sm:$0xff] %v854
  %860 = vst [vmem:[%s10 + $0x8] sm:$0xff] %v855
  %861 = vst [vmem:[%s10 + $0x10] sm:$0xff] %v856
  %862 = vst [vmem:[%s10 + $0x18] sm:$0xff] %v857
  %863 = vst [vmem:[%s10 + $0x20] sm:$0x3] %v858
  // Predicated region
  $region42: #{resunit_forward_pallas.1} parent=0 // pred_check
    _
  $region43: #{resunit_forward_pallas.1} parent=0 // pred_check_branch
    %865 = sbr.rel (0) target = $region45
  $region44: #{resunit_forward_pallas.1} parent=0 // pred_region
    _
  $region45: #{resunit_forward_pallas.1} parent=0 // pred_fallthru
    _
  // Predicated region
  $region46: #{resunit_forward_pallas.1} parent=0 // pred_check
    _
  $region47: #{resunit_forward_pallas.1} parent=0 // pred_check_branch
    %867 = sbr.rel (0) target = $region49
  $region48: #{resunit_forward_pallas.1} parent=0 // pred_region
    _
  $region49: #{resunit_forward_pallas.1} parent=0 // pred_fallthru
    _

</llo_original>
